<compile_context>
chip_gen: v7x
topology: tpu7x:2x2x1
jax: 0.10.0
libtpu: 0.0.40
codegen_flags: <defaults>
</compile_context>

<pallas_src>
import functools

import jax
import jax.numpy as jnp
import numpy as np
from jax import lax
from jax.experimental import pallas as pl
from jax.experimental.pallas import tpu as pltpu


def _res_ca_kernel(x_ref, wb1_ref, b1_ref, wb2_ref, b2_ref,
                   wd_ref, bd_ref, wu_ref, bu_ref,
                   o_ref, col_ref, *,
                   B, H, W, C, Cr, CA, res_scale):
    # x_ref  : (B*H, W*C)      f32 activation slab (also the residual source)
    # wb1/wb2: (3*W*C, W*C)    block-banded conv weights (conv dtype)
    # b1/b2  : (1, W*C)        conv biases tiled across W (f32)
    # wd/bd  : (Cr, C)/(1, Cr) CA squeeze weights (wd transposed) (f32)
    # wu/bu  : (Cr, C)/(1, C)  CA excite weights (f32)
    # o_ref  : (B*H, W*C)      output slab
    # col_ref: (B*H, 3*W*C)    K-stacked matmul operand scratch (conv dtype)
    BH = B * H
    WC = W * C
    cdt = col_ref.dtype

    def lrelu(v):
        return jnp.maximum(v, 0.2 * v)          # LeakyReLU(0.2): one VPU max

    # Per-row "h within image" index, used to zero the rows of the shifted
    # dh=0 / dh=2 taps that fall outside the image (top / bottom padding).
    h_idx = lax.broadcasted_iota(jnp.int32, (BH, 1), 0) % H

    def build_col(act):
        # act: (BH, WC) activation slab in the matmul dtype.
        # Tap dh in {0,1,2} needs, for output row h, input row h + dh - 1
        # (zero outside the image).  The dw taps and left/right zero padding
        # are folded into the banded weight, so each tap block is just a
        # row-shifted copy of the slab stored at a 128-aligned lane offset
        # (full, unmasked vreg stores).
        zero_row = jnp.zeros((1, WC), cdt)
        prev = jnp.concatenate([zero_row, act[:-1, :]], axis=0)        # row h-1
        prev = jnp.where(h_idx == 0, jnp.zeros_like(prev), prev)
        nxt = jnp.concatenate([act[1:, :], zero_row], axis=0)          # row h+1
        nxt = jnp.where(h_idx == H - 1, jnp.zeros_like(nxt), nxt)
        col_ref[:, 0 * WC:1 * WC] = prev
        col_ref[:, 1 * WC:2 * WC] = act
        col_ref[:, 2 * WC:3 * WC] = nxt

    x = x_ref[...]                              # (BH, WC) f32 residual source

    # ---- conv1: one K = 3*W*C MXU matmul + bias + LeakyReLU ----
    build_col(x.astype(cdt))
    out1 = jnp.dot(col_ref[...], wb1_ref[...],
                   preferred_element_type=jnp.float32) + b1_ref[...]
    out1 = lrelu(out1)                          # (BH, WC) f32

    # ---- optional channel attention (squeeze/excite, per image, VPU only) ----
    if CA:
        # Global average pool: per-image row sum, then fold the W lane groups.
        rows = [jnp.sum(out1[b * H:(b + 1) * H, :], axis=0, keepdims=True)
                for b in range(B)]
        ysum = jnp.concatenate(rows, axis=0)                           # (B, WC)
        y = jnp.zeros((B, C), jnp.float32)
        for w in range(W):
            y = y + ysum[:, w * C:(w + 1) * C]
        y = y * (1.0 / (H * W))                                        # (B, C)
        # Squeeze: h[b, r] = relu(sum_c y[b, c] * wd[c, r] + bd[r])
        hcols = [jnp.sum(y * wd_ref[r:r + 1, :], axis=1, keepdims=True)
                 for r in range(Cr)]
        hvec = jnp.concatenate(hcols, axis=1)                          # (B, Cr)
        hvec = jnp.maximum(hvec + bd_ref[...], 0.0)
        # Excite: z[b, c] = sigmoid(sum_r h[b, r] * wu[r, c] + bu[c])
        zacc = jnp.zeros((B, C), jnp.float32) + bu_ref[...]
        for r in range(Cr):
            zacc = zacc + hvec[:, r:r + 1] * wu_ref[r:r + 1, :]
        z = jax.nn.sigmoid(zacc)                                       # (B, C)
        zt = jnp.concatenate([z] * W, axis=1)                          # (B, WC)
        out1 = (out1.reshape(B, H, WC) * zt[:, None, :]).reshape(BH, WC)

    # ---- conv2: one K = 3*W*C MXU matmul + bias + LeakyReLU ----
    build_col(out1.astype(cdt))
    out2 = jnp.dot(col_ref[...], wb2_ref[...],
                   preferred_element_type=jnp.float32) + b2_ref[...]
    out2 = lrelu(out2)                          # (BH, WC) f32

    # ---- epilogue: residual from the original f32 input, lane-dense store ----
    o_ref[...] = (out2 * res_scale + x).astype(o_ref.dtype)


def _banded_conv_weight(w_hwio, W, dtype):
    """(3,3,Ci,Co) conv weight -> (3*W*Ci, W*Co) block-banded matmul weight.

    Row k = dh*W*Ci + q*Ci + ci corresponds to input pixel (h+dh-1, q, ci) of
    output row h; column n = w*Co + co is output pixel (h, w, co).  The dw taps
    appear as the band q = w + dw - 1; entries with q outside [0, W) are simply
    dropped, which implements the left/right zero padding.  Host-side
    precompute (cache these per layer in a real network).
    """
    w = np.asarray(jax.device_get(w_hwio), dtype=np.float32)    # (3,3,Ci,Co)
    _, _, Ci, Co = w.shape
    wb = np.zeros((3 * W * Ci, W * Co), np.float32)
    for dh in range(3):
        for dw in range(3):
            for wo in range(W):
                q = wo + dw - 1
                if 0 <= q < W:
                    wb[dh * W * Ci + q * Ci: dh * W * Ci + (q + 1) * Ci,
                       wo * Co:(wo + 1) * Co] = w[dh, dw]
    return jnp.asarray(wb, dtype=dtype)


def _pick_block_batch(n, max_b=8):
    # Largest divisor of n that is <= max_b AND keeps the grid >= 2 steps,
    # so both v7x TensorCores get work when n >= 2 (harmless on v5e/v6e).
    target = min(max_b, max(n // 2, 1))
    for b in range(target, 0, -1):
        if n % b == 0:
            return b
    return 1


def res_ca_block_nhwc(x_nhwc, params, *, CA=False, res_scale=1.0,
                      conv_dtype=jnp.bfloat16, out_dtype=jnp.float32,
                      block_batch=None):
    """Fused Res_CA_Block on NHWC activations (kept NHWC end-to-end)."""
    N, H, W, C = x_nhwc.shape
    assert params['w1'].shape == (3, 3, C, C), "residual add requires Cin == Cout"
    Cr = params['wd'].shape[1]
    WC = W * C
    # Lane-dense layout: the lane dim of every block is W*C.
    # TODO(synk): generalize to W*C not a multiple of 128 (needs lane padding).
    assert WC % 128 == 0, "kernel assumes W*C is a multiple of 128"

    B = block_batch if block_batch is not None else _pick_block_batch(N)
    assert N % B == 0
    assert (B * H) % 8 == 0, "kernel assumes B*H is a multiple of 8"

    # Activation as a lane-dense 2-D slab; pure metadata reshape of NHWC.
    x2d = x_nhwc.astype(jnp.float32).reshape(N * H, WC)

    # Block-banded conv weights + biases tiled across W (host precompute).
    wb1 = _banded_conv_weight(params['w1'], W, conv_dtype)      # (3*WC, WC)
    wb2 = _banded_conv_weight(params['w2'], W, conv_dtype)
    b1t = jnp.tile(params['b1'].astype(jnp.float32), W).reshape(1, WC)
    b2t = jnp.tile(params['b2'].astype(jnp.float32), W).reshape(1, WC)
    # Channel-attention weights (squeeze weight transposed -> lane-dense rows).
    wdt = jnp.transpose(params['wd']).astype(jnp.float32)       # (Cr, C)
    bdt = params['bd'].reshape(1, Cr).astype(jnp.float32)
    wut = params['wu'].astype(jnp.float32)                      # (Cr, C)
    but = params['bu'].reshape(1, C).astype(jnp.float32)

    kernel = functools.partial(_res_ca_kernel, B=B, H=H, W=W, C=C, Cr=Cr,
                               CA=CA, res_scale=float(res_scale))

    grid_spec = pltpu.PrefetchScalarGridSpec(
        num_scalar_prefetch=0,
        grid=(N // B,),
        in_specs=[
            pl.BlockSpec((B * H, WC), lambda n: (n, 0)),         # x slab (f32)
            pl.BlockSpec((3 * WC, WC), lambda n: (0, 0)),        # banded w1
            pl.BlockSpec((1, WC), lambda n: (0, 0)),             # bias1 (tiled)
            pl.BlockSpec((3 * WC, WC), lambda n: (0, 0)),        # banded w2
            pl.BlockSpec((1, WC), lambda n: (0, 0)),             # bias2 (tiled)
            pl.BlockSpec((Cr, C), lambda n: (0, 0)),             # wd^T
            pl.BlockSpec((1, Cr), lambda n: (0, 0)),             # bd
            pl.BlockSpec((Cr, C), lambda n: (0, 0)),             # wu
            pl.BlockSpec((1, C), lambda n: (0, 0)),              # bu
        ],
        out_specs=pl.BlockSpec((B * H, WC), lambda n: (n, 0)),
        scratch_shapes=[
            pltpu.VMEM((B * H, 3 * WC), conv_dtype),             # K-stacked col
        ],
    )

    out = pl.pallas_call(
        kernel,
        out_shape=jax.ShapeDtypeStruct((N * H, WC), out_dtype),
        grid_spec=grid_spec,
        compiler_params=pltpu.CompilerParams(
            dimension_semantics=("parallel",),                   # image groups independent
            vmem_limit_bytes=32 * 1024 * 1024),
    )(x2d, wb1, b1t, wb2, b2t, wdt, bdt, wut, but)

    return out.reshape(N, H, W, C)


def res_ca_block(x_nchw, params, *, CA=False, res_scale=1.0,
                 conv_dtype=jnp.bfloat16, out_dtype=jnp.float32):
    # PyTorch-facing NCHW wrapper.  Inside a larger network, prefer
    # res_ca_block_nhwc to avoid layout transposes around every block.
    x = jnp.transpose(x_nchw, (0, 2, 3, 1))
    out = res_ca_block_nhwc(x, params, CA=CA, res_scale=res_scale,
                            conv_dtype=conv_dtype, out_dtype=out_dtype)
    return jnp.transpose(out, (0, 3, 1, 2))


# ---------------- pure-JAX reference (for correctness check) ----------------
def _conv3x3_ref(x_nhwc, w_hwio, b):
    y = lax.conv_general_dilated(x_nhwc, w_hwio, (1, 1), 'SAME',
                                 dimension_numbers=('NHWC', 'HWIO', 'NHWC'))
    return y + b.reshape(1, 1, 1, -1)


def res_ca_block_ref(x_nchw, params, *, CA=False, res_scale=1.0):
    x = jnp.transpose(x_nchw, (0, 2, 3, 1)).astype(jnp.float32)
    lrelu = lambda v: jnp.where(v > 0, v, 0.2 * v)
    out = lrelu(_conv3x3_ref(x, params['w1'], params['b1']))
    if CA:
        N, H, W, C = out.shape
        y = jnp.mean(out, axis=(1, 2))                            # (N, C)
        h = jnp.maximum(y @ params['wd'] + params['bd'], 0.0)
        z = jax.nn.sigmoid(h @ params['wu'] + params['bu'])
        out = out * z.reshape(N, 1, 1, C)
    out = lrelu(_conv3x3_ref(out, params['w2'], params['b2']))
    out = out * res_scale + x
    return jnp.transpose(out, (0, 3, 1, 2))


if __name__ == "__main__":
    N, C, H, W = 2, 32, 16, 16       # in_channels == out_channels (residual add)
    Cr = max(C // 16, 1)             # CALayer reduction=16

    key = jax.random.PRNGKey(0)
    ks = jax.random.split(key, 9)
    params = {
        'w1': jax.random.normal(ks[0], (3, 3, C, C), jnp.float32) * 0.05,
        'b1': jax.random.normal(ks[1], (C,), jnp.float32) * 0.05,
        'w2': jax.random.normal(ks[2], (3, 3, C, C), jnp.float32) * 0.05,
        'b2': jax.random.normal(ks[3], (C,), jnp.float32) * 0.05,
        'wd': jax.random.normal(ks[4], (C, Cr), jnp.float32) * 0.05,
        'bd': jax.random.normal(ks[5], (Cr,), jnp.float32) * 0.05,
        'wu': jax.random.normal(ks[6], (Cr, C), jnp.float32) * 0.05,
        'bu': jax.random.normal(ks[7], (C,), jnp.float32) * 0.05,
    }
    x = jax.random.normal(ks[8], (N, C, H, W), jnp.float32)

    for ca in (False, True):
        ref = jax.block_until_ready(res_ca_block_ref(x, params, CA=ca, res_scale=1.0))

        # f32 matmul path, f32 output: must match the reference tightly.
        out_f32 = jax.block_until_ready(
            res_ca_block(x, params, CA=ca, res_scale=1.0,
                         conv_dtype=jnp.float32, out_dtype=jnp.float32))
        assert out_f32.shape == (N, C, H, W)
        np.testing.assert_allclose(np.asarray(out_f32), np.asarray(ref),
                                   rtol=5e-4, atol=5e-4)

        # Production path: bf16 matmul operands + bf16 output, f32 accumulation
        # and f32 residual.  Tolerance sized for bf16 rounding through two
        # 288-term convolutions plus the final bf16 output cast.
        out_bf16 = jax.block_until_ready(
            res_ca_block(x, params, CA=ca, res_scale=1.0,
                         conv_dtype=jnp.bfloat16, out_dtype=jnp.bfloat16))
        assert out_bf16.shape == (N, C, H, W)
        np.testing.assert_allclose(np.asarray(out_bf16.astype(jnp.float32)),
                                   np.asarray(ref), rtol=1e-1, atol=1e-1)

    print("KERNEL_OK")
</pallas_src>

<mosaic_0001>
module attributes {stable_mosaic.version = 11 : i64} {
  func.func @_res_ca_kernel(%arg0: i32, %arg1: memref<16x512xf32, #tpu.memory_space<vmem>>, %arg2: memref<1536x512xf32, #tpu.memory_space<vmem>>, %arg3: memref<1x512xf32, #tpu.memory_space<vmem>>, %arg4: memref<1536x512xf32, #tpu.memory_space<vmem>>, %arg5: memref<1x512xf32, #tpu.memory_space<vmem>>, %arg6: memref<2x32xf32, #tpu.memory_space<vmem>>, %arg7: memref<1x2xf32, #tpu.memory_space<vmem>>, %arg8: memref<2x32xf32, #tpu.memory_space<vmem>>, %arg9: memref<1x32xf32, #tpu.memory_space<vmem>>, %arg10: memref<16x512xf32, #tpu.memory_space<vmem>>, %arg11: memref<16x1536xf32, #tpu.memory_space<vmem>>) attributes {dimension_semantics = [#tpu.dimension_semantics<parallel>], iteration_bounds = array<i64: 2>, scalar_prefetch = 0 : i64, scratch_operands = 1 : i64, tpu.core_type = #tpu.core_type<tc>, window_params = [{transform_indices = @transform_0, window_bounds = array<i64: 16, 512>}, {pipeline_mode = #tpu.pipeline_mode<synchronous>, transform_indices = @transform_1, window_bounds = array<i64: 1536, 512>}, {pipeline_mode = #tpu.pipeline_mode<synchronous>, transform_indices = @transform_2, window_bounds = array<i64: 1, 512>}, {pipeline_mode = #tpu.pipeline_mode<synchronous>, transform_indices = @transform_3, window_bounds = array<i64: 1536, 512>}, {pipeline_mode = #tpu.pipeline_mode<synchronous>, transform_indices = @transform_4, window_bounds = array<i64: 1, 512>}, {pipeline_mode = #tpu.pipeline_mode<synchronous>, transform_indices = @transform_5, window_bounds = array<i64: 2, 32>}, {pipeline_mode = #tpu.pipeline_mode<synchronous>, transform_indices = @transform_6, window_bounds = array<i64: 1, 2>}, {pipeline_mode = #tpu.pipeline_mode<synchronous>, transform_indices = @transform_7, window_bounds = array<i64: 2, 32>}, {pipeline_mode = #tpu.pipeline_mode<synchronous>, transform_indices = @transform_8, window_bounds = array<i64: 1, 32>}, {transform_indices = @transform_9, window_bounds = array<i64: 16, 512>}]} {
    %0 = tpu.iota {dimensions = array<i32: 0>} : vector<16x1xi32>
    %c16_i32 = arith.constant 16 : i32
    %c0_i32 = arith.constant 0 : i32
    %1 = arith.cmpi eq, %c16_i32, %c0_i32 : i32
    %c1_i32 = arith.constant 1 : i32
    %2 = arith.select %1, %c1_i32, %c16_i32 : i32
    %3 = vector.broadcast %2 : i32 to vector<16x1xi32>
    %4 = arith.remsi %0, %3 : vector<16x1xi32>
    %c0_i32_0 = arith.constant 0 : i32
    %5 = vector.broadcast %c0_i32_0 : i32 to vector<16x1xi32>
    %6 = arith.cmpi ne, %4, %5 : vector<16x1xi32>
    %c0_i32_1 = arith.constant 0 : i32
    %7 = vector.broadcast %c0_i32_1 : i32 to vector<16x1xi32>
    %8 = arith.cmpi slt, %4, %7 : vector<16x1xi32>
    %c0_i32_2 = arith.constant 0 : i32
    %9 = arith.cmpi slt, %2, %c0_i32_2 : i32
    %10 = vector.broadcast %9 : i1 to vector<16x1xi1>
    %11 = vector.broadcast %10 : vector<16x1xi1> to vector<16x1xi1>
    %12 = arith.xori %8, %11 : vector<16x1xi1>
    %13 = arith.andi %12, %6 : vector<16x1xi1>
    %14 = vector.broadcast %2 : i32 to vector<16x1xi32>
    %15 = arith.addi %4, %14 : vector<16x1xi32>
    %16 = arith.select %13, %15, %4 : vector<16x1xi1>, vector<16x1xi32>
    %c0 = arith.constant 0 : index
    %c0_3 = arith.constant 0 : index
    %17 = vector.load %arg1[%c0, %c0_3] : memref<16x512xf32, #tpu.memory_space<vmem>>, vector<16x512xf32>
    %cst = arith.constant 0.000000e+00 : f32
    %18 = vector.broadcast %cst : f32 to vector<1x512xf32>
    %19 = vector.extract_strided_slice %17 {offsets = [0, 0], sizes = [15, 512], strides = [1, 1]} : vector<16x512xf32> to vector<15x512xf32>
    %20 = tpu.concatenate %18, %19 in 0 : vector<1x512xf32>, vector<15x512xf32> -> vector<16x512xf32>
    %c0_i32_4 = arith.constant 0 : i32
    %21 = vector.broadcast %c0_i32_4 : i32 to vector<16x1xi32>
    %22 = arith.cmpi eq, %16, %21 : vector<16x1xi32>
    %cst_5 = arith.constant 0.000000e+00 : f32
    %23 = vector.broadcast %cst_5 : f32 to vector<16x512xf32>
    %24 = vector.shape_cast %22 : vector<16x1xi1> to vector<16x1xi1>
    %25 = vector.broadcast %24 : vector<16x1xi1> to vector<16x512xi1>
    %26 = arith.select %25, %23, %20 : vector<16x512xi1>, vector<16x512xf32>
    %27 = vector.extract_strided_slice %17 {offsets = [1, 0], sizes = [15, 512], strides = [1, 1]} : vector<16x512xf32> to vector<15x512xf32>
    %28 = tpu.concatenate %27, %18 in 0 : vector<15x512xf32>, vector<1x512xf32> -> vector<16x512xf32>
    %c15_i32 = arith.constant 15 : i32
    %29 = vector.broadcast %c15_i32 : i32 to vector<16x1xi32>
    %30 = arith.cmpi eq, %16, %29 : vector<16x1xi32>
    %cst_6 = arith.constant 0.000000e+00 : f32
    %31 = vector.broadcast %cst_6 : f32 to vector<16x512xf32>
    %32 = vector.shape_cast %30 : vector<16x1xi1> to vector<16x1xi1>
    %33 = vector.broadcast %32 : vector<16x1xi1> to vector<16x512xi1>
    %34 = arith.select %33, %31, %28 : vector<16x512xi1>, vector<16x512xf32>
    %c0_7 = arith.constant 0 : index
    %c0_8 = arith.constant 0 : index
    %35 = vector.load %arg11[%c0_7, %c0_8] : memref<16x1536xf32, #tpu.memory_space<vmem>>, vector<16x512xf32>
    tpu.vector_store %arg11[%c0_7, %c0_8], %26 {strides = array<i32>} : memref<16x1536xf32, #tpu.memory_space<vmem>>, vector<16x512xf32>,
    %c0_9 = arith.constant 0 : index
    %c512 = arith.constant 512 : index
    %36 = vector.load %arg11[%c0_9, %c512] : memref<16x1536xf32, #tpu.memory_space<vmem>>, vector<16x512xf32>
    tpu.vector_store %arg11[%c0_9, %c512], %17 {strides = array<i32>} : memref<16x1536xf32, #tpu.memory_space<vmem>>, vector<16x512xf32>,
    %c0_10 = arith.constant 0 : index
    %c1024 = arith.constant 1024 : index
    %37 = vector.load %arg11[%c0_10, %c1024] : memref<16x1536xf32, #tpu.memory_space<vmem>>, vector<16x512xf32>
    tpu.vector_store %arg11[%c0_10, %c1024], %34 {strides = array<i32>} : memref<16x1536xf32, #tpu.memory_space<vmem>>, vector<16x512xf32>,
    %c0_11 = arith.constant 0 : index
    %c0_12 = arith.constant 0 : index
    %38 = vector.load %arg11[%c0_11, %c0_12] : memref<16x1536xf32, #tpu.memory_space<vmem>>, vector<16x1536xf32>
    %c0_13 = arith.constant 0 : index
    %c0_14 = arith.constant 0 : index
    %39 = vector.load %arg2[%c0_13, %c0_14] : memref<1536x512xf32, #tpu.memory_space<vmem>>, vector<1536x512xf32>
    %cst_15 = arith.constant dense<0.000000e+00> : vector<16x512xf32>
    %40 = tpu.matmul %38, %39, %cst_15 {dimension_numbers = #tpu.dot_dimension_numbers<[1], [0], [0], [1], [0, 0, 1, 1], [], []>} : vector<16x1536xf32>, vector<1536x512xf32>, vector<16x512xf32> -> vector<16x512xf32>
    %c0_16 = arith.constant 0 : index
    %c0_17 = arith.constant 0 : index
    %41 = vector.load %arg3[%c0_16, %c0_17] : memref<1x512xf32, #tpu.memory_space<vmem>>, vector<1x512xf32>
    %42 = vector.broadcast %41 : vector<1x512xf32> to vector<16x512xf32>
    %43 = arith.addf %40, %42 : vector<16x512xf32>
    %cst_18 = arith.constant 2.000000e-01 : f32
    %44 = vector.broadcast %cst_18 : f32 to vector<16x512xf32>
    %45 = arith.mulf %44, %43 : vector<16x512xf32>
    %46 = arith.maximumf %43, %45 : vector<16x512xf32>
    %cst_19 = arith.constant 0.000000e+00 : f32
    %47 = vector.broadcast %cst_19 : f32 to vector<1x512xf32>
    %48 = vector.extract_strided_slice %46 {offsets = [0, 0], sizes = [15, 512], strides = [1, 1]} : vector<16x512xf32> to vector<15x512xf32>
    %49 = tpu.concatenate %47, %48 in 0 : vector<1x512xf32>, vector<15x512xf32> -> vector<16x512xf32>
    %c0_i32_20 = arith.constant 0 : i32
    %50 = vector.broadcast %c0_i32_20 : i32 to vector<16x1xi32>
    %51 = arith.cmpi eq, %16, %50 : vector<16x1xi32>
    %cst_21 = arith.constant 0.000000e+00 : f32
    %52 = vector.broadcast %cst_21 : f32 to vector<16x512xf32>
    %53 = vector.shape_cast %51 : vector<16x1xi1> to vector<16x1xi1>
    %54 = vector.broadcast %53 : vector<16x1xi1> to vector<16x512xi1>
    %55 = arith.select %54, %52, %49 : vector<16x512xi1>, vector<16x512xf32>
    %56 = vector.extract_strided_slice %46 {offsets = [1, 0], sizes = [15, 512], strides = [1, 1]} : vector<16x512xf32> to vector<15x512xf32>
    %57 = tpu.concatenate %56, %47 in 0 : vector<15x512xf32>, vector<1x512xf32> -> vector<16x512xf32>
    %c15_i32_22 = arith.constant 15 : i32
    %58 = vector.broadcast %c15_i32_22 : i32 to vector<16x1xi32>
    %59 = arith.cmpi eq, %16, %58 : vector<16x1xi32>
    %cst_23 = arith.constant 0.000000e+00 : f32
    %60 = vector.broadcast %cst_23 : f32 to vector<16x512xf32>
    %61 = vector.shape_cast %59 : vector<16x1xi1> to vector<16x1xi1>
    %62 = vector.broadcast %61 : vector<16x1xi1> to vector<16x512xi1>
    %63 = arith.select %62, %60, %57 : vector<16x512xi1>, vector<16x512xf32>
    %c0_24 = arith.constant 0 : index
    %c0_25 = arith.constant 0 : index
    %64 = vector.load %arg11[%c0_24, %c0_25] : memref<16x1536xf32, #tpu.memory_space<vmem>>, vector<16x512xf32>
    tpu.vector_store %arg11[%c0_24, %c0_25], %55 {strides = array<i32>} : memref<16x1536xf32, #tpu.memory_space<vmem>>, vector<16x512xf32>,
    %c0_26 = arith.constant 0 : index
    %c512_27 = arith.constant 512 : index
    %65 = vector.load %arg11[%c0_26, %c512_27] : memref<16x1536xf32, #tpu.memory_space<vmem>>, vector<16x512xf32>
    tpu.vector_store %arg11[%c0_26, %c512_27], %46 {strides = array<i32>} : memref<16x1536xf32, #tpu.memory_space<vmem>>, vector<16x512xf32>,
    %c0_28 = arith.constant 0 : index
    %c1024_29 = arith.constant 1024 : index
    %66 = vector.load %arg11[%c0_28, %c1024_29] : memref<16x1536xf32, #tpu.memory_space<vmem>>, vector<16x512xf32>
    tpu.vector_store %arg11[%c0_28, %c1024_29], %63 {strides = array<i32>} : memref<16x1536xf32, #tpu.memory_space<vmem>>, vector<16x512xf32>,
    %c0_30 = arith.constant 0 : index
    %c0_31 = arith.constant 0 : index
    %67 = vector.load %arg11[%c0_30, %c0_31] : memref<16x1536xf32, #tpu.memory_space<vmem>>, vector<16x1536xf32>
    %c0_32 = arith.constant 0 : index
    %c0_33 = arith.constant 0 : index
    %68 = vector.load %arg4[%c0_32, %c0_33] : memref<1536x512xf32, #tpu.memory_space<vmem>>, vector<1536x512xf32>
    %cst_34 = arith.constant dense<0.000000e+00> : vector<16x512xf32>
    %69 = tpu.matmul %67, %68, %cst_34 {dimension_numbers = #tpu.dot_dimension_numbers<[1], [0], [0], [1], [0, 0, 1, 1], [], []>} : vector<16x1536xf32>, vector<1536x512xf32>, vector<16x512xf32> -> vector<16x512xf32>
    %c0_35 = arith.constant 0 : index
    %c0_36 = arith.constant 0 : index
    %70 = vector.load %arg5[%c0_35, %c0_36] : memref<1x512xf32, #tpu.memory_space<vmem>>, vector<1x512xf32>
    %71 = vector.broadcast %70 : vector<1x512xf32> to vector<16x512xf32>
    %72 = arith.addf %69, %71 : vector<16x512xf32>
    %cst_37 = arith.constant 2.000000e-01 : f32
    %73 = vector.broadcast %cst_37 : f32 to vector<16x512xf32>
    %74 = arith.mulf %73, %72 : vector<16x512xf32>
    %75 = arith.maximumf %72, %74 : vector<16x512xf32>
    %cst_38 = arith.constant 1.000000e+00 : f32
    %76 = vector.broadcast %cst_38 : f32 to vector<16x512xf32>
    %77 = arith.mulf %75, %76 : vector<16x512xf32>
    %78 = arith.addf %77, %17 : vector<16x512xf32>
    %c0_39 = arith.constant 0 : index
    %c0_40 = arith.constant 0 : index
    %79 = vector.load %arg10[%c0_39, %c0_40] : memref<16x512xf32, #tpu.memory_space<vmem>>, vector<16x512xf32>
    tpu.vector_store %arg10[%c0_39, %c0_40], %78 {strides = array<i32>} : memref<16x512xf32, #tpu.memory_space<vmem>>, vector<16x512xf32>,
    return
  }
  func.func @transform_0(%arg0: i32) -> (i32, i32) {
    %c0_i32 = arith.constant 0 : i32
    %c0_i32_0 = arith.constant 0 : i32
    return %arg0, %c0_i32 : i32, i32
  }
  func.func @transform_1(%arg0: i32) -> (i32, i32) {
    %c0_i32 = arith.constant 0 : i32
    %c0_i32_0 = arith.constant 0 : i32
    %c0_i32_1 = arith.constant 0 : i32
    return %c0_i32, %c0_i32_0 : i32, i32
  }
  func.func @transform_2(%arg0: i32) -> (i32, i32) {
    %c0_i32 = arith.constant 0 : i32
    %c0_i32_0 = arith.constant 0 : i32
    %c0_i32_1 = arith.constant 0 : i32
    return %c0_i32, %c0_i32_0 : i32, i32
  }
  func.func @transform_3(%arg0: i32) -> (i32, i32) {
    %c0_i32 = arith.constant 0 : i32
    %c0_i32_0 = arith.constant 0 : i32
    %c0_i32_1 = arith.constant 0 : i32
    return %c0_i32, %c0_i32_0 : i32, i32
  }
  func.func @transform_4(%arg0: i32) -> (i32, i32) {
    %c0_i32 = arith.constant 0 : i32
    %c0_i32_0 = arith.constant 0 : i32
    %c0_i32_1 = arith.constant 0 : i32
    return %c0_i32, %c0_i32_0 : i32, i32
  }
  func.func @transform_5(%arg0: i32) -> (i32, i32) {
    %c0_i32 = arith.constant 0 : i32
    %c0_i32_0 = arith.constant 0 : i32
    %c0_i32_1 = arith.constant 0 : i32
    return %c0_i32, %c0_i32_0 : i32, i32
  }
  func.func @transform_6(%arg0: i32) -> (i32, i32) {
    %c0_i32 = arith.constant 0 : i32
    %c0_i32_0 = arith.constant 0 : i32
    %c0_i32_1 = arith.constant 0 : i32
    return %c0_i32, %c0_i32_0 : i32, i32
  }
  func.func @transform_7(%arg0: i32) -> (i32, i32) {
    %c0_i32 = arith.constant 0 : i32
    %c0_i32_0 = arith.constant 0 : i32
    %c0_i32_1 = arith.constant 0 : i32
    return %c0_i32, %c0_i32_0 : i32, i32
  }
  func.func @transform_8(%arg0: i32) -> (i32, i32) {
    %c0_i32 = arith.constant 0 : i32
    %c0_i32_0 = arith.constant 0 : i32
    %c0_i32_1 = arith.constant 0 : i32
    return %c0_i32, %c0_i32_0 : i32, i32
  }
  func.func @transform_9(%arg0: i32) -> (i32, i32) {
    %c0_i32 = arith.constant 0 : i32
    %c0_i32_0 = arith.constant 0 : i32
    return %arg0, %c0_i32 : i32, i32
  }
}

</mosaic_0001>

<llo_original>
// kernel: tpu_custom_call.1
$region0: #{tpu_custom_call.1}
  #allocation0 [shape = 'u32[]', space=smem, size = 0x4, offset = 0x4, fixed_abs, tag = 'smem constant byte address 0x4 - core index']
  #allocation1 [shape = 'u32[144,128]{1,0:T(1,128)}', space=vmem, size = 0x12000, scoped, tag = 'internal scratch']
  #allocation2 [shape = 'f32[16,1536]{1,0:T(8,128)}', space=vmem, size = 0x18000, scoped, tag = 'scratch operand']
  %s0 = inlined_call_operand.hbm [shape: f32[32,512], index: 0, kind: input, shape index: {}]
  %s1 = inlined_call_operand.hbm [shape: f32[1536,512], index: 1, kind: input, shape index: {}]
  %s2 = inlined_call_operand.hbm [shape: f32[1,512], index: 2, kind: input, shape index: {}]
  %s3 = inlined_call_operand.hbm [shape: f32[1536,512], index: 3, kind: input, shape index: {}]
  %s4 = inlined_call_operand.hbm [shape: f32[1,512], index: 4, kind: input, shape index: {}]
  %s5 = inlined_call_operand.hbm [shape: f32[2,32], index: 5, kind: input, shape index: {}]
  %s6 = inlined_call_operand.hbm [shape: f32[1,2], index: 6, kind: input, shape index: {}]
  %s7 = inlined_call_operand.hbm [shape: f32[2,32], index: 7, kind: input, shape index: {}]
  %s8 = inlined_call_operand.hbm [shape: f32[1,32], index: 8, kind: input, shape index: {}]
  %s9 = inlined_call_operand.hbm [shape: f32[32,512], index: 9, kind: output, shape index: {}]
  %s10 = sld [smem:[#allocation0]]
  $region105: #{tpu_custom_call.1} parent=0
    _
  %s12 = ssub.s32 1, %s10
  %s13 = scalar_select 0, %s12, %s10
  $region1: #{tpu_custom_call.1} parent=0
    #allocation3 [shape = 'u8[65536]{0}', space=vmem, size = 0x10000, scoped, tag = 'input window, operand 0']
    #allocation4 [shape = 's32[2]{0}', space=sflag, size = 0x8, scoped, tag = 'scoped memory for tpu_custom_call.1']
    #allocation5 [shape = 's32[2]{0}', space=sflag, size = 0x8, scoped, tag = 'scoped memory for tpu_custom_call.1']
    #allocation6 [shape = 'u8[3145728]{0}', space=vmem, size = 0x300000, scoped, tag = 'input window, operand 1, single buffered']
    #allocation7 [shape = 's32[1]{0}', space=sflag, size = 0x4, scoped, tag = 'scoped memory for tpu_custom_call.1']
    #allocation8 [shape = 'u8[2048]{0}', space=vmem, size = 0x800, scoped, tag = 'input window, operand 2, single buffered']
    #allocation9 [shape = 'u8[3145728]{0}', space=vmem, size = 0x300000, scoped, tag = 'input window, operand 3, single buffered']
    #allocation10 [shape = 's32[1]{0}', space=sflag, size = 0x4, scoped, tag = 'scoped memory for tpu_custom_call.1']
    #allocation11 [shape = 'u8[2048]{0}', space=vmem, size = 0x800, scoped, tag = 'input window, operand 4, single buffered']
    #allocation12 [shape = 'u8[1024]{0}', space=vmem, size = 0x400, scoped, tag = 'input window, operand 5, single buffered']
    #allocation13 [shape = 's32[1]{0}', space=sflag, size = 0x4, scoped, tag = 'scoped memory for tpu_custom_call.1']
    #allocation14 [shape = 'u8[512]{0}', space=vmem, size = 0x400, scoped, tag = 'input window, operand 6, single buffered']
    #allocation15 [shape = 'u8[1024]{0}', space=vmem, size = 0x400, scoped, tag = 'input window, operand 7, single buffered']
    #allocation16 [shape = 's32[1]{0}', space=sflag, size = 0x4, scoped, tag = 'scoped memory for tpu_custom_call.1']
    #allocation17 [shape = 'u8[512]{0}', space=vmem, size = 0x400, scoped, tag = 'input window, operand 8, single buffered']
    #allocation18 [shape = 'u8[65536]{0}', space=vmem, size = 0x10000, scoped, tag = 'output window, operand 0']
    %14 = vsyncpa [#allocation4], 0
    %s15 = scalar_lea.sflag [#allocation4], 1
    %16 = vsyncpa %s15, 0
    %17 = vsyncpa [#allocation7], 0
    %18 = vsyncpa [#allocation10], 0
    %19 = vsyncpa [#allocation13], 0
    %20 = vsyncpa [#allocation16], 0
    %21 = vsyncpa [#allocation5], 0
    %s22 = scalar_lea.sflag [#allocation5], 1
    %23 = vsyncpa %s22, 0
    loop: start=0, step=1, limit=4
    $region2: #{tpu_custom_call.1} parent=1 // loop_pre_header
      _
    $region3: #{tpu_custom_call.1} parent=1 // loop_header
      %s25 = sphi 0, %s29
      %p26 = scmp.ge.s32.totalorder %s25, 4
      %s35 = sphi 0, %s37
      %s38 = sphi 0, %s35
      %s39 = sphi 0, %s38
      %s55 = sphi 0, %s39
      %s59 = sphi 0, %s59
      %s61 = sphi 0, %s59
      %s62 = sphi 0, %s61
      %s76 = sphi 0, %s62
      %s80 = sphi 0, %s80
      %s82 = sphi 0, %s80
      %s83 = sphi 0, %s82
      %s97 = sphi 0, %s83
      %s101 = sphi 0, %s101
      %s103 = sphi 0, %s101
      %s104 = sphi 0, %s103
      %s118 = sphi 0, %s104
      %s122 = sphi 0, %s122
      %s124 = sphi 0, %s122
      %s125 = sphi 0, %s124
      %s139 = sphi 0, %s125
      %s143 = sphi 0, %s143
      %s145 = sphi 0, %s143
      %s146 = sphi 0, %s145
      %s160 = sphi 0, %s146
      %s164 = sphi 0, %s164
      %s166 = sphi 0, %s164
      %s167 = sphi 0, %s166
      %s181 = sphi 0, %s167
      %s185 = sphi 0, %s185
      %s187 = sphi 0, %s185
      %s188 = sphi 0, %s187
      %s202 = sphi 0, %s188
      %s206 = sphi 0, %s206
      %s208 = sphi 0, %s206
      %s209 = sphi 0, %s208
      %s223 = sphi 0, %s209
      %s229 = sphi 0, %s231
      %s232 = sphi 0, %s229
      %s233 = sphi 0, %s232
      %s249 = sphi 0, %s233
    $region4: #{tpu_custom_call.1} parent=1 // loop_header_branch
      %28 = sbr.rel (%p26) target = $region8
    $region5: #{tpu_custom_call.1} parent=1 // loop_body
      %s30 = ssub.s32 %s25, 1
      %s31 = ssub.s32 %s25, 2
      %s32 = sadd.s32 %s25, 1
      %s33 = ssub.s32 %s25, %s32
      %p34 = scmp.eq.s32.totalorder %s33, 0
      %s36 = sadd.s32 %s35, 1
      %s37 = scalar_select %p34, %s35, %s36
      %p40 = pneg %p34
      %p41 = scmp.eq.s32.totalorder %s25, 1
      %p42 = por %p40, %p41
      %p43 = scmp.ne.s32.totalorder %s35, %s38
      %p44 = scmp.eq.s32.totalorder %s25, 0
      %p45 = por %p43, %p44
      %p46 = scmp.ne.s32.totalorder %s35, %s38
      %p47 = scmp.eq.s32.totalorder %s30, 1
      %p48 = por %p46, %p47
      %p49 = scmp.ne.s32.totalorder %s38, %s39
      %p50 = scmp.eq.s32.totalorder %s30, 0
      %p51 = por %p49, %p50
      %p52 = scmp.ne.s32.totalorder %s38, %s39
      %p53 = scmp.eq.s32.totalorder %s31, 1
      %p54 = por %p52, %p53
      %p56 = scmp.ne.s32.totalorder %s39, %s55
      %p57 = scmp.eq.s32.totalorder %s31, 0
      %p58 = por %p56, %p57
      %s60 = sadd.s32 %s59, 1
      %p63 = scmp.eq.s32.totalorder %s25, 1
      %p64 = scmp.ne.s32.totalorder %s59, %s61
      %p65 = scmp.eq.s32.totalorder %s25, 0
      %p66 = por %p64, %p65
      %p67 = scmp.ne.s32.totalorder %s59, %s61
      %p68 = scmp.eq.s32.totalorder %s30, 1
      %p69 = por %p67, %p68
      %p70 = scmp.ne.s32.totalorder %s61, %s62
      %p71 = scmp.eq.s32.totalorder %s30, 0
      %p72 = por %p70, %p71
      %p73 = scmp.ne.s32.totalorder %s61, %s62
      %p74 = scmp.eq.s32.totalorder %s31, 1
      %p75 = por %p73, %p74
      %p77 = scmp.ne.s32.totalorder %s62, %s76
      %p78 = scmp.eq.s32.totalorder %s31, 0
      %p79 = por %p77, %p78
      %s81 = sadd.s32 %s80, 1
      %p84 = scmp.eq.s32.totalorder %s25, 1
      %p85 = scmp.ne.s32.totalorder %s80, %s82
      %p86 = scmp.eq.s32.totalorder %s25, 0
      %p87 = por %p85, %p86
      %p88 = scmp.ne.s32.totalorder %s80, %s82
      %p89 = scmp.eq.s32.totalorder %s30, 1
      %p90 = por %p88, %p89
      %p91 = scmp.ne.s32.totalorder %s82, %s83
      %p92 = scmp.eq.s32.totalorder %s30, 0
      %p93 = por %p91, %p92
      %p94 = scmp.ne.s32.totalorder %s82, %s83
      %p95 = scmp.eq.s32.totalorder %s31, 1
      %p96 = por %p94, %p95
      %p98 = scmp.ne.s32.totalorder %s83, %s97
      %p99 = scmp.eq.s32.totalorder %s31, 0
      %p100 = por %p98, %p99
      %s102 = sadd.s32 %s101, 1
      %p105 = scmp.eq.s32.totalorder %s25, 1
      %p106 = scmp.ne.s32.totalorder %s101, %s103
      %p107 = scmp.eq.s32.totalorder %s25, 0
      %p108 = por %p106, %p107
      %p109 = scmp.ne.s32.totalorder %s101, %s103
      %p110 = scmp.eq.s32.totalorder %s30, 1
      %p111 = por %p109, %p110
      %p112 = scmp.ne.s32.totalorder %s103, %s104
      %p113 = scmp.eq.s32.totalorder %s30, 0
      %p114 = por %p112, %p113
      %p115 = scmp.ne.s32.totalorder %s103, %s104
      %p116 = scmp.eq.s32.totalorder %s31, 1
      %p117 = por %p115, %p116
      %p119 = scmp.ne.s32.totalorder %s104, %s118
      %p120 = scmp.eq.s32.totalorder %s31, 0
      %p121 = por %p119, %p120
      %s123 = sadd.s32 %s122, 1
      %p126 = scmp.eq.s32.totalorder %s25, 1
      %p127 = scmp.ne.s32.totalorder %s122, %s124
      %p128 = scmp.eq.s32.totalorder %s25, 0
      %p129 = por %p127, %p128
      %p130 = scmp.ne.s32.totalorder %s122, %s124
      %p131 = scmp.eq.s32.totalorder %s30, 1
      %p132 = por %p130, %p131
      %p133 = scmp.ne.s32.totalorder %s124, %s125
      %p134 = scmp.eq.s32.totalorder %s30, 0
      %p135 = por %p133, %p134
      %p136 = scmp.ne.s32.totalorder %s124, %s125
      %p137 = scmp.eq.s32.totalorder %s31, 1
      %p138 = por %p136, %p137
      %p140 = scmp.ne.s32.totalorder %s125, %s139
      %p141 = scmp.eq.s32.totalorder %s31, 0
      %p142 = por %p140, %p141
      %s144 = sadd.s32 %s143, 1
      %p147 = scmp.eq.s32.totalorder %s25, 1
      %p148 = scmp.ne.s32.totalorder %s143, %s145
      %p149 = scmp.eq.s32.totalorder %s25, 0
      %p150 = por %p148, %p149
      %p151 = scmp.ne.s32.totalorder %s143, %s145
      %p152 = scmp.eq.s32.totalorder %s30, 1
      %p153 = por %p151, %p152
      %p154 = scmp.ne.s32.totalorder %s145, %s146
      %p155 = scmp.eq.s32.totalorder %s30, 0
      %p156 = por %p154, %p155
      %p157 = scmp.ne.s32.totalorder %s145, %s146
      %p158 = scmp.eq.s32.totalorder %s31, 1
      %p159 = por %p157, %p158
      %p161 = scmp.ne.s32.totalorder %s146, %s160
      %p162 = scmp.eq.s32.totalorder %s31, 0
      %p163 = por %p161, %p162
      %s165 = sadd.s32 %s164, 1
      %p168 = scmp.eq.s32.totalorder %s25, 1
      %p169 = scmp.ne.s32.totalorder %s164, %s166
      %p170 = scmp.eq.s32.totalorder %s25, 0
      %p171 = por %p169, %p170
      %p172 = scmp.ne.s32.totalorder %s164, %s166
      %p173 = scmp.eq.s32.totalorder %s30, 1
      %p174 = por %p172, %p173
      %p175 = scmp.ne.s32.totalorder %s166, %s167
      %p176 = scmp.eq.s32.totalorder %s30, 0
      %p177 = por %p175, %p176
      %p178 = scmp.ne.s32.totalorder %s166, %s167
      %p179 = scmp.eq.s32.totalorder %s31, 1
      %p180 = por %p178, %p179
      %p182 = scmp.ne.s32.totalorder %s167, %s181
      %p183 = scmp.eq.s32.totalorder %s31, 0
      %p184 = por %p182, %p183
      %s186 = sadd.s32 %s185, 1
      %p189 = scmp.eq.s32.totalorder %s25, 1
      %p190 = scmp.ne.s32.totalorder %s185, %s187
      %p191 = scmp.eq.s32.totalorder %s25, 0
      %p192 = por %p190, %p191
      %p193 = scmp.ne.s32.totalorder %s185, %s187
      %p194 = scmp.eq.s32.totalorder %s30, 1
      %p195 = por %p193, %p194
      %p196 = scmp.ne.s32.totalorder %s187, %s188
      %p197 = scmp.eq.s32.totalorder %s30, 0
      %p198 = por %p196, %p197
      %p199 = scmp.ne.s32.totalorder %s187, %s188
      %p200 = scmp.eq.s32.totalorder %s31, 1
      %p201 = por %p199, %p200
      %p203 = scmp.ne.s32.totalorder %s188, %s202
      %p204 = scmp.eq.s32.totalorder %s31, 0
      %p205 = por %p203, %p204
      %s207 = sadd.s32 %s206, 1
      %p210 = scmp.eq.s32.totalorder %s25, 1
      %p211 = scmp.ne.s32.totalorder %s206, %s208
      %p212 = scmp.eq.s32.totalorder %s25, 0
      %p213 = por %p211, %p212
      %p214 = scmp.ne.s32.totalorder %s206, %s208
      %p215 = scmp.eq.s32.totalorder %s30, 1
      %p216 = por %p214, %p215
      %p217 = scmp.ne.s32.totalorder %s208, %s209
      %p218 = scmp.eq.s32.totalorder %s30, 0
      %p219 = por %p217, %p218
      %p220 = scmp.ne.s32.totalorder %s208, %s209
      %p221 = scmp.eq.s32.totalorder %s31, 1
      %p222 = por %p220, %p221
      %p224 = scmp.ne.s32.totalorder %s209, %s223
      %p225 = scmp.eq.s32.totalorder %s31, 0
      %p226 = por %p224, %p225
      %s227 = ssub.s32 %s25, %s32
      %p228 = scmp.eq.s32.totalorder %s227, 0
      %s230 = sadd.s32 %s229, 1
      %s231 = scalar_select %p228, %s229, %s230
      %p234 = pneg %p228
      %p235 = scmp.eq.s32.totalorder %s25, 1
      %p236 = por %p234, %p235
      %p237 = scmp.ne.s32.totalorder %s229, %s232
      %p238 = scmp.eq.s32.totalorder %s25, 0
      %p239 = por %p237, %p238
      %p240 = scmp.ne.s32.totalorder %s229, %s232
      %p241 = scmp.eq.s32.totalorder %s30, 1
      %p242 = por %p240, %p241
      %p243 = scmp.ne.s32.totalorder %s232, %s233
      %p244 = scmp.eq.s32.totalorder %s30, 0
      %p245 = por %p243, %p244
      %p246 = scmp.ne.s32.totalorder %s232, %s233
      %p247 = scmp.eq.s32.totalorder %s31, 1
      %p248 = por %p246, %p247
      %p250 = scmp.ne.s32.totalorder %s233, %s249
      %p251 = scmp.eq.s32.totalorder %s31, 0
      %p252 = por %p250, %p251
      %p253 = scmp.le.s32.totalorder 1, %s25
      %p254 = scmp.lt.s32.totalorder %s25, 3
      %p255 = pnand %p253, %p254
      %p256 = pneg %p255
      // Predicated region
      $region9: #{tpu_custom_call.1} parent=5 // pred_check
        _
      $region10: #{tpu_custom_call.1} parent=5 // pred_check_branch
        %258 = sbr.rel (%p255) target = $region12
      $region11: #{tpu_custom_call.1} parent=5 // pred_region
        %s259 = ssub.s32 %s25, 1
        // Predicated region
        $region13: #{tpu_custom_call.1} parent=11 // pred_check
          %p260 = pneg %p72
        $region14: #{tpu_custom_call.1} parent=11 // pred_check_branch
          %262 = sbr.rel (%p260) target = $region16
        $region15: #{tpu_custom_call.1} parent=11 // pred_region
          %s264 = ssub.s32 98304, 98304
          %265 = vsyncadd [#allocation7], %s264
          %s266 = sshll.u32 [#allocation6], 4
          %s267 = int_to_ptr.vmem [resolvable:$true] %s266
          %272 = dma.hbm_to_vmem [thread:$0]  %s1, 98304, %s267, [#allocation7], 512, 512, 32
        $region16: #{tpu_custom_call.1} parent=11 // pred_fallthru
          _
        // Predicated region
        $region17: #{tpu_custom_call.1} parent=11 // pred_check
          %p273 = pneg %p93
        $region18: #{tpu_custom_call.1} parent=11 // pred_check_branch
          %275 = sbr.rel (%p273) target = $region20
        $region19: #{tpu_custom_call.1} parent=11 // pred_region
          %s277 = ssub.s32 64, 64
          %278 = vsyncadd [#allocation7], %s277
          %s280 = sshll.u32 [#allocation8], 4
          %s281 = int_to_ptr.vmem [resolvable:$true] %s280
          %283 = dma.hbm_to_vmem [thread:$0]  %s2, 64, %s281, [#allocation7]
        $region20: #{tpu_custom_call.1} parent=11 // pred_fallthru
          _
        // Predicated region
        $region21: #{tpu_custom_call.1} parent=11 // pred_check
          %p284 = pneg %p114
        $region22: #{tpu_custom_call.1} parent=11 // pred_check_branch
          %286 = sbr.rel (%p284) target = $region24
        $region23: #{tpu_custom_call.1} parent=11 // pred_region
          %s288 = ssub.s32 98304, 98304
          %289 = vsyncadd [#allocation10], %s288
          %s290 = sshll.u32 [#allocation9], 4
          %s291 = int_to_ptr.vmem [resolvable:$true] %s290
          %296 = dma.hbm_to_vmem [thread:$0]  %s3, 98304, %s291, [#allocation10], 512, 512, 32
        $region24: #{tpu_custom_call.1} parent=11 // pred_fallthru
          _
        // Predicated region
        $region25: #{tpu_custom_call.1} parent=11 // pred_check
          %p297 = pneg %p135
        $region26: #{tpu_custom_call.1} parent=11 // pred_check_branch
          %299 = sbr.rel (%p297) target = $region28
        $region27: #{tpu_custom_call.1} parent=11 // pred_region
          %s301 = ssub.s32 64, 64
          %302 = vsyncadd [#allocation10], %s301
          %s304 = sshll.u32 [#allocation11], 4
          %s305 = int_to_ptr.vmem [resolvable:$true] %s304
          %307 = dma.hbm_to_vmem [thread:$0]  %s4, 64, %s305, [#allocation10]
        $region28: #{tpu_custom_call.1} parent=11 // pred_fallthru
          _
        // Predicated region
        $region29: #{tpu_custom_call.1} parent=11 // pred_check
          %p308 = pneg %p156
        $region30: #{tpu_custom_call.1} parent=11 // pred_check_branch
          %310 = sbr.rel (%p308) target = $region32
        $region31: #{tpu_custom_call.1} parent=11 // pred_region
          %s312 = ssub.s32 32, 32
          %313 = vsyncadd [#allocation13], %s312
          %s315 = sshll.u32 [#allocation12], 4
          %s316 = int_to_ptr.vmem [resolvable:$true] %s315
          %318 = dma.hbm_to_vmem [thread:$0]  %s5, 32, %s316, [#allocation13]
        $region32: #{tpu_custom_call.1} parent=11 // pred_fallthru
          _
        // Predicated region
        $region33: #{tpu_custom_call.1} parent=11 // pred_check
          %p319 = pneg %p177
        $region34: #{tpu_custom_call.1} parent=11 // pred_check_branch
          %321 = sbr.rel (%p319) target = $region36
        $region35: #{tpu_custom_call.1} parent=11 // pred_region
          %s323 = ssub.s32 16, 16
          %324 = vsyncadd [#allocation13], %s323
          %s326 = sshll.u32 [#allocation14], 4
          %s327 = int_to_ptr.vmem [resolvable:$true] %s326
          %329 = dma.hbm_to_vmem [thread:$0]  %s6, 16, %s327, [#allocation13]
        $region36: #{tpu_custom_call.1} parent=11 // pred_fallthru
          _
        // Predicated region
        $region37: #{tpu_custom_call.1} parent=11 // pred_check
          %p330 = pneg %p198
        $region38: #{tpu_custom_call.1} parent=11 // pred_check_branch
          %332 = sbr.rel (%p330) target = $region40
        $region39: #{tpu_custom_call.1} parent=11 // pred_region
          %s334 = ssub.s32 32, 32
          %335 = vsyncadd [#allocation16], %s334
          %s337 = sshll.u32 [#allocation15], 4
          %s338 = int_to_ptr.vmem [resolvable:$true] %s337
          %340 = dma.hbm_to_vmem [thread:$0]  %s7, 32, %s338, [#allocation16]
        $region40: #{tpu_custom_call.1} parent=11 // pred_fallthru
          _
        // Predicated region
        $region41: #{tpu_custom_call.1} parent=11 // pred_check
          %p341 = pneg %p219
        $region42: #{tpu_custom_call.1} parent=11 // pred_check_branch
          %343 = sbr.rel (%p341) target = $region44
        $region43: #{tpu_custom_call.1} parent=11 // pred_region
          %s345 = ssub.s32 16, 16
          %346 = vsyncadd [#allocation16], %s345
          %s348 = sshll.u32 [#allocation17], 4
          %s349 = int_to_ptr.vmem [resolvable:$true] %s348
          %351 = dma.hbm_to_vmem [thread:$0]  %s8, 16, %s349, [#allocation16]
        $region44: #{tpu_custom_call.1} parent=11 // pred_fallthru
          _
      $region12: #{tpu_custom_call.1} parent=5 // pred_fallthru
        _
      %p352 = scmp.lt.s32.totalorder %s25, 2
      // Predicated region
      $region45: #{tpu_custom_call.1} parent=5 // pred_check
        %p353 = pneg %p352
      $region46: #{tpu_custom_call.1} parent=5 // pred_check_branch
        %355 = sbr.rel (%p353) target = $region48
      $region47: #{tpu_custom_call.1} parent=5 // pred_region
        // Predicated region
        $region49: #{tpu_custom_call.1} parent=47 // pred_check
          %p356 = pneg %p45
        $region50: #{tpu_custom_call.1} parent=47 // pred_check_branch
          %358 = sbr.rel (%p356) target = $region52
        $region51: #{tpu_custom_call.1} parent=47 // pred_region
          %s359 = sand.u32 %s35, 1
          %s360 = scalar_lea.sflag [#allocation4], %s359
          %s361 = sand.u32 %s35, 1
          %s362 = smul.addr %s361, 64
          %s363 = scalar_lea.vmem [#allocation3], %s362
          %s364 = smul.u32 2, %s25
          %s366 = ssub.s32 1024, 1024
          %367 = vsyncadd %s360, %s366
          %s368 = smul.addr %s364, 4
          %s369 = smul.addr %s368, 128
          %s370 = scalar_lea.hbm %s0, %s369
          %s371 = sshll.u32 %s363, 4
          %s372 = int_to_ptr.vmem [resolvable:$true] %s371
          %377 = dma.hbm_to_vmem [thread:$0]  %s370, 1024, %s372, %s360, 512, 512, 32
        $region52: #{tpu_custom_call.1} parent=47 // pred_fallthru
          _
      $region48: #{tpu_custom_call.1} parent=5 // pred_fallthru
        _
      %p378 = scmp.le.s32.totalorder 1, %s25
      %p379 = scmp.lt.s32.totalorder %s25, 3
      %p380 = pnand %p378, %p379
      %p381 = pneg %p380
      // Predicated region
      $region53: #{tpu_custom_call.1} parent=5 // pred_check
        _
      $region54: #{tpu_custom_call.1} parent=5 // pred_check_branch
        %383 = sbr.rel (%p380) target = $region56
      $region55: #{tpu_custom_call.1} parent=5 // pred_region
        %s384 = ssub.s32 %s25, 1
        %s385 = sand.u32 %s38, 1
        %s386 = scalar_lea.sflag [#allocation4], %s385
        %s387 = sand.u32 %s38, 1
        %s388 = smul.addr %s387, 64
        %s389 = scalar_lea.vmem [#allocation3], %s388
        // Predicated region
        $region57: #{tpu_custom_call.1} parent=55 // pred_check
          %p390 = pneg %p51
        $region58: #{tpu_custom_call.1} parent=55 // pred_check_branch
          %392 = sbr.rel (%p390) target = $region60
        $region59: #{tpu_custom_call.1} parent=55 // pred_region
          %393 = dma.done %s386, 1024
        $region60: #{tpu_custom_call.1} parent=55 // pred_fallthru
          _
        // Predicated region
        $region61: #{tpu_custom_call.1} parent=55 // pred_check
          %p394 = pneg %p72
        $region62: #{tpu_custom_call.1} parent=55 // pred_check_branch
          %396 = sbr.rel (%p394) target = $region64
        $region63: #{tpu_custom_call.1} parent=55 // pred_region
          %397 = dma.done [#allocation7], 98304
        $region64: #{tpu_custom_call.1} parent=55 // pred_fallthru
          _
        // Predicated region
        $region65: #{tpu_custom_call.1} parent=55 // pred_check
          %p398 = pneg %p93
        $region66: #{tpu_custom_call.1} parent=55 // pred_check_branch
          %400 = sbr.rel (%p398) target = $region68
        $region67: #{tpu_custom_call.1} parent=55 // pred_region
          %401 = dma.done [#allocation7], 64
        $region68: #{tpu_custom_call.1} parent=55 // pred_fallthru
          _
        // Predicated region
        $region69: #{tpu_custom_call.1} parent=55 // pred_check
          %p402 = pneg %p114
        $region70: #{tpu_custom_call.1} parent=55 // pred_check_branch
          %404 = sbr.rel (%p402) target = $region72
        $region71: #{tpu_custom_call.1} parent=55 // pred_region
          %405 = dma.done [#allocation10], 98304
        $region72: #{tpu_custom_call.1} parent=55 // pred_fallthru
          _
        // Predicated region
        $region73: #{tpu_custom_call.1} parent=55 // pred_check
          %p406 = pneg %p135
        $region74: #{tpu_custom_call.1} parent=55 // pred_check_branch
          %408 = sbr.rel (%p406) target = $region76
        $region75: #{tpu_custom_call.1} parent=55 // pred_region
          %409 = dma.done [#allocation10], 64
        $region76: #{tpu_custom_call.1} parent=55 // pred_fallthru
          _
        // Predicated region
        $region77: #{tpu_custom_call.1} parent=55 // pred_check
          %p410 = pneg %p156
        $region78: #{tpu_custom_call.1} parent=55 // pred_check_branch
          %412 = sbr.rel (%p410) target = $region80
        $region79: #{tpu_custom_call.1} parent=55 // pred_region
          %413 = dma.done [#allocation13], 32
        $region80: #{tpu_custom_call.1} parent=55 // pred_fallthru
          _
        // Predicated region
        $region81: #{tpu_custom_call.1} parent=55 // pred_check
          %p414 = pneg %p177
        $region82: #{tpu_custom_call.1} parent=55 // pred_check_branch
          %416 = sbr.rel (%p414) target = $region84
        $region83: #{tpu_custom_call.1} parent=55 // pred_region
          %417 = dma.done [#allocation13], 16
        $region84: #{tpu_custom_call.1} parent=55 // pred_fallthru
          _
        // Predicated region
        $region85: #{tpu_custom_call.1} parent=55 // pred_check
          %p418 = pneg %p198
        $region86: #{tpu_custom_call.1} parent=55 // pred_check_branch
          %420 = sbr.rel (%p418) target = $region88
        $region87: #{tpu_custom_call.1} parent=55 // pred_region
          %421 = dma.done [#allocation16], 32
        $region88: #{tpu_custom_call.1} parent=55 // pred_fallthru
          _
        // Predicated region
        $region89: #{tpu_custom_call.1} parent=55 // pred_check
          %p422 = pneg %p219
        $region90: #{tpu_custom_call.1} parent=55 // pred_check_branch
          %424 = sbr.rel (%p422) target = $region92
        $region91: #{tpu_custom_call.1} parent=55 // pred_region
          %425 = dma.done [#allocation16], 16
        $region92: #{tpu_custom_call.1} parent=55 // pred_fallthru
          _
        %s426 = sand.u32 %s38, 1
        %s427 = scalar_lea.sflag [#allocation4], %s426
        %s428 = sand.u32 %s38, 1
        %s429 = smul.addr %s428, 64
        %s430 = scalar_lea.vmem [#allocation3], %s429
        %p431 = pneg %p51
        %p432 = pneg %p48
        %p433 = pneg %p72
        %p434 = pneg %p69
        %p435 = pneg %p93
        %p436 = pneg %p90
        %p437 = pneg %p114
        %p438 = pneg %p111
        %p439 = pneg %p135
        %p440 = pneg %p132
        %p441 = pneg %p156
        %p442 = pneg %p153
        %p443 = pneg %p177
        %p444 = pneg %p174
        %p445 = pneg %p198
        %p446 = pneg %p195
        %p447 = pneg %p219
        %p448 = pneg %p216
        %p449 = pneg %p245
        %p450 = pneg %p242
        %s451 = sand.u32 %s232, 1
        %s452 = scalar_lea.sflag [#allocation5], %s451
        %s453 = sand.u32 %s232, 1
        %s454 = smul.addr %s453, 64
        %s455 = scalar_lea.vmem [#allocation18], %s454
        %s456 = smul.u32 2, %s30
        %s457 = smul.u32 2, %s30
        %v458 = vlaneseq
        %v459 = vshrl.u32 %v458, 7
        %v460 = vadd.s32 %v459, 8
        %vm461 = vcmp.lt.s32.totalorder %v459, 0
        %v462 = vsub.s32 0, %v459
        %v463 = vsel %vm461, %v462, %v459
        %v464 = vshrl.u32 %v463, 4
        %v465 = vand.u32 %v463, 15
        %v466 = vsub.s32 0, %v465
        %v467 = vsel %vm461, %v466, %v465
        %vm468 = vcmp.lt.s32.totalorder %v460, 0
        %v469 = vsub.s32 0, %v460
        %v470 = vsel %vm468, %v469, %v460
        %v471 = vshrl.u32 %v470, 4
        %v472 = vand.u32 %v470, 15
        %v473 = vsub.s32 0, %v472
        %v474 = vsel %vm468, %v473, %v472
        %vm475 = vcmp.ne.s32.totalorder %v467, 0
        %vm476 = vcmp.ne.s32.totalorder %v474, 0
        %vm477 = vcmp.lt.s32.totalorder %v467, 0
        %vm478 = vcmp.lt.s32.totalorder %v474, 0
        %vm479 = vmand %vm477, %vm475
        %vm480 = vmand %vm478, %vm476
        %v481 = vadd.s32 %v467, 16
        %v482 = vadd.s32 %v474, 16
        %v483 = vsel %vm479, %v481, %v467
        %v484 = vsel %vm480, %v482, %v474
        %v485 = vld [vmem:[%s389] sm:$0xff]
        %v486 = vld [vmem:[%s389 + $0x8] sm:$0xff]
        %v487 = vld [vmem:[%s389 + $0x10] sm:$0xff]
        %v488 = vld [vmem:[%s389 + $0x18] sm:$0xff]
        %v489 = vld [vmem:[%s389 + $0x20] sm:$0xff]
        %v490 = vld [vmem:[%s389 + $0x28] sm:$0xff]
        %v491 = vld [vmem:[%s389 + $0x30] sm:$0xff]
        %v492 = vld [vmem:[%s389 + $0x38] sm:$0xff]
        %vm501 = vcmask 1040384
        %v502 = vrot.slane %v485, 7
        %v503 = vrot.slane %v486, 7
        %v504 = vrot.slane %v487, 7
        %v505 = vrot.slane %v488, 7
        %v506 = vrot.slane %v489, 7
        %v507 = vsel %vm501, %v502, %v506
        %v508 = vrot.slane %v490, 7
        %v509 = vsel %vm501, %v503, %v508
        %v510 = vrot.slane %v491, 7
        %v511 = vsel %vm501, %v504, %v510
        %v512 = vrot.slane %v492, 7
        %v513 = vsel %vm501, %v505, %v512
        %v522 = vsel %vm501, 0.0, %v502
        %v523 = vsel %vm501, 0.0, %v503
        %v524 = vsel %vm501, 0.0, %v504
        %v525 = vsel %vm501, 0.0, %v505
        %vm526 = vcmp.eq.s32.totalorder %v483, 0
        %vm527 = vcmp.eq.s32.totalorder %v484, 0
        %v528 = vsel %vm526, 1, 0
        %v529 = vsel %vm527, 1, 0
        %vm530 = vcmp.eq.s32.totalorder %v528, 1
        %vm531 = vcmp.eq.s32.totalorder %v529, 1
        %v532 = vsel %vm530, 0.0, %v522
        %v533 = vsel %vm530, 0.0, %v523
        %v534 = vsel %vm530, 0.0, %v524
        %v535 = vsel %vm530, 0.0, %v525
        %v536 = vsel %vm531, 0.0, %v507
        %v537 = vsel %vm531, 0.0, %v509
        %v538 = vsel %vm531, 0.0, %v511
        %v539 = vsel %vm531, 0.0, %v513
        %vm540 = vcmask 1046528
        %v541 = vrot.slane %v485, 1
        %v542 = vrot.slane %v489, 1
        %v543 = vsel %vm540, %v541, %v542
        %v544 = vrot.slane %v486, 1
        %v545 = vrot.slane %v490, 1
        %v546 = vsel %vm540, %v544, %v545
        %v547 = vrot.slane %v487, 1
        %v548 = vrot.slane %v491, 1
        %v549 = vsel %vm540, %v547, %v548
        %v550 = vrot.slane %v488, 1
        %v551 = vrot.slane %v492, 1
        %v552 = vsel %vm540, %v550, %v551
        %v561 = vsel %vm540, %v542, 0.0
        %v562 = vsel %vm540, %v545, 0.0
        %v563 = vsel %vm540, %v548, 0.0
        %v564 = vsel %vm540, %v551, 0.0
        %vm565 = vcmp.eq.s32.totalorder %v483, 15
        %vm566 = vcmp.eq.s32.totalorder %v484, 15
        %v567 = vsel %vm565, 1, 0
        %v568 = vsel %vm566, 1, 0
        %vm569 = vcmp.eq.s32.totalorder %v567, 1
        %vm570 = vcmp.eq.s32.totalorder %v568, 1
        %v571 = vsel %vm569, 0.0, %v543
        %v572 = vsel %vm569, 0.0, %v546
        %v573 = vsel %vm569, 0.0, %v549
        %v574 = vsel %vm569, 0.0, %v552
        %v575 = vsel %vm570, 0.0, %v561
        %v576 = vsel %vm570, 0.0, %v562
        %v577 = vsel %vm570, 0.0, %v563
        %v578 = vsel %vm570, 0.0, %v564
        %579 = vst [vmem:[#allocation2] sm:$0xff] %v532
        %580 = vst [vmem:[#allocation2 + $0x8] sm:$0xff] %v533
        %581 = vst [vmem:[#allocation2 + $0x10] sm:$0xff] %v534
        %582 = vst [vmem:[#allocation2 + $0x18] sm:$0xff] %v535
        %583 = vst [vmem:[#allocation2 + $0x60] sm:$0xff] %v536
        %584 = vst [vmem:[#allocation2 + $0x68] sm:$0xff] %v537
        %585 = vst [vmem:[#allocation2 + $0x70] sm:$0xff] %v538
        %586 = vst [vmem:[#allocation2 + $0x78] sm:$0xff] %v539
        %587 = vst [vmem:[#allocation2 + $0x20] sm:$0xff] %v485
        %588 = vst [vmem:[#allocation2 + $0x28] sm:$0xff] %v486
        %589 = vst [vmem:[#allocation2 + $0x30] sm:$0xff] %v487
        %590 = vst [vmem:[#allocation2 + $0x38] sm:$0xff] %v488
        %591 = vst [vmem:[#allocation2 + $0x80] sm:$0xff] %v489
        %592 = vst [vmem:[#allocation2 + $0x88] sm:$0xff] %v490
        %593 = vst [vmem:[#allocation2 + $0x90] sm:$0xff] %v491
        %594 = vst [vmem:[#allocation2 + $0x98] sm:$0xff] %v492
        %595 = vst [vmem:[#allocation2 + $0x40] sm:$0xff] %v571
        %596 = vst [vmem:[#allocation2 + $0x48] sm:$0xff] %v572
        %597 = vst [vmem:[#allocation2 + $0x50] sm:$0xff] %v573
        %598 = vst [vmem:[#allocation2 + $0x58] sm:$0xff] %v574
        %599 = vst [vmem:[#allocation2 + $0xa0] sm:$0xff] %v575
        %600 = vst [vmem:[#allocation2 + $0xa8] sm:$0xff] %v576
        %601 = vst [vmem:[#allocation2 + $0xb0] sm:$0xff] %v577
        %602 = vst [vmem:[#allocation2 + $0xb8] sm:$0xff] %v578
        %v603 = vld [vmem:[#allocation2] sm:$0xff]
        %v604 = vld [vmem:[#allocation2 + $0x8] sm:$0xff]
        %v605 = vld [vmem:[#allocation2 + $0x10] sm:$0xff]
        %v606 = vld [vmem:[#allocation2 + $0x18] sm:$0xff]
        %v607 = vld [vmem:[#allocation2 + $0x20] sm:$0xff]
        %v608 = vld [vmem:[#allocation2 + $0x28] sm:$0xff]
        %v609 = vld [vmem:[#allocation2 + $0x30] sm:$0xff]
        %v610 = vld [vmem:[#allocation2 + $0x38] sm:$0xff]
        %v611 = vld [vmem:[#allocation2 + $0x40] sm:$0xff]
        %v612 = vld [vmem:[#allocation2 + $0x48] sm:$0xff]
        %v613 = vld [vmem:[#allocation2 + $0x50] sm:$0xff]
        %v614 = vld [vmem:[#allocation2 + $0x58] sm:$0xff]
        %v615 = vld [vmem:[#allocation2 + $0x60] sm:$0xff]
        %v616 = vld [vmem:[#allocation2 + $0x68] sm:$0xff]
        %v617 = vld [vmem:[#allocation2 + $0x70] sm:$0xff]
        %v618 = vld [vmem:[#allocation2 + $0x78] sm:$0xff]
        %v619 = vld [vmem:[#allocation2 + $0x80] sm:$0xff]
        %v620 = vld [vmem:[#allocation2 + $0x88] sm:$0xff]
        %v621 = vld [vmem:[#allocation2 + $0x90] sm:$0xff]
        %v622 = vld [vmem:[#allocation2 + $0x98] sm:$0xff]
        %v623 = vld [vmem:[#allocation2 + $0xa0] sm:$0xff]
        %v624 = vld [vmem:[#allocation2 + $0xa8] sm:$0xff]
        %v625 = vld [vmem:[#allocation2 + $0xb0] sm:$0xff]
        %v626 = vld [vmem:[#allocation2 + $0xb8] sm:$0xff]
        %v627 = vld [vmem:[#allocation6] sm:$0xff]
        %v628 = vld [vmem:[#allocation6 + $0x8] sm:$0xff]
        %v629 = vld [vmem:[#allocation6 + $0x10] sm:$0xff]
        %v630 = vld [vmem:[#allocation6 + $0x18] sm:$0xff]
        %v631 = vld [vmem:[#allocation6 + $0x20] sm:$0xff]
        %v632 = vld [vmem:[#allocation6 + $0x28] sm:$0xff]
        %v633 = vld [vmem:[#allocation6 + $0x30] sm:$0xff]
        %v634 = vld [vmem:[#allocation6 + $0x38] sm:$0xff]
        %v635 = vld [vmem:[#allocation6 + $0x40] sm:$0xff]
        %v636 = vld [vmem:[#allocation6 + $0x48] sm:$0xff]
        %v637 = vld [vmem:[#allocation6 + $0x50] sm:$0xff]
        %v638 = vld [vmem:[#allocation6 + $0x58] sm:$0xff]
        %v639 = vld [vmem:[#allocation6 + $0x60] sm:$0xff]
        %v640 = vld [vmem:[#allocation6 + $0x68] sm:$0xff]
        %v641 = vld [vmem:[#allocation6 + $0x70] sm:$0xff]
        %v642 = vld [vmem:[#allocation6 + $0x78] sm:$0xff]
        %v643 = vld [vmem:[#allocation6 + $0x80] sm:$0xff]
        %v644 = vld [vmem:[#allocation6 + $0x88] sm:$0xff]
        %v645 = vld [vmem:[#allocation6 + $0x90] sm:$0xff]
        %v646 = vld [vmem:[#allocation6 + $0x98] sm:$0xff]
        %v647 = vld [vmem:[#allocation6 + $0xa0] sm:$0xff]
        %v648 = vld [vmem:[#allocation6 + $0xa8] sm:$0xff]
        %v649 = vld [vmem:[#allocation6 + $0xb0] sm:$0xff]
        %v650 = vld [vmem:[#allocation6 + $0xb8] sm:$0xff]
        %v651 = vld [vmem:[#allocation6 + $0xc0] sm:$0xff]
        %v652 = vld [vmem:[#allocation6 + $0xc8] sm:$0xff]
        %v653 = vld [vmem:[#allocation6 + $0xd0] sm:$0xff]
        %v654 = vld [vmem:[#allocation6 + $0xd8] sm:$0xff]
        %v655 = vld [vmem:[#allocation6 + $0xe0] sm:$0xff]
        %v656 = vld [vmem:[#allocation6 + $0xe8] sm:$0xff]
        %v657 = vld [vmem:[#allocation6 + $0xf0] sm:$0xff]
        %v658 = vld [vmem:[#allocation6 + $0xf8] sm:$0xff]
        %v659 = vld [vmem:[#allocation6 + $0x100] sm:$0xff]
        %v660 = vld [vmem:[#allocation6 + $0x108] sm:$0xff]
        %v661 = vld [vmem:[#allocation6 + $0x110] sm:$0xff]
        %v662 = vld [vmem:[#allocation6 + $0x118] sm:$0xff]
        %v663 = vld [vmem:[#allocation6 + $0x120] sm:$0xff]
        %v664 = vld [vmem:[#allocation6 + $0x128] sm:$0xff]
        %v665 = vld [vmem:[#allocation6 + $0x130] sm:$0xff]
        %v666 = vld [vmem:[#allocation6 + $0x138] sm:$0xff]
        %v667 = vld [vmem:[#allocation6 + $0x140] sm:$0xff]
        %v668 = vld [vmem:[#allocation6 + $0x148] sm:$0xff]
        %v669 = vld [vmem:[#allocation6 + $0x150] sm:$0xff]
        %v670 = vld [vmem:[#allocation6 + $0x158] sm:$0xff]
        %v671 = vld [vmem:[#allocation6 + $0x160] sm:$0xff]
        %v672 = vld [vmem:[#allocation6 + $0x168] sm:$0xff]
        %v673 = vld [vmem:[#allocation6 + $0x170] sm:$0xff]
        %v674 = vld [vmem:[#allocation6 + $0x178] sm:$0xff]
        %v675 = vld [vmem:[#allocation6 + $0x180] sm:$0xff]
        %v676 = vld [vmem:[#allocation6 + $0x188] sm:$0xff]
        %v677 = vld [vmem:[#allocation6 + $0x190] sm:$0xff]
        %v678 = vld [vmem:[#allocation6 + $0x198] sm:$0xff]
        %v679 = vld [vmem:[#allocation6 + $0x1a0] sm:$0xff]
        %v680 = vld [vmem:[#allocation6 + $0x1a8] sm:$0xff]
        %v681 = vld [vmem:[#allocation6 + $0x1b0] sm:$0xff]
        %v682 = vld [vmem:[#allocation6 + $0x1b8] sm:$0xff]
        %v683 = vld [vmem:[#allocation6 + $0x1c0] sm:$0xff]
        %v684 = vld [vmem:[#allocation6 + $0x1c8] sm:$0xff]
        %v685 = vld [vmem:[#allocation6 + $0x1d0] sm:$0xff]
        %v686 = vld [vmem:[#allocation6 + $0x1d8] sm:$0xff]
        %v687 = vld [vmem:[#allocation6 + $0x1e0] sm:$0xff]
        %v688 = vld [vmem:[#allocation6 + $0x1e8] sm:$0xff]
        %v689 = vld [vmem:[#allocation6 + $0x1f0] sm:$0xff]
        %v690 = vld [vmem:[#allocation6 + $0x1f8] sm:$0xff]
        %v691 = vld [vmem:[#allocation6 + $0x200] sm:$0xff]
        %v692 = vld [vmem:[#allocation6 + $0x208] sm:$0xff]
        %v693 = vld [vmem:[#allocation6 + $0x210] sm:$0xff]
        %v694 = vld [vmem:[#allocation6 + $0x218] sm:$0xff]
        %v695 = vld [vmem:[#allocation6 + $0x220] sm:$0xff]
        %v696 = vld [vmem:[#allocation6 + $0x228] sm:$0xff]
        %v697 = vld [vmem:[#allocation6 + $0x230] sm:$0xff]
        %v698 = vld [vmem:[#allocation6 + $0x238] sm:$0xff]
        %v699 = vld [vmem:[#allocation6 + $0x240] sm:$0xff]
        %v700 = vld [vmem:[#allocation6 + $0x248] sm:$0xff]
        %v701 = vld [vmem:[#allocation6 + $0x250] sm:$0xff]
        %v702 = vld [vmem:[#allocation6 + $0x258] sm:$0xff]
        %v703 = vld [vmem:[#allocation6 + $0x260] sm:$0xff]
        %v704 = vld [vmem:[#allocation6 + $0x268] sm:$0xff]
        %v705 = vld [vmem:[#allocation6 + $0x270] sm:$0xff]
        %v706 = vld [vmem:[#allocation6 + $0x278] sm:$0xff]
        %v707 = vld [vmem:[#allocation6 + $0x280] sm:$0xff]
        %v708 = vld [vmem:[#allocation6 + $0x288] sm:$0xff]
        %v709 = vld [vmem:[#allocation6 + $0x290] sm:$0xff]
        %v710 = vld [vmem:[#allocation6 + $0x298] sm:$0xff]
        %v711 = vld [vmem:[#allocation6 + $0x2a0] sm:$0xff]
        %v712 = vld [vmem:[#allocation6 + $0x2a8] sm:$0xff]
        %v713 = vld [vmem:[#allocation6 + $0x2b0] sm:$0xff]
        %v714 = vld [vmem:[#allocation6 + $0x2b8] sm:$0xff]
        %v715 = vld [vmem:[#allocation6 + $0x2c0] sm:$0xff]
        %v716 = vld [vmem:[#allocation6 + $0x2c8] sm:$0xff]
        %v717 = vld [vmem:[#allocation6 + $0x2d0] sm:$0xff]
        %v718 = vld [vmem:[#allocation6 + $0x2d8] sm:$0xff]
        %v719 = vld [vmem:[#allocation6 + $0x2e0] sm:$0xff]
        %v720 = vld [vmem:[#allocation6 + $0x2e8] sm:$0xff]
        %v721 = vld [vmem:[#allocation6 + $0x2f0] sm:$0xff]
        %v722 = vld [vmem:[#allocation6 + $0x2f8] sm:$0xff]
        %v723 = vld [vmem:[#allocation6 + $0x300] sm:$0xff]
        %v724 = vld [vmem:[#allocation6 + $0x308] sm:$0xff]
        %v725 = vld [vmem:[#allocation6 + $0x310] sm:$0xff]
        %v726 = vld [vmem:[#allocation6 + $0x318] sm:$0xff]
        %v727 = vld [vmem:[#allocation6 + $0x320] sm:$0xff]
        %v728 = vld [vmem:[#allocation6 + $0x328] sm:$0xff]
        %v729 = vld [vmem:[#allocation6 + $0x330] sm:$0xff]
        %v730 = vld [vmem:[#allocation6 + $0x338] sm:$0xff]
        %v731 = vld [vmem:[#allocation6 + $0x340] sm:$0xff]
        %v732 = vld [vmem:[#allocation6 + $0x348] sm:$0xff]
        %v733 = vld [vmem:[#allocation6 + $0x350] sm:$0xff]
        %v734 = vld [vmem:[#allocation6 + $0x358] sm:$0xff]
        %v735 = vld [vmem:[#allocation6 + $0x360] sm:$0xff]
        %v736 = vld [vmem:[#allocation6 + $0x368] sm:$0xff]
        %v737 = vld [vmem:[#allocation6 + $0x370] sm:$0xff]
        %v738 = vld [vmem:[#allocation6 + $0x378] sm:$0xff]
        %v739 = vld [vmem:[#allocation6 + $0x380] sm:$0xff]
        %v740 = vld [vmem:[#allocation6 + $0x388] sm:$0xff]
        %v741 = vld [vmem:[#allocation6 + $0x390] sm:$0xff]
        %v742 = vld [vmem:[#allocation6 + $0x398] sm:$0xff]
        %v743 = vld [vmem:[#allocation6 + $0x3a0] sm:$0xff]
        %v744 = vld [vmem:[#allocation6 + $0x3a8] sm:$0xff]
        %v745 = vld [vmem:[#allocation6 + $0x3b0] sm:$0xff]
        %v746 = vld [vmem:[#allocation6 + $0x3b8] sm:$0xff]
        %v747 = vld [vmem:[#allocation6 + $0x3c0] sm:$0xff]
        %v748 = vld [vmem:[#allocation6 + $0x3c8] sm:$0xff]
        %v749 = vld [vmem:[#allocation6 + $0x3d0] sm:$0xff]
        %v750 = vld [vmem:[#allocation6 + $0x3d8] sm:$0xff]
        %v751 = vld [vmem:[#allocation6 + $0x3e0] sm:$0xff]
        %v752 = vld [vmem:[#allocation6 + $0x3e8] sm:$0xff]
        %v753 = vld [vmem:[#allocation6 + $0x3f0] sm:$0xff]
        %v754 = vld [vmem:[#allocation6 + $0x3f8] sm:$0xff]
        %v755 = vld [vmem:[#allocation6 + $0x400] sm:$0xff]
        %v756 = vld [vmem:[#allocation6 + $0x408] sm:$0xff]
        %v757 = vld [vmem:[#allocation6 + $0x410] sm:$0xff]
        %v758 = vld [vmem:[#allocation6 + $0x418] sm:$0xff]
        %v759 = vld [vmem:[#allocation6 + $0x420] sm:$0xff]
        %v760 = vld [vmem:[#allocation6 + $0x428] sm:$0xff]
        %v761 = vld [vmem:[#allocation6 + $0x430] sm:$0xff]
        %v762 = vld [vmem:[#allocation6 + $0x438] sm:$0xff]
        %v763 = vld [vmem:[#allocation6 + $0x440] sm:$0xff]
        %v764 = vld [vmem:[#allocation6 + $0x448] sm:$0xff]
        %v765 = vld [vmem:[#allocation6 + $0x450] sm:$0xff]
        %v766 = vld [vmem:[#allocation6 + $0x458] sm:$0xff]
        %v767 = vld [vmem:[#allocation6 + $0x460] sm:$0xff]
        %v768 = vld [vmem:[#allocation6 + $0x468] sm:$0xff]
        %v769 = vld [vmem:[#allocation6 + $0x470] sm:$0xff]
        %v770 = vld [vmem:[#allocation6 + $0x478] sm:$0xff]
        %v771 = vld [vmem:[#allocation6 + $0x480] sm:$0xff]
        %v772 = vld [vmem:[#allocation6 + $0x488] sm:$0xff]
        %v773 = vld [vmem:[#allocation6 + $0x490] sm:$0xff]
        %v774 = vld [vmem:[#allocation6 + $0x498] sm:$0xff]
        %v775 = vld [vmem:[#allocation6 + $0x4a0] sm:$0xff]
        %v776 = vld [vmem:[#allocation6 + $0x4a8] sm:$0xff]
        %v777 = vld [vmem:[#allocation6 + $0x4b0] sm:$0xff]
        %v778 = vld [vmem:[#allocation6 + $0x4b8] sm:$0xff]
        %v779 = vld [vmem:[#allocation6 + $0x4c0] sm:$0xff]
        %v780 = vld [vmem:[#allocation6 + $0x4c8] sm:$0xff]
        %v781 = vld [vmem:[#allocation6 + $0x4d0] sm:$0xff]
        %v782 = vld [vmem:[#allocation6 + $0x4d8] sm:$0xff]
        %v783 = vld [vmem:[#allocation6 + $0x4e0] sm:$0xff]
        %v784 = vld [vmem:[#allocation6 + $0x4e8] sm:$0xff]
        %v785 = vld [vmem:[#allocation6 + $0x4f0] sm:$0xff]
        %v786 = vld [vmem:[#allocation6 + $0x4f8] sm:$0xff]
        %v787 = vld [vmem:[#allocation6 + $0x500] sm:$0xff]
        %v788 = vld [vmem:[#allocation6 + $0x508] sm:$0xff]
        %v789 = vld [vmem:[#allocation6 + $0x510] sm:$0xff]
        %v790 = vld [vmem:[#allocation6 + $0x518] sm:$0xff]
        %v791 = vld [vmem:[#allocation6 + $0x520] sm:$0xff]
        %v792 = vld [vmem:[#allocation6 + $0x528] sm:$0xff]
        %v793 = vld [vmem:[#allocation6 + $0x530] sm:$0xff]
        %v794 = vld [vmem:[#allocation6 + $0x538] sm:$0xff]
        %v795 = vld [vmem:[#allocation6 + $0x540] sm:$0xff]
        %v796 = vld [vmem:[#allocation6 + $0x548] sm:$0xff]
        %v797 = vld [vmem:[#allocation6 + $0x550] sm:$0xff]
        %v798 = vld [vmem:[#allocation6 + $0x558] sm:$0xff]
        %v799 = vld [vmem:[#allocation6 + $0x560] sm:$0xff]
        %v800 = vld [vmem:[#allocation6 + $0x568] sm:$0xff]
        %v801 = vld [vmem:[#allocation6 + $0x570] sm:$0xff]
        %v802 = vld [vmem:[#allocation6 + $0x578] sm:$0xff]
        %v803 = vld [vmem:[#allocation6 + $0x580] sm:$0xff]
        %v804 = vld [vmem:[#allocation6 + $0x588] sm:$0xff]
        %v805 = vld [vmem:[#allocation6 + $0x590] sm:$0xff]
        %v806 = vld [vmem:[#allocation6 + $0x598] sm:$0xff]
        %v807 = vld [vmem:[#allocation6 + $0x5a0] sm:$0xff]
        %v808 = vld [vmem:[#allocation6 + $0x5a8] sm:$0xff]
        %v809 = vld [vmem:[#allocation6 + $0x5b0] sm:$0xff]
        %v810 = vld [vmem:[#allocation6 + $0x5b8] sm:$0xff]
        %v811 = vld [vmem:[#allocation6 + $0x5c0] sm:$0xff]
        %v812 = vld [vmem:[#allocation6 + $0x5c8] sm:$0xff]
        %v813 = vld [vmem:[#allocation6 + $0x5d0] sm:$0xff]
        %v814 = vld [vmem:[#allocation6 + $0x5d8] sm:$0xff]
        %v815 = vld [vmem:[#allocation6 + $0x5e0] sm:$0xff]
        %v816 = vld [vmem:[#allocation6 + $0x5e8] sm:$0xff]
        %v817 = vld [vmem:[#allocation6 + $0x5f0] sm:$0xff]
        %v818 = vld [vmem:[#allocation6 + $0x5f8] sm:$0xff]
        %v819 = vld [vmem:[#allocation6 + $0x600] sm:$0xff]
        %v820 = vld [vmem:[#allocation6 + $0x608] sm:$0xff]
        %v821 = vld [vmem:[#allocation6 + $0x610] sm:$0xff]
        %v822 = vld [vmem:[#allocation6 + $0x618] sm:$0xff]
        %v823 = vld [vmem:[#allocation6 + $0x620] sm:$0xff]
        %v824 = vld [vmem:[#allocation6 + $0x628] sm:$0xff]
        %v825 = vld [vmem:[#allocation6 + $0x630] sm:$0xff]
        %v826 = vld [vmem:[#allocation6 + $0x638] sm:$0xff]
        %v827 = vld [vmem:[#allocation6 + $0x640] sm:$0xff]
        %v828 = vld [vmem:[#allocation6 + $0x648] sm:$0xff]
        %v829 = vld [vmem:[#allocation6 + $0x650] sm:$0xff]
        %v830 = vld [vmem:[#allocation6 + $0x658] sm:$0xff]
        %v831 = vld [vmem:[#allocation6 + $0x660] sm:$0xff]
        %v832 = vld [vmem:[#allocation6 + $0x668] sm:$0xff]
        %v833 = vld [vmem:[#allocation6 + $0x670] sm:$0xff]
        %v834 = vld [vmem:[#allocation6 + $0x678] sm:$0xff]
        %v835 = vld [vmem:[#allocation6 + $0x680] sm:$0xff]
        %v836 = vld [vmem:[#allocation6 + $0x688] sm:$0xff]
        %v837 = vld [vmem:[#allocation6 + $0x690] sm:$0xff]
        %v838 = vld [vmem:[#allocation6 + $0x698] sm:$0xff]
        %v839 = vld [vmem:[#allocation6 + $0x6a0] sm:$0xff]
        %v840 = vld [vmem:[#allocation6 + $0x6a8] sm:$0xff]
        %v841 = vld [vmem:[#allocation6 + $0x6b0] sm:$0xff]
        %v842 = vld [vmem:[#allocation6 + $0x6b8] sm:$0xff]
        %v843 = vld [vmem:[#allocation6 + $0x6c0] sm:$0xff]
        %v844 = vld [vmem:[#allocation6 + $0x6c8] sm:$0xff]
        %v845 = vld [vmem:[#allocation6 + $0x6d0] sm:$0xff]
        %v846 = vld [vmem:[#allocation6 + $0x6d8] sm:$0xff]
        %v847 = vld [vmem:[#allocation6 + $0x6e0] sm:$0xff]
        %v848 = vld [vmem:[#allocation6 + $0x6e8] sm:$0xff]
        %v849 = vld [vmem:[#allocation6 + $0x6f0] sm:$0xff]
        %v850 = vld [vmem:[#allocation6 + $0x6f8] sm:$0xff]
        %v851 = vld [vmem:[#allocation6 + $0x700] sm:$0xff]
        %v852 = vld [vmem:[#allocation6 + $0x708] sm:$0xff]
        %v853 = vld [vmem:[#allocation6 + $0x710] sm:$0xff]
        %v854 = vld [vmem:[#allocation6 + $0x718] sm:$0xff]
        %v855 = vld [vmem:[#allocation6 + $0x720] sm:$0xff]
        %v856 = vld [vmem:[#allocation6 + $0x728] sm:$0xff]
        %v857 = vld [vmem:[#allocation6 + $0x730] sm:$0xff]
        %v858 = vld [vmem:[#allocation6 + $0x738] sm:$0xff]
        %v859 = vld [vmem:[#allocation6 + $0x740] sm:$0xff]
        %v860 = vld [vmem:[#allocation6 + $0x748] sm:$0xff]
        %v861 = vld [vmem:[#allocation6 + $0x750] sm:$0xff]
        %v862 = vld [vmem:[#allocation6 + $0x758] sm:$0xff]
        %v863 = vld [vmem:[#allocation6 + $0x760] sm:$0xff]
        %v864 = vld [vmem:[#allocation6 + $0x768] sm:$0xff]
        %v865 = vld [vmem:[#allocation6 + $0x770] sm:$0xff]
        %v866 = vld [vmem:[#allocation6 + $0x778] sm:$0xff]
        %v867 = vld [vmem:[#allocation6 + $0x780] sm:$0xff]
        %v868 = vld [vmem:[#allocation6 + $0x788] sm:$0xff]
        %v869 = vld [vmem:[#allocation6 + $0x790] sm:$0xff]
        %v870 = vld [vmem:[#allocation6 + $0x798] sm:$0xff]
        %v871 = vld [vmem:[#allocation6 + $0x7a0] sm:$0xff]
        %v872 = vld [vmem:[#allocation6 + $0x7a8] sm:$0xff]
        %v873 = vld [vmem:[#allocation6 + $0x7b0] sm:$0xff]
        %v874 = vld [vmem:[#allocation6 + $0x7b8] sm:$0xff]
        %v875 = vld [vmem:[#allocation6 + $0x7c0] sm:$0xff]
        %v876 = vld [vmem:[#allocation6 + $0x7c8] sm:$0xff]
        %v877 = vld [vmem:[#allocation6 + $0x7d0] sm:$0xff]
        %v878 = vld [vmem:[#allocation6 + $0x7d8] sm:$0xff]
        %v879 = vld [vmem:[#allocation6 + $0x7e0] sm:$0xff]
        %v880 = vld [vmem:[#allocation6 + $0x7e8] sm:$0xff]
        %v881 = vld [vmem:[#allocation6 + $0x7f0] sm:$0xff]
        %v882 = vld [vmem:[#allocation6 + $0x7f8] sm:$0xff]
        %v883 = vld [vmem:[#allocation6 + $0x800] sm:$0xff]
        %v884 = vld [vmem:[#allocation6 + $0x808] sm:$0xff]
        %v885 = vld [vmem:[#allocation6 + $0x810] sm:$0xff]
        %v886 = vld [vmem:[#allocation6 + $0x818] sm:$0xff]
        %v887 = vld [vmem:[#allocation6 + $0x820] sm:$0xff]
        %v888 = vld [vmem:[#allocation6 + $0x828] sm:$0xff]
        %v889 = vld [vmem:[#allocation6 + $0x830] sm:$0xff]
        %v890 = vld [vmem:[#allocation6 + $0x838] sm:$0xff]
        %v891 = vld [vmem:[#allocation6 + $0x840] sm:$0xff]
        %v892 = vld [vmem:[#allocation6 + $0x848] sm:$0xff]
        %v893 = vld [vmem:[#allocation6 + $0x850] sm:$0xff]
        %v894 = vld [vmem:[#allocation6 + $0x858] sm:$0xff]
        %v895 = vld [vmem:[#allocation6 + $0x860] sm:$0xff]
        %v896 = vld [vmem:[#allocation6 + $0x868] sm:$0xff]
        %v897 = vld [vmem:[#allocation6 + $0x870] sm:$0xff]
        %v898 = vld [vmem:[#allocation6 + $0x878] sm:$0xff]
        %v899 = vld [vmem:[#allocation6 + $0x880] sm:$0xff]
        %v900 = vld [vmem:[#allocation6 + $0x888] sm:$0xff]
        %v901 = vld [vmem:[#allocation6 + $0x890] sm:$0xff]
        %v902 = vld [vmem:[#allocation6 + $0x898] sm:$0xff]
        %v903 = vld [vmem:[#allocation6 + $0x8a0] sm:$0xff]
        %v904 = vld [vmem:[#allocation6 + $0x8a8] sm:$0xff]
        %v905 = vld [vmem:[#allocation6 + $0x8b0] sm:$0xff]
        %v906 = vld [vmem:[#allocation6 + $0x8b8] sm:$0xff]
        %v907 = vld [vmem:[#allocation6 + $0x8c0] sm:$0xff]
        %v908 = vld [vmem:[#allocation6 + $0x8c8] sm:$0xff]
        %v909 = vld [vmem:[#allocation6 + $0x8d0] sm:$0xff]
        %v910 = vld [vmem:[#allocation6 + $0x8d8] sm:$0xff]
        %v911 = vld [vmem:[#allocation6 + $0x8e0] sm:$0xff]
        %v912 = vld [vmem:[#allocation6 + $0x8e8] sm:$0xff]
        %v913 = vld [vmem:[#allocation6 + $0x8f0] sm:$0xff]
        %v914 = vld [vmem:[#allocation6 + $0x8f8] sm:$0xff]
        %v915 = vld [vmem:[#allocation6 + $0x900] sm:$0xff]
        %v916 = vld [vmem:[#allocation6 + $0x908] sm:$0xff]
        %v917 = vld [vmem:[#allocation6 + $0x910] sm:$0xff]
        %v918 = vld [vmem:[#allocation6 + $0x918] sm:$0xff]
        %v919 = vld [vmem:[#allocation6 + $0x920] sm:$0xff]
        %v920 = vld [vmem:[#allocation6 + $0x928] sm:$0xff]
        %v921 = vld [vmem:[#allocation6 + $0x930] sm:$0xff]
        %v922 = vld [vmem:[#allocation6 + $0x938] sm:$0xff]
        %v923 = vld [vmem:[#allocation6 + $0x940] sm:$0xff]
        %v924 = vld [vmem:[#allocation6 + $0x948] sm:$0xff]
        %v925 = vld [vmem:[#allocation6 + $0x950] sm:$0xff]
        %v926 = vld [vmem:[#allocation6 + $0x958] sm:$0xff]
        %v927 = vld [vmem:[#allocation6 + $0x960] sm:$0xff]
        %v928 = vld [vmem:[#allocation6 + $0x968] sm:$0xff]
        %v929 = vld [vmem:[#allocation6 + $0x970] sm:$0xff]
        %v930 = vld [vmem:[#allocation6 + $0x978] sm:$0xff]
        %v931 = vld [vmem:[#allocation6 + $0x980] sm:$0xff]
        %v932 = vld [vmem:[#allocation6 + $0x988] sm:$0xff]
        %v933 = vld [vmem:[#allocation6 + $0x990] sm:$0xff]
        %v934 = vld [vmem:[#allocation6 + $0x998] sm:$0xff]
        %v935 = vld [vmem:[#allocation6 + $0x9a0] sm:$0xff]
        %v936 = vld [vmem:[#allocation6 + $0x9a8] sm:$0xff]
        %v937 = vld [vmem:[#allocation6 + $0x9b0] sm:$0xff]
        %v938 = vld [vmem:[#allocation6 + $0x9b8] sm:$0xff]
        %v939 = vld [vmem:[#allocation6 + $0x9c0] sm:$0xff]
        %v940 = vld [vmem:[#allocation6 + $0x9c8] sm:$0xff]
        %v941 = vld [vmem:[#allocation6 + $0x9d0] sm:$0xff]
        %v942 = vld [vmem:[#allocation6 + $0x9d8] sm:$0xff]
        %v943 = vld [vmem:[#allocation6 + $0x9e0] sm:$0xff]
        %v944 = vld [vmem:[#allocation6 + $0x9e8] sm:$0xff]
        %v945 = vld [vmem:[#allocation6 + $0x9f0] sm:$0xff]
        %v946 = vld [vmem:[#allocation6 + $0x9f8] sm:$0xff]
        %v947 = vld [vmem:[#allocation6 + $0xa00] sm:$0xff]
        %v948 = vld [vmem:[#allocation6 + $0xa08] sm:$0xff]
        %v949 = vld [vmem:[#allocation6 + $0xa10] sm:$0xff]
        %v950 = vld [vmem:[#allocation6 + $0xa18] sm:$0xff]
        %v951 = vld [vmem:[#allocation6 + $0xa20] sm:$0xff]
        %v952 = vld [vmem:[#allocation6 + $0xa28] sm:$0xff]
        %v953 = vld [vmem:[#allocation6 + $0xa30] sm:$0xff]
        %v954 = vld [vmem:[#allocation6 + $0xa38] sm:$0xff]
        %v955 = vld [vmem:[#allocation6 + $0xa40] sm:$0xff]
        %v956 = vld [vmem:[#allocation6 + $0xa48] sm:$0xff]
        %v957 = vld [vmem:[#allocation6 + $0xa50] sm:$0xff]
        %v958 = vld [vmem:[#allocation6 + $0xa58] sm:$0xff]
        %v959 = vld [vmem:[#allocation6 + $0xa60] sm:$0xff]
        %v960 = vld [vmem:[#allocation6 + $0xa68] sm:$0xff]
        %v961 = vld [vmem:[#allocation6 + $0xa70] sm:$0xff]
        %v962 = vld [vmem:[#allocation6 + $0xa78] sm:$0xff]
        %v963 = vld [vmem:[#allocation6 + $0xa80] sm:$0xff]
        %v964 = vld [vmem:[#allocation6 + $0xa88] sm:$0xff]
        %v965 = vld [vmem:[#allocation6 + $0xa90] sm:$0xff]
        %v966 = vld [vmem:[#allocation6 + $0xa98] sm:$0xff]
        %v967 = vld [vmem:[#allocation6 + $0xaa0] sm:$0xff]
        %v968 = vld [vmem:[#allocation6 + $0xaa8] sm:$0xff]
        %v969 = vld [vmem:[#allocation6 + $0xab0] sm:$0xff]
        %v970 = vld [vmem:[#allocation6 + $0xab8] sm:$0xff]
        %v971 = vld [vmem:[#allocation6 + $0xac0] sm:$0xff]
        %v972 = vld [vmem:[#allocation6 + $0xac8] sm:$0xff]
        %v973 = vld [vmem:[#allocation6 + $0xad0] sm:$0xff]
        %v974 = vld [vmem:[#allocation6 + $0xad8] sm:$0xff]
        %v975 = vld [vmem:[#allocation6 + $0xae0] sm:$0xff]
        %v976 = vld [vmem:[#allocation6 + $0xae8] sm:$0xff]
        %v977 = vld [vmem:[#allocation6 + $0xaf0] sm:$0xff]
        %v978 = vld [vmem:[#allocation6 + $0xaf8] sm:$0xff]
        %v979 = vld [vmem:[#allocation6 + $0xb00] sm:$0xff]
        %v980 = vld [vmem:[#allocation6 + $0xb08] sm:$0xff]
        %v981 = vld [vmem:[#allocation6 + $0xb10] sm:$0xff]
        %v982 = vld [vmem:[#allocation6 + $0xb18] sm:$0xff]
        %v983 = vld [vmem:[#allocation6 + $0xb20] sm:$0xff]
        %v984 = vld [vmem:[#allocation6 + $0xb28] sm:$0xff]
        %v985 = vld [vmem:[#allocation6 + $0xb30] sm:$0xff]
        %v986 = vld [vmem:[#allocation6 + $0xb38] sm:$0xff]
        %v987 = vld [vmem:[#allocation6 + $0xb40] sm:$0xff]
        %v988 = vld [vmem:[#allocation6 + $0xb48] sm:$0xff]
        %v989 = vld [vmem:[#allocation6 + $0xb50] sm:$0xff]
        %v990 = vld [vmem:[#allocation6 + $0xb58] sm:$0xff]
        %v991 = vld [vmem:[#allocation6 + $0xb60] sm:$0xff]
        %v992 = vld [vmem:[#allocation6 + $0xb68] sm:$0xff]
        %v993 = vld [vmem:[#allocation6 + $0xb70] sm:$0xff]
        %v994 = vld [vmem:[#allocation6 + $0xb78] sm:$0xff]
        %v995 = vld [vmem:[#allocation6 + $0xb80] sm:$0xff]
        %v996 = vld [vmem:[#allocation6 + $0xb88] sm:$0xff]
        %v997 = vld [vmem:[#allocation6 + $0xb90] sm:$0xff]
        %v998 = vld [vmem:[#allocation6 + $0xb98] sm:$0xff]
        %v999 = vld [vmem:[#allocation6 + $0xba0] sm:$0xff]
        %v1000 = vld [vmem:[#allocation6 + $0xba8] sm:$0xff]
        %v1001 = vld [vmem:[#allocation6 + $0xbb0] sm:$0xff]
        %v1002 = vld [vmem:[#allocation6 + $0xbb8] sm:$0xff]
        %v1003 = vld [vmem:[#allocation6 + $0xbc0] sm:$0xff]
        %v1004 = vld [vmem:[#allocation6 + $0xbc8] sm:$0xff]
        %v1005 = vld [vmem:[#allocation6 + $0xbd0] sm:$0xff]
        %v1006 = vld [vmem:[#allocation6 + $0xbd8] sm:$0xff]
        %v1007 = vld [vmem:[#allocation6 + $0xbe0] sm:$0xff]
        %v1008 = vld [vmem:[#allocation6 + $0xbe8] sm:$0xff]
        %v1009 = vld [vmem:[#allocation6 + $0xbf0] sm:$0xff]
        %v1010 = vld [vmem:[#allocation6 + $0xbf8] sm:$0xff]
        %v1011 = vld [vmem:[#allocation6 + $0xc00] sm:$0xff]
        %v1012 = vld [vmem:[#allocation6 + $0xc08] sm:$0xff]
        %v1013 = vld [vmem:[#allocation6 + $0xc10] sm:$0xff]
        %v1014 = vld [vmem:[#allocation6 + $0xc18] sm:$0xff]
        %v1015 = vld [vmem:[#allocation6 + $0xc20] sm:$0xff]
        %v1016 = vld [vmem:[#allocation6 + $0xc28] sm:$0xff]
        %v1017 = vld [vmem:[#allocation6 + $0xc30] sm:$0xff]
        %v1018 = vld [vmem:[#allocation6 + $0xc38] sm:$0xff]
        %v1019 = vld [vmem:[#allocation6 + $0xc40] sm:$0xff]
        %v1020 = vld [vmem:[#allocation6 + $0xc48] sm:$0xff]
        %v1021 = vld [vmem:[#allocation6 + $0xc50] sm:$0xff]
        %v1022 = vld [vmem:[#allocation6 + $0xc58] sm:$0xff]
        %v1023 = vld [vmem:[#allocation6 + $0xc60] sm:$0xff]
        %v1024 = vld [vmem:[#allocation6 + $0xc68] sm:$0xff]
        %v1025 = vld [vmem:[#allocation6 + $0xc70] sm:$0xff]
        %v1026 = vld [vmem:[#allocation6 + $0xc78] sm:$0xff]
        %v1027 = vld [vmem:[#allocation6 + $0xc80] sm:$0xff]
        %v1028 = vld [vmem:[#allocation6 + $0xc88] sm:$0xff]
        %v1029 = vld [vmem:[#allocation6 + $0xc90] sm:$0xff]
        %v1030 = vld [vmem:[#allocation6 + $0xc98] sm:$0xff]
        %v1031 = vld [vmem:[#allocation6 + $0xca0] sm:$0xff]
        %v1032 = vld [vmem:[#allocation6 + $0xca8] sm:$0xff]
        %v1033 = vld [vmem:[#allocation6 + $0xcb0] sm:$0xff]
        %v1034 = vld [vmem:[#allocation6 + $0xcb8] sm:$0xff]
        %v1035 = vld [vmem:[#allocation6 + $0xcc0] sm:$0xff]
        %v1036 = vld [vmem:[#allocation6 + $0xcc8] sm:$0xff]
        %v1037 = vld [vmem:[#allocation6 + $0xcd0] sm:$0xff]
        %v1038 = vld [vmem:[#allocation6 + $0xcd8] sm:$0xff]
        %v1039 = vld [vmem:[#allocation6 + $0xce0] sm:$0xff]
        %v1040 = vld [vmem:[#allocation6 + $0xce8] sm:$0xff]
        %v1041 = vld [vmem:[#allocation6 + $0xcf0] sm:$0xff]
        %v1042 = vld [vmem:[#allocation6 + $0xcf8] sm:$0xff]
        %v1043 = vld [vmem:[#allocation6 + $0xd00] sm:$0xff]
        %v1044 = vld [vmem:[#allocation6 + $0xd08] sm:$0xff]
        %v1045 = vld [vmem:[#allocation6 + $0xd10] sm:$0xff]
        %v1046 = vld [vmem:[#allocation6 + $0xd18] sm:$0xff]
        %v1047 = vld [vmem:[#allocation6 + $0xd20] sm:$0xff]
        %v1048 = vld [vmem:[#allocation6 + $0xd28] sm:$0xff]
        %v1049 = vld [vmem:[#allocation6 + $0xd30] sm:$0xff]
        %v1050 = vld [vmem:[#allocation6 + $0xd38] sm:$0xff]
        %v1051 = vld [vmem:[#allocation6 + $0xd40] sm:$0xff]
        %v1052 = vld [vmem:[#allocation6 + $0xd48] sm:$0xff]
        %v1053 = vld [vmem:[#allocation6 + $0xd50] sm:$0xff]
        %v1054 = vld [vmem:[#allocation6 + $0xd58] sm:$0xff]
        %v1055 = vld [vmem:[#allocation6 + $0xd60] sm:$0xff]
        %v1056 = vld [vmem:[#allocation6 + $0xd68] sm:$0xff]
        %v1057 = vld [vmem:[#allocation6 + $0xd70] sm:$0xff]
        %v1058 = vld [vmem:[#allocation6 + $0xd78] sm:$0xff]
        %v1059 = vld [vmem:[#allocation6 + $0xd80] sm:$0xff]
        %v1060 = vld [vmem:[#allocation6 + $0xd88] sm:$0xff]
        %v1061 = vld [vmem:[#allocation6 + $0xd90] sm:$0xff]
        %v1062 = vld [vmem:[#allocation6 + $0xd98] sm:$0xff]
        %v1063 = vld [vmem:[#allocation6 + $0xda0] sm:$0xff]
        %v1064 = vld [vmem:[#allocation6 + $0xda8] sm:$0xff]
        %v1065 = vld [vmem:[#allocation6 + $0xdb0] sm:$0xff]
        %v1066 = vld [vmem:[#allocation6 + $0xdb8] sm:$0xff]
        %v1067 = vld [vmem:[#allocation6 + $0xdc0] sm:$0xff]
        %v1068 = vld [vmem:[#allocation6 + $0xdc8] sm:$0xff]
        %v1069 = vld [vmem:[#allocation6 + $0xdd0] sm:$0xff]
        %v1070 = vld [vmem:[#allocation6 + $0xdd8] sm:$0xff]
        %v1071 = vld [vmem:[#allocation6 + $0xde0] sm:$0xff]
        %v1072 = vld [vmem:[#allocation6 + $0xde8] sm:$0xff]
        %v1073 = vld [vmem:[#allocation6 + $0xdf0] sm:$0xff]
        %v1074 = vld [vmem:[#allocation6 + $0xdf8] sm:$0xff]
        %v1075 = vld [vmem:[#allocation6 + $0xe00] sm:$0xff]
        %v1076 = vld [vmem:[#allocation6 + $0xe08] sm:$0xff]
        %v1077 = vld [vmem:[#allocation6 + $0xe10] sm:$0xff]
        %v1078 = vld [vmem:[#allocation6 + $0xe18] sm:$0xff]
        %v1079 = vld [vmem:[#allocation6 + $0xe20] sm:$0xff]
        %v1080 = vld [vmem:[#allocation6 + $0xe28] sm:$0xff]
        %v1081 = vld [vmem:[#allocation6 + $0xe30] sm:$0xff]
        %v1082 = vld [vmem:[#allocation6 + $0xe38] sm:$0xff]
        %v1083 = vld [vmem:[#allocation6 + $0xe40] sm:$0xff]
        %v1084 = vld [vmem:[#allocation6 + $0xe48] sm:$0xff]
        %v1085 = vld [vmem:[#allocation6 + $0xe50] sm:$0xff]
        %v1086 = vld [vmem:[#allocation6 + $0xe58] sm:$0xff]
        %v1087 = vld [vmem:[#allocation6 + $0xe60] sm:$0xff]
        %v1088 = vld [vmem:[#allocation6 + $0xe68] sm:$0xff]
        %v1089 = vld [vmem:[#allocation6 + $0xe70] sm:$0xff]
        %v1090 = vld [vmem:[#allocation6 + $0xe78] sm:$0xff]
        %v1091 = vld [vmem:[#allocation6 + $0xe80] sm:$0xff]
        %v1092 = vld [vmem:[#allocation6 + $0xe88] sm:$0xff]
        %v1093 = vld [vmem:[#allocation6 + $0xe90] sm:$0xff]
        %v1094 = vld [vmem:[#allocation6 + $0xe98] sm:$0xff]
        %v1095 = vld [vmem:[#allocation6 + $0xea0] sm:$0xff]
        %v1096 = vld [vmem:[#allocation6 + $0xea8] sm:$0xff]
        %v1097 = vld [vmem:[#allocation6 + $0xeb0] sm:$0xff]
        %v1098 = vld [vmem:[#allocation6 + $0xeb8] sm:$0xff]
        %v1099 = vld [vmem:[#allocation6 + $0xec0] sm:$0xff]
        %v1100 = vld [vmem:[#allocation6 + $0xec8] sm:$0xff]
        %v1101 = vld [vmem:[#allocation6 + $0xed0] sm:$0xff]
        %v1102 = vld [vmem:[#allocation6 + $0xed8] sm:$0xff]
        %v1103 = vld [vmem:[#allocation6 + $0xee0] sm:$0xff]
        %v1104 = vld [vmem:[#allocation6 + $0xee8] sm:$0xff]
        %v1105 = vld [vmem:[#allocation6 + $0xef0] sm:$0xff]
        %v1106 = vld [vmem:[#allocation6 + $0xef8] sm:$0xff]
        %v1107 = vld [vmem:[#allocation6 + $0xf00] sm:$0xff]
        %v1108 = vld [vmem:[#allocation6 + $0xf08] sm:$0xff]
        %v1109 = vld [vmem:[#allocation6 + $0xf10] sm:$0xff]
        %v1110 = vld [vmem:[#allocation6 + $0xf18] sm:$0xff]
        %v1111 = vld [vmem:[#allocation6 + $0xf20] sm:$0xff]
        %v1112 = vld [vmem:[#allocation6 + $0xf28] sm:$0xff]
        %v1113 = vld [vmem:[#allocation6 + $0xf30] sm:$0xff]
        %v1114 = vld [vmem:[#allocation6 + $0xf38] sm:$0xff]
        %v1115 = vld [vmem:[#allocation6 + $0xf40] sm:$0xff]
        %v1116 = vld [vmem:[#allocation6 + $0xf48] sm:$0xff]
        %v1117 = vld [vmem:[#allocation6 + $0xf50] sm:$0xff]
        %v1118 = vld [vmem:[#allocation6 + $0xf58] sm:$0xff]
        %v1119 = vld [vmem:[#allocation6 + $0xf60] sm:$0xff]
        %v1120 = vld [vmem:[#allocation6 + $0xf68] sm:$0xff]
        %v1121 = vld [vmem:[#allocation6 + $0xf70] sm:$0xff]
        %v1122 = vld [vmem:[#allocation6 + $0xf78] sm:$0xff]
        %v1123 = vld [vmem:[#allocation6 + $0xf80] sm:$0xff]
        %v1124 = vld [vmem:[#allocation6 + $0xf88] sm:$0xff]
        %v1125 = vld [vmem:[#allocation6 + $0xf90] sm:$0xff]
        %v1126 = vld [vmem:[#allocation6 + $0xf98] sm:$0xff]
        %v1127 = vld [vmem:[#allocation6 + $0xfa0] sm:$0xff]
        %v1128 = vld [vmem:[#allocation6 + $0xfa8] sm:$0xff]
        %v1129 = vld [vmem:[#allocation6 + $0xfb0] sm:$0xff]
        %v1130 = vld [vmem:[#allocation6 + $0xfb8] sm:$0xff]
        %v1131 = vld [vmem:[#allocation6 + $0xfc0] sm:$0xff]
        %v1132 = vld [vmem:[#allocation6 + $0xfc8] sm:$0xff]
        %v1133 = vld [vmem:[#allocation6 + $0xfd0] sm:$0xff]
        %v1134 = vld [vmem:[#allocation6 + $0xfd8] sm:$0xff]
        %v1135 = vld [vmem:[#allocation6 + $0xfe0] sm:$0xff]
        %v1136 = vld [vmem:[#allocation6 + $0xfe8] sm:$0xff]
        %v1137 = vld [vmem:[#allocation6 + $0xff0] sm:$0xff]
        %v1138 = vld [vmem:[#allocation6 + $0xff8] sm:$0xff]
        %v1139 = vld [vmem:[#allocation6 + $0x1000] sm:$0xff]
        %v1140 = vld [vmem:[#allocation6 + $0x1008] sm:$0xff]
        %v1141 = vld [vmem:[#allocation6 + $0x1010] sm:$0xff]
        %v1142 = vld [vmem:[#allocation6 + $0x1018] sm:$0xff]
        %v1143 = vld [vmem:[#allocation6 + $0x1020] sm:$0xff]
        %v1144 = vld [vmem:[#allocation6 + $0x1028] sm:$0xff]
        %v1145 = vld [vmem:[#allocation6 + $0x1030] sm:$0xff]
        %v1146 = vld [vmem:[#allocation6 + $0x1038] sm:$0xff]
        %v1147 = vld [vmem:[#allocation6 + $0x1040] sm:$0xff]
        %v1148 = vld [vmem:[#allocation6 + $0x1048] sm:$0xff]
        %v1149 = vld [vmem:[#allocation6 + $0x1050] sm:$0xff]
        %v1150 = vld [vmem:[#allocation6 + $0x1058] sm:$0xff]
        %v1151 = vld [vmem:[#allocation6 + $0x1060] sm:$0xff]
        %v1152 = vld [vmem:[#allocation6 + $0x1068] sm:$0xff]
        %v1153 = vld [vmem:[#allocation6 + $0x1070] sm:$0xff]
        %v1154 = vld [vmem:[#allocation6 + $0x1078] sm:$0xff]
        %v1155 = vld [vmem:[#allocation6 + $0x1080] sm:$0xff]
        %v1156 = vld [vmem:[#allocation6 + $0x1088] sm:$0xff]
        %v1157 = vld [vmem:[#allocation6 + $0x1090] sm:$0xff]
        %v1158 = vld [vmem:[#allocation6 + $0x1098] sm:$0xff]
        %v1159 = vld [vmem:[#allocation6 + $0x10a0] sm:$0xff]
        %v1160 = vld [vmem:[#allocation6 + $0x10a8] sm:$0xff]
        %v1161 = vld [vmem:[#allocation6 + $0x10b0] sm:$0xff]
        %v1162 = vld [vmem:[#allocation6 + $0x10b8] sm:$0xff]
        %v1163 = vld [vmem:[#allocation6 + $0x10c0] sm:$0xff]
        %v1164 = vld [vmem:[#allocation6 + $0x10c8] sm:$0xff]
        %v1165 = vld [vmem:[#allocation6 + $0x10d0] sm:$0xff]
        %v1166 = vld [vmem:[#allocation6 + $0x10d8] sm:$0xff]
        %v1167 = vld [vmem:[#allocation6 + $0x10e0] sm:$0xff]
        %v1168 = vld [vmem:[#allocation6 + $0x10e8] sm:$0xff]
        %v1169 = vld [vmem:[#allocation6 + $0x10f0] sm:$0xff]
        %v1170 = vld [vmem:[#allocation6 + $0x10f8] sm:$0xff]
        %v1171 = vld [vmem:[#allocation6 + $0x1100] sm:$0xff]
        %v1172 = vld [vmem:[#allocation6 + $0x1108] sm:$0xff]
        %v1173 = vld [vmem:[#allocation6 + $0x1110] sm:$0xff]
        %v1174 = vld [vmem:[#allocation6 + $0x1118] sm:$0xff]
        %v1175 = vld [vmem:[#allocation6 + $0x1120] sm:$0xff]
        %v1176 = vld [vmem:[#allocation6 + $0x1128] sm:$0xff]
        %v1177 = vld [vmem:[#allocation6 + $0x1130] sm:$0xff]
        %v1178 = vld [vmem:[#allocation6 + $0x1138] sm:$0xff]
        %v1179 = vld [vmem:[#allocation6 + $0x1140] sm:$0xff]
        %v1180 = vld [vmem:[#allocation6 + $0x1148] sm:$0xff]
        %v1181 = vld [vmem:[#allocation6 + $0x1150] sm:$0xff]
        %v1182 = vld [vmem:[#allocation6 + $0x1158] sm:$0xff]
        %v1183 = vld [vmem:[#allocation6 + $0x1160] sm:$0xff]
        %v1184 = vld [vmem:[#allocation6 + $0x1168] sm:$0xff]
        %v1185 = vld [vmem:[#allocation6 + $0x1170] sm:$0xff]
        %v1186 = vld [vmem:[#allocation6 + $0x1178] sm:$0xff]
        %v1187 = vld [vmem:[#allocation6 + $0x1180] sm:$0xff]
        %v1188 = vld [vmem:[#allocation6 + $0x1188] sm:$0xff]
        %v1189 = vld [vmem:[#allocation6 + $0x1190] sm:$0xff]
        %v1190 = vld [vmem:[#allocation6 + $0x1198] sm:$0xff]
        %v1191 = vld [vmem:[#allocation6 + $0x11a0] sm:$0xff]
        %v1192 = vld [vmem:[#allocation6 + $0x11a8] sm:$0xff]
        %v1193 = vld [vmem:[#allocation6 + $0x11b0] sm:$0xff]
        %v1194 = vld [vmem:[#allocation6 + $0x11b8] sm:$0xff]
        %v1195 = vld [vmem:[#allocation6 + $0x11c0] sm:$0xff]
        %v1196 = vld [vmem:[#allocation6 + $0x11c8] sm:$0xff]
        %v1197 = vld [vmem:[#allocation6 + $0x11d0] sm:$0xff]
        %v1198 = vld [vmem:[#allocation6 + $0x11d8] sm:$0xff]
        %v1199 = vld [vmem:[#allocation6 + $0x11e0] sm:$0xff]
        %v1200 = vld [vmem:[#allocation6 + $0x11e8] sm:$0xff]
        %v1201 = vld [vmem:[#allocation6 + $0x11f0] sm:$0xff]
        %v1202 = vld [vmem:[#allocation6 + $0x11f8] sm:$0xff]
        %v1203 = vld [vmem:[#allocation6 + $0x1200] sm:$0xff]
        %v1204 = vld [vmem:[#allocation6 + $0x1208] sm:$0xff]
        %v1205 = vld [vmem:[#allocation6 + $0x1210] sm:$0xff]
        %v1206 = vld [vmem:[#allocation6 + $0x1218] sm:$0xff]
        %v1207 = vld [vmem:[#allocation6 + $0x1220] sm:$0xff]
        %v1208 = vld [vmem:[#allocation6 + $0x1228] sm:$0xff]
        %v1209 = vld [vmem:[#allocation6 + $0x1230] sm:$0xff]
        %v1210 = vld [vmem:[#allocation6 + $0x1238] sm:$0xff]
        %v1211 = vld [vmem:[#allocation6 + $0x1240] sm:$0xff]
        %v1212 = vld [vmem:[#allocation6 + $0x1248] sm:$0xff]
        %v1213 = vld [vmem:[#allocation6 + $0x1250] sm:$0xff]
        %v1214 = vld [vmem:[#allocation6 + $0x1258] sm:$0xff]
        %v1215 = vld [vmem:[#allocation6 + $0x1260] sm:$0xff]
        %v1216 = vld [vmem:[#allocation6 + $0x1268] sm:$0xff]
        %v1217 = vld [vmem:[#allocation6 + $0x1270] sm:$0xff]
        %v1218 = vld [vmem:[#allocation6 + $0x1278] sm:$0xff]
        %v1219 = vld [vmem:[#allocation6 + $0x1280] sm:$0xff]
        %v1220 = vld [vmem:[#allocation6 + $0x1288] sm:$0xff]
        %v1221 = vld [vmem:[#allocation6 + $0x1290] sm:$0xff]
        %v1222 = vld [vmem:[#allocation6 + $0x1298] sm:$0xff]
        %v1223 = vld [vmem:[#allocation6 + $0x12a0] sm:$0xff]
        %v1224 = vld [vmem:[#allocation6 + $0x12a8] sm:$0xff]
        %v1225 = vld [vmem:[#allocation6 + $0x12b0] sm:$0xff]
        %v1226 = vld [vmem:[#allocation6 + $0x12b8] sm:$0xff]
        %v1227 = vld [vmem:[#allocation6 + $0x12c0] sm:$0xff]
        %v1228 = vld [vmem:[#allocation6 + $0x12c8] sm:$0xff]
        %v1229 = vld [vmem:[#allocation6 + $0x12d0] sm:$0xff]
        %v1230 = vld [vmem:[#allocation6 + $0x12d8] sm:$0xff]
        %v1231 = vld [vmem:[#allocation6 + $0x12e0] sm:$0xff]
        %v1232 = vld [vmem:[#allocation6 + $0x12e8] sm:$0xff]
        %v1233 = vld [vmem:[#allocation6 + $0x12f0] sm:$0xff]
        %v1234 = vld [vmem:[#allocation6 + $0x12f8] sm:$0xff]
        %v1235 = vld [vmem:[#allocation6 + $0x1300] sm:$0xff]
        %v1236 = vld [vmem:[#allocation6 + $0x1308] sm:$0xff]
        %v1237 = vld [vmem:[#allocation6 + $0x1310] sm:$0xff]
        %v1238 = vld [vmem:[#allocation6 + $0x1318] sm:$0xff]
        %v1239 = vld [vmem:[#allocation6 + $0x1320] sm:$0xff]
        %v1240 = vld [vmem:[#allocation6 + $0x1328] sm:$0xff]
        %v1241 = vld [vmem:[#allocation6 + $0x1330] sm:$0xff]
        %v1242 = vld [vmem:[#allocation6 + $0x1338] sm:$0xff]
        %v1243 = vld [vmem:[#allocation6 + $0x1340] sm:$0xff]
        %v1244 = vld [vmem:[#allocation6 + $0x1348] sm:$0xff]
        %v1245 = vld [vmem:[#allocation6 + $0x1350] sm:$0xff]
        %v1246 = vld [vmem:[#allocation6 + $0x1358] sm:$0xff]
        %v1247 = vld [vmem:[#allocation6 + $0x1360] sm:$0xff]
        %v1248 = vld [vmem:[#allocation6 + $0x1368] sm:$0xff]
        %v1249 = vld [vmem:[#allocation6 + $0x1370] sm:$0xff]
        %v1250 = vld [vmem:[#allocation6 + $0x1378] sm:$0xff]
        %v1251 = vld [vmem:[#allocation6 + $0x1380] sm:$0xff]
        %v1252 = vld [vmem:[#allocation6 + $0x1388] sm:$0xff]
        %v1253 = vld [vmem:[#allocation6 + $0x1390] sm:$0xff]
        %v1254 = vld [vmem:[#allocation6 + $0x1398] sm:$0xff]
        %v1255 = vld [vmem:[#allocation6 + $0x13a0] sm:$0xff]
        %v1256 = vld [vmem:[#allocation6 + $0x13a8] sm:$0xff]
        %v1257 = vld [vmem:[#allocation6 + $0x13b0] sm:$0xff]
        %v1258 = vld [vmem:[#allocation6 + $0x13b8] sm:$0xff]
        %v1259 = vld [vmem:[#allocation6 + $0x13c0] sm:$0xff]
        %v1260 = vld [vmem:[#allocation6 + $0x13c8] sm:$0xff]
        %v1261 = vld [vmem:[#allocation6 + $0x13d0] sm:$0xff]
        %v1262 = vld [vmem:[#allocation6 + $0x13d8] sm:$0xff]
        %v1263 = vld [vmem:[#allocation6 + $0x13e0] sm:$0xff]
        %v1264 = vld [vmem:[#allocation6 + $0x13e8] sm:$0xff]
        %v1265 = vld [vmem:[#allocation6 + $0x13f0] sm:$0xff]
        %v1266 = vld [vmem:[#allocation6 + $0x13f8] sm:$0xff]
        %v1267 = vld [vmem:[#allocation6 + $0x1400] sm:$0xff]
        %v1268 = vld [vmem:[#allocation6 + $0x1408] sm:$0xff]
        %v1269 = vld [vmem:[#allocation6 + $0x1410] sm:$0xff]
        %v1270 = vld [vmem:[#allocation6 + $0x1418] sm:$0xff]
        %v1271 = vld [vmem:[#allocation6 + $0x1420] sm:$0xff]
        %v1272 = vld [vmem:[#allocation6 + $0x1428] sm:$0xff]
        %v1273 = vld [vmem:[#allocation6 + $0x1430] sm:$0xff]
        %v1274 = vld [vmem:[#allocation6 + $0x1438] sm:$0xff]
        %v1275 = vld [vmem:[#allocation6 + $0x1440] sm:$0xff]
        %v1276 = vld [vmem:[#allocation6 + $0x1448] sm:$0xff]
        %v1277 = vld [vmem:[#allocation6 + $0x1450] sm:$0xff]
        %v1278 = vld [vmem:[#allocation6 + $0x1458] sm:$0xff]
        %v1279 = vld [vmem:[#allocation6 + $0x1460] sm:$0xff]
        %v1280 = vld [vmem:[#allocation6 + $0x1468] sm:$0xff]
        %v1281 = vld [vmem:[#allocation6 + $0x1470] sm:$0xff]
        %v1282 = vld [vmem:[#allocation6 + $0x1478] sm:$0xff]
        %v1283 = vld [vmem:[#allocation6 + $0x1480] sm:$0xff]
        %v1284 = vld [vmem:[#allocation6 + $0x1488] sm:$0xff]
        %v1285 = vld [vmem:[#allocation6 + $0x1490] sm:$0xff]
        %v1286 = vld [vmem:[#allocation6 + $0x1498] sm:$0xff]
        %v1287 = vld [vmem:[#allocation6 + $0x14a0] sm:$0xff]
        %v1288 = vld [vmem:[#allocation6 + $0x14a8] sm:$0xff]
        %v1289 = vld [vmem:[#allocation6 + $0x14b0] sm:$0xff]
        %v1290 = vld [vmem:[#allocation6 + $0x14b8] sm:$0xff]
        %v1291 = vld [vmem:[#allocation6 + $0x14c0] sm:$0xff]
        %v1292 = vld [vmem:[#allocation6 + $0x14c8] sm:$0xff]
        %v1293 = vld [vmem:[#allocation6 + $0x14d0] sm:$0xff]
        %v1294 = vld [vmem:[#allocation6 + $0x14d8] sm:$0xff]
        %v1295 = vld [vmem:[#allocation6 + $0x14e0] sm:$0xff]
        %v1296 = vld [vmem:[#allocation6 + $0x14e8] sm:$0xff]
        %v1297 = vld [vmem:[#allocation6 + $0x14f0] sm:$0xff]
        %v1298 = vld [vmem:[#allocation6 + $0x14f8] sm:$0xff]
        %v1299 = vld [vmem:[#allocation6 + $0x1500] sm:$0xff]
        %v1300 = vld [vmem:[#allocation6 + $0x1508] sm:$0xff]
        %v1301 = vld [vmem:[#allocation6 + $0x1510] sm:$0xff]
        %v1302 = vld [vmem:[#allocation6 + $0x1518] sm:$0xff]
        %v1303 = vld [vmem:[#allocation6 + $0x1520] sm:$0xff]
        %v1304 = vld [vmem:[#allocation6 + $0x1528] sm:$0xff]
        %v1305 = vld [vmem:[#allocation6 + $0x1530] sm:$0xff]
        %v1306 = vld [vmem:[#allocation6 + $0x1538] sm:$0xff]
        %v1307 = vld [vmem:[#allocation6 + $0x1540] sm:$0xff]
        %v1308 = vld [vmem:[#allocation6 + $0x1548] sm:$0xff]
        %v1309 = vld [vmem:[#allocation6 + $0x1550] sm:$0xff]
        %v1310 = vld [vmem:[#allocation6 + $0x1558] sm:$0xff]
        %v1311 = vld [vmem:[#allocation6 + $0x1560] sm:$0xff]
        %v1312 = vld [vmem:[#allocation6 + $0x1568] sm:$0xff]
        %v1313 = vld [vmem:[#allocation6 + $0x1570] sm:$0xff]
        %v1314 = vld [vmem:[#allocation6 + $0x1578] sm:$0xff]
        %v1315 = vld [vmem:[#allocation6 + $0x1580] sm:$0xff]
        %v1316 = vld [vmem:[#allocation6 + $0x1588] sm:$0xff]
        %v1317 = vld [vmem:[#allocation6 + $0x1590] sm:$0xff]
        %v1318 = vld [vmem:[#allocation6 + $0x1598] sm:$0xff]
        %v1319 = vld [vmem:[#allocation6 + $0x15a0] sm:$0xff]
        %v1320 = vld [vmem:[#allocation6 + $0x15a8] sm:$0xff]
        %v1321 = vld [vmem:[#allocation6 + $0x15b0] sm:$0xff]
        %v1322 = vld [vmem:[#allocation6 + $0x15b8] sm:$0xff]
        %v1323 = vld [vmem:[#allocation6 + $0x15c0] sm:$0xff]
        %v1324 = vld [vmem:[#allocation6 + $0x15c8] sm:$0xff]
        %v1325 = vld [vmem:[#allocation6 + $0x15d0] sm:$0xff]
        %v1326 = vld [vmem:[#allocation6 + $0x15d8] sm:$0xff]
        %v1327 = vld [vmem:[#allocation6 + $0x15e0] sm:$0xff]
        %v1328 = vld [vmem:[#allocation6 + $0x15e8] sm:$0xff]
        %v1329 = vld [vmem:[#allocation6 + $0x15f0] sm:$0xff]
        %v1330 = vld [vmem:[#allocation6 + $0x15f8] sm:$0xff]
        %v1331 = vld [vmem:[#allocation6 + $0x1600] sm:$0xff]
        %v1332 = vld [vmem:[#allocation6 + $0x1608] sm:$0xff]
        %v1333 = vld [vmem:[#allocation6 + $0x1610] sm:$0xff]
        %v1334 = vld [vmem:[#allocation6 + $0x1618] sm:$0xff]
        %v1335 = vld [vmem:[#allocation6 + $0x1620] sm:$0xff]
        %v1336 = vld [vmem:[#allocation6 + $0x1628] sm:$0xff]
        %v1337 = vld [vmem:[#allocation6 + $0x1630] sm:$0xff]
        %v1338 = vld [vmem:[#allocation6 + $0x1638] sm:$0xff]
        %v1339 = vld [vmem:[#allocation6 + $0x1640] sm:$0xff]
        %v1340 = vld [vmem:[#allocation6 + $0x1648] sm:$0xff]
        %v1341 = vld [vmem:[#allocation6 + $0x1650] sm:$0xff]
        %v1342 = vld [vmem:[#allocation6 + $0x1658] sm:$0xff]
        %v1343 = vld [vmem:[#allocation6 + $0x1660] sm:$0xff]
        %v1344 = vld [vmem:[#allocation6 + $0x1668] sm:$0xff]
        %v1345 = vld [vmem:[#allocation6 + $0x1670] sm:$0xff]
        %v1346 = vld [vmem:[#allocation6 + $0x1678] sm:$0xff]
        %v1347 = vld [vmem:[#allocation6 + $0x1680] sm:$0xff]
        %v1348 = vld [vmem:[#allocation6 + $0x1688] sm:$0xff]
        %v1349 = vld [vmem:[#allocation6 + $0x1690] sm:$0xff]
        %v1350 = vld [vmem:[#allocation6 + $0x1698] sm:$0xff]
        %v1351 = vld [vmem:[#allocation6 + $0x16a0] sm:$0xff]
        %v1352 = vld [vmem:[#allocation6 + $0x16a8] sm:$0xff]
        %v1353 = vld [vmem:[#allocation6 + $0x16b0] sm:$0xff]
        %v1354 = vld [vmem:[#allocation6 + $0x16b8] sm:$0xff]
        %v1355 = vld [vmem:[#allocation6 + $0x16c0] sm:$0xff]
        %v1356 = vld [vmem:[#allocation6 + $0x16c8] sm:$0xff]
        %v1357 = vld [vmem:[#allocation6 + $0x16d0] sm:$0xff]
        %v1358 = vld [vmem:[#allocation6 + $0x16d8] sm:$0xff]
        %v1359 = vld [vmem:[#allocation6 + $0x16e0] sm:$0xff]
        %v1360 = vld [vmem:[#allocation6 + $0x16e8] sm:$0xff]
        %v1361 = vld [vmem:[#allocation6 + $0x16f0] sm:$0xff]
        %v1362 = vld [vmem:[#allocation6 + $0x16f8] sm:$0xff]
        %v1363 = vld [vmem:[#allocation6 + $0x1700] sm:$0xff]
        %v1364 = vld [vmem:[#allocation6 + $0x1708] sm:$0xff]
        %v1365 = vld [vmem:[#allocation6 + $0x1710] sm:$0xff]
        %v1366 = vld [vmem:[#allocation6 + $0x1718] sm:$0xff]
        %v1367 = vld [vmem:[#allocation6 + $0x1720] sm:$0xff]
        %v1368 = vld [vmem:[#allocation6 + $0x1728] sm:$0xff]
        %v1369 = vld [vmem:[#allocation6 + $0x1730] sm:$0xff]
        %v1370 = vld [vmem:[#allocation6 + $0x1738] sm:$0xff]
        %v1371 = vld [vmem:[#allocation6 + $0x1740] sm:$0xff]
        %v1372 = vld [vmem:[#allocation6 + $0x1748] sm:$0xff]
        %v1373 = vld [vmem:[#allocation6 + $0x1750] sm:$0xff]
        %v1374 = vld [vmem:[#allocation6 + $0x1758] sm:$0xff]
        %v1375 = vld [vmem:[#allocation6 + $0x1760] sm:$0xff]
        %v1376 = vld [vmem:[#allocation6 + $0x1768] sm:$0xff]
        %v1377 = vld [vmem:[#allocation6 + $0x1770] sm:$0xff]
        %v1378 = vld [vmem:[#allocation6 + $0x1778] sm:$0xff]
        %v1379 = vld [vmem:[#allocation6 + $0x1780] sm:$0xff]
        %v1380 = vld [vmem:[#allocation6 + $0x1788] sm:$0xff]
        %v1381 = vld [vmem:[#allocation6 + $0x1790] sm:$0xff]
        %v1382 = vld [vmem:[#allocation6 + $0x1798] sm:$0xff]
        %v1383 = vld [vmem:[#allocation6 + $0x17a0] sm:$0xff]
        %v1384 = vld [vmem:[#allocation6 + $0x17a8] sm:$0xff]
        %v1385 = vld [vmem:[#allocation6 + $0x17b0] sm:$0xff]
        %v1386 = vld [vmem:[#allocation6 + $0x17b8] sm:$0xff]
        %v1387 = vld [vmem:[#allocation6 + $0x17c0] sm:$0xff]
        %v1388 = vld [vmem:[#allocation6 + $0x17c8] sm:$0xff]
        %v1389 = vld [vmem:[#allocation6 + $0x17d0] sm:$0xff]
        %v1390 = vld [vmem:[#allocation6 + $0x17d8] sm:$0xff]
        %v1391 = vld [vmem:[#allocation6 + $0x17e0] sm:$0xff]
        %v1392 = vld [vmem:[#allocation6 + $0x17e8] sm:$0xff]
        %v1393 = vld [vmem:[#allocation6 + $0x17f0] sm:$0xff]
        %v1394 = vld [vmem:[#allocation6 + $0x17f8] sm:$0xff]
        %v1395 = vld [vmem:[#allocation8] sm:$0xf]
        %v1397 = vlaneseq
        %v1398 = vshrl.u32 %v1397, 7
        %v1399 = vsub.s32 0, %v1398
        %v1400 = vrot.slane %v1395, %v1399
        %v1401 = vlaneseq
        %v1402 = vshrl.u32 %v1401, 7
        %v1403 = vsub.s32 1, %v1402
        %v1404 = vrot.slane %v1395, %v1403
        %v1405 = vlaneseq
        %v1406 = vshrl.u32 %v1405, 7
        %v1407 = vsub.s32 2, %v1406
        %v1408 = vrot.slane %v1395, %v1407
        %v1409 = vlaneseq
        %v1410 = vshrl.u32 %v1409, 7
        %v1411 = vsub.s32 3, %v1410
        %v1412 = vrot.slane %v1395, %v1411
        %1417 = vmatprep.subr.mxu0 %v628
        %1418 = vmatpush1.msra.mxu0 %v627
        %1419 = vmatprep.subr.mxu0 %v632
        %1420 = vmatpush1.msra.mxu0 %v631
        %1421 = vmatprep.subr.mxu0 %v636
        %1422 = vmatpush1.msra.mxu0 %v635
        %1423 = vmatprep.subr.mxu0 %v640
        %1424 = vmatpush1.msra.mxu0 %v639
        %1425 = vmatprep.subr.mxu0 %v644
        %1426 = vmatpush1.msra.mxu0 %v643
        %1427 = vmatprep.subr.mxu0 %v648
        %1428 = vmatpush1.msra.mxu0 %v647
        %1429 = vmatprep.subr.mxu0 %v652
        %1430 = vmatpush1.msra.mxu0 %v651
        %1431 = vmatprep.subr.mxu0 %v656
        %1432 = vmatpush1.msra.mxu0 %v655
        %1433 = vmatprep.subr.mxu0 %v660
        %1434 = vmatpush1.msra.mxu0 %v659
        %1435 = vmatprep.subr.mxu0 %v664
        %1436 = vmatpush1.msra.mxu0 %v663
        %1437 = vmatprep.subr.mxu0 %v668
        %1438 = vmatpush1.msra.mxu0 %v667
        %1439 = vmatprep.subr.mxu0 %v672
        %1440 = vmatpush1.msra.mxu0 %v671
        %1441 = vmatprep.subr.mxu0 %v676
        %1442 = vmatpush1.msra.mxu0 %v675
        %1443 = vmatprep.subr.mxu0 %v680
        %1444 = vmatpush1.msra.mxu0 %v679
        %1445 = vmatprep.subr.mxu0 %v684
        %1446 = vmatpush1.msra.mxu0 %v683
        %1447 = vmatprep.subr.mxu0 %v688
        %1448 = vmatpush1.msra.mxu0 %v687
        %1449 = vmatprep.subr.mxu0 %v692
        %1450 = vmatpush1.msra.mxu0 %v691
        %1451 = vmatprep.subr.mxu0 %v696
        %1452 = vmatpush1.msra.mxu0 %v695
        %1453 = vmatprep.subr.mxu0 %v700
        %1454 = vmatpush1.msra.mxu0 %v699
        %1455 = vmatprep.subr.mxu0 %v704
        %1456 = vmatpush1.msra.mxu0 %v703
        %1457 = vmatprep.subr.mxu0 %v708
        %1458 = vmatpush1.msra.mxu0 %v707
        %1459 = vmatprep.subr.mxu0 %v712
        %1460 = vmatpush1.msra.mxu0 %v711
        %1461 = vmatprep.subr.mxu0 %v716
        %1462 = vmatpush1.msra.mxu0 %v715
        %1463 = vmatprep.subr.mxu0 %v720
        %1464 = vmatpush1.msra.mxu0 %v719
        %1465 = vmatprep.subr.mxu0 %v724
        %1466 = vmatpush1.msra.mxu0 %v723
        %1467 = vmatprep.subr.mxu0 %v728
        %1468 = vmatpush1.msra.mxu0 %v727
        %1469 = vmatprep.subr.mxu0 %v732
        %1470 = vmatpush1.msra.mxu0 %v731
        %1471 = vmatprep.subr.mxu0 %v736
        %1472 = vmatpush1.msra.mxu0 %v735
        %1473 = vmatprep.subr.mxu0 %v740
        %1474 = vmatpush1.msra.mxu0 %v739
        %1475 = vmatprep.subr.mxu0 %v744
        %1476 = vmatpush1.msra.mxu0 %v743
        %1477 = vmatprep.subr.mxu0 %v748
        %1478 = vmatpush1.msra.mxu0 %v747
        %1479 = vmatprep.subr.mxu0 %v752
        %1480 = vmatpush1.msra.mxu0 %v751
        %1481 = vmatprep.mubr.f32.mxu0 %v604
        %1482 = vmatmul.mubr.f32.gmra.mrb[0].mxu0 %v603
        %v1483 = vpop.f32.mrb[0].mxu0
        %v1484 = vadd.f32 %v1400, %v1483
        %v1485 = vpop.f32.mrb[0].mxu0
        %v1486 = vadd.f32 %v1404, %v1485
        %1487 = vmatprep.mubr.f32.mxu0 %v616
        %1488 = vmatmul.mubr.f32.gmra.mrb[0].mxu0 %v615
        %v1489 = vpop.f32.mrb[0].mxu0
        %v1490 = vadd.f32 %v1400, %v1489
        %v1491 = vpop.f32.mrb[0].mxu0
        %v1492 = vadd.f32 %v1404, %v1491
        %1493 = vdwg.mxu0
        %1494 = vmatprep.subr.mxu0 %v756
        %1495 = vmatpush1.msra.mxu0 %v755
        %1496 = vmatprep.subr.mxu0 %v760
        %1497 = vmatpush1.msra.mxu0 %v759
        %1498 = vmatprep.subr.mxu0 %v764
        %1499 = vmatpush1.msra.mxu0 %v763
        %1500 = vmatprep.subr.mxu0 %v768
        %1501 = vmatpush1.msra.mxu0 %v767
        %1502 = vmatprep.subr.mxu0 %v772
        %1503 = vmatpush1.msra.mxu0 %v771
        %1504 = vmatprep.subr.mxu0 %v776
        %1505 = vmatpush1.msra.mxu0 %v775
        %1506 = vmatprep.subr.mxu0 %v780
        %1507 = vmatpush1.msra.mxu0 %v779
        %1508 = vmatprep.subr.mxu0 %v784
        %1509 = vmatpush1.msra.mxu0 %v783
        %1510 = vmatprep.subr.mxu0 %v788
        %1511 = vmatpush1.msra.mxu0 %v787
        %1512 = vmatprep.subr.mxu0 %v792
        %1513 = vmatpush1.msra.mxu0 %v791
        %1514 = vmatprep.subr.mxu0 %v796
        %1515 = vmatpush1.msra.mxu0 %v795
        %1516 = vmatprep.subr.mxu0 %v800
        %1517 = vmatpush1.msra.mxu0 %v799
        %1518 = vmatprep.subr.mxu0 %v804
        %1519 = vmatpush1.msra.mxu0 %v803
        %1520 = vmatprep.subr.mxu0 %v808
        %1521 = vmatpush1.msra.mxu0 %v807
        %1522 = vmatprep.subr.mxu0 %v812
        %1523 = vmatpush1.msra.mxu0 %v811
        %1524 = vmatprep.subr.mxu0 %v816
        %1525 = vmatpush1.msra.mxu0 %v815
        %1526 = vmatprep.subr.mxu0 %v820
        %1527 = vmatpush1.msra.mxu0 %v819
        %1528 = vmatprep.subr.mxu0 %v824
        %1529 = vmatpush1.msra.mxu0 %v823
        %1530 = vmatprep.subr.mxu0 %v828
        %1531 = vmatpush1.msra.mxu0 %v827
        %1532 = vmatprep.subr.mxu0 %v832
        %1533 = vmatpush1.msra.mxu0 %v831
        %1534 = vmatprep.subr.mxu0 %v836
        %1535 = vmatpush1.msra.mxu0 %v835
        %1536 = vmatprep.subr.mxu0 %v840
        %1537 = vmatpush1.msra.mxu0 %v839
        %1538 = vmatprep.subr.mxu0 %v844
        %1539 = vmatpush1.msra.mxu0 %v843
        %1540 = vmatprep.subr.mxu0 %v848
        %1541 = vmatpush1.msra.mxu0 %v847
        %1542 = vmatprep.subr.mxu0 %v852
        %1543 = vmatpush1.msra.mxu0 %v851
        %1544 = vmatprep.subr.mxu0 %v856
        %1545 = vmatpush1.msra.mxu0 %v855
        %1546 = vmatprep.subr.mxu0 %v860
        %1547 = vmatpush1.msra.mxu0 %v859
        %1548 = vmatprep.subr.mxu0 %v864
        %1549 = vmatpush1.msra.mxu0 %v863
        %1550 = vmatprep.subr.mxu0 %v868
        %1551 = vmatpush1.msra.mxu0 %v867
        %1552 = vmatprep.subr.mxu0 %v872
        %1553 = vmatpush1.msra.mxu0 %v871
        %1554 = vmatprep.subr.mxu0 %v876
        %1555 = vmatpush1.msra.mxu0 %v875
        %1556 = vmatprep.subr.mxu0 %v880
        %1557 = vmatpush1.msra.mxu0 %v879
        %1558 = vmatprep.mubr.f32.mxu0 %v606
        %1559 = vmatmul.mubr.f32.gmra.mrb[0].mxu0 %v605
        %v1560 = vpop.f32.mrb[0].mxu0
        %v1561 = vadd.f32 %v1484, %v1560
        %v1562 = vpop.f32.mrb[0].mxu0
        %v1563 = vadd.f32 %v1486, %v1562
        %1564 = vmatprep.mubr.f32.mxu0 %v618
        %1565 = vmatmul.mubr.f32.gmra.mrb[0].mxu0 %v617
        %v1566 = vpop.f32.mrb[0].mxu0
        %v1567 = vadd.f32 %v1490, %v1566
        %v1568 = vpop.f32.mrb[0].mxu0
        %v1569 = vadd.f32 %v1492, %v1568
        %1570 = vdwg.mxu0
        %1571 = vmatprep.subr.mxu0 %v884
        %1572 = vmatpush1.msra.mxu0 %v883
        %1573 = vmatprep.subr.mxu0 %v888
        %1574 = vmatpush1.msra.mxu0 %v887
        %1575 = vmatprep.subr.mxu0 %v892
        %1576 = vmatpush1.msra.mxu0 %v891
        %1577 = vmatprep.subr.mxu0 %v896
        %1578 = vmatpush1.msra.mxu0 %v895
        %1579 = vmatprep.subr.mxu0 %v900
        %1580 = vmatpush1.msra.mxu0 %v899
        %1581 = vmatprep.subr.mxu0 %v904
        %1582 = vmatpush1.msra.mxu0 %v903
        %1583 = vmatprep.subr.mxu0 %v908
        %1584 = vmatpush1.msra.mxu0 %v907
        %1585 = vmatprep.subr.mxu0 %v912
        %1586 = vmatpush1.msra.mxu0 %v911
        %1587 = vmatprep.subr.mxu0 %v916
        %1588 = vmatpush1.msra.mxu0 %v915
        %1589 = vmatprep.subr.mxu0 %v920
        %1590 = vmatpush1.msra.mxu0 %v919
        %1591 = vmatprep.subr.mxu0 %v924
        %1592 = vmatpush1.msra.mxu0 %v923
        %1593 = vmatprep.subr.mxu0 %v928
        %1594 = vmatpush1.msra.mxu0 %v927
        %1595 = vmatprep.subr.mxu0 %v932
        %1596 = vmatpush1.msra.mxu0 %v931
        %1597 = vmatprep.subr.mxu0 %v936
        %1598 = vmatpush1.msra.mxu0 %v935
        %1599 = vmatprep.subr.mxu0 %v940
        %1600 = vmatpush1.msra.mxu0 %v939
        %1601 = vmatprep.subr.mxu0 %v944
        %1602 = vmatpush1.msra.mxu0 %v943
        %1603 = vmatprep.subr.mxu0 %v948
        %1604 = vmatpush1.msra.mxu0 %v947
        %1605 = vmatprep.subr.mxu0 %v952
        %1606 = vmatpush1.msra.mxu0 %v951
        %1607 = vmatprep.subr.mxu0 %v956
        %1608 = vmatpush1.msra.mxu0 %v955
        %1609 = vmatprep.subr.mxu0 %v960
        %1610 = vmatpush1.msra.mxu0 %v959
        %1611 = vmatprep.subr.mxu0 %v964
        %1612 = vmatpush1.msra.mxu0 %v963
        %1613 = vmatprep.subr.mxu0 %v968
        %1614 = vmatpush1.msra.mxu0 %v967
        %1615 = vmatprep.subr.mxu0 %v972
        %1616 = vmatpush1.msra.mxu0 %v971
        %1617 = vmatprep.subr.mxu0 %v976
        %1618 = vmatpush1.msra.mxu0 %v975
        %1619 = vmatprep.subr.mxu0 %v980
        %1620 = vmatpush1.msra.mxu0 %v979
        %1621 = vmatprep.subr.mxu0 %v984
        %1622 = vmatpush1.msra.mxu0 %v983
        %1623 = vmatprep.subr.mxu0 %v988
        %1624 = vmatpush1.msra.mxu0 %v987
        %1625 = vmatprep.subr.mxu0 %v992
        %1626 = vmatpush1.msra.mxu0 %v991
        %1627 = vmatprep.subr.mxu0 %v996
        %1628 = vmatpush1.msra.mxu0 %v995
        %1629 = vmatprep.subr.mxu0 %v1000
        %1630 = vmatpush1.msra.mxu0 %v999
        %1631 = vmatprep.subr.mxu0 %v1004
        %1632 = vmatpush1.msra.mxu0 %v1003
        %1633 = vmatprep.subr.mxu0 %v1008
        %1634 = vmatpush1.msra.mxu0 %v1007
        %1635 = vmatprep.mubr.f32.mxu0 %v608
        %1636 = vmatmul.mubr.f32.gmra.mrb[0].mxu0 %v607
        %v1637 = vpop.f32.mrb[0].mxu0
        %v1638 = vadd.f32 %v1561, %v1637
        %v1639 = vpop.f32.mrb[0].mxu0
        %v1640 = vadd.f32 %v1563, %v1639
        %1641 = vmatprep.mubr.f32.mxu0 %v620
        %1642 = vmatmul.mubr.f32.gmra.mrb[0].mxu0 %v619
        %v1643 = vpop.f32.mrb[0].mxu0
        %v1644 = vadd.f32 %v1567, %v1643
        %v1645 = vpop.f32.mrb[0].mxu0
        %v1646 = vadd.f32 %v1569, %v1645
        %1647 = vdwg.mxu0
        %1648 = vmatprep.subr.mxu0 %v1012
        %1649 = vmatpush1.msra.mxu0 %v1011
        %1650 = vmatprep.subr.mxu0 %v1016
        %1651 = vmatpush1.msra.mxu0 %v1015
        %1652 = vmatprep.subr.mxu0 %v1020
        %1653 = vmatpush1.msra.mxu0 %v1019
        %1654 = vmatprep.subr.mxu0 %v1024
        %1655 = vmatpush1.msra.mxu0 %v1023
        %1656 = vmatprep.subr.mxu0 %v1028
        %1657 = vmatpush1.msra.mxu0 %v1027
        %1658 = vmatprep.subr.mxu0 %v1032
        %1659 = vmatpush1.msra.mxu0 %v1031
        %1660 = vmatprep.subr.mxu0 %v1036
        %1661 = vmatpush1.msra.mxu0 %v1035
        %1662 = vmatprep.subr.mxu0 %v1040
        %1663 = vmatpush1.msra.mxu0 %v1039
        %1664 = vmatprep.subr.mxu0 %v1044
        %1665 = vmatpush1.msra.mxu0 %v1043
        %1666 = vmatprep.subr.mxu0 %v1048
        %1667 = vmatpush1.msra.mxu0 %v1047
        %1668 = vmatprep.subr.mxu0 %v1052
        %1669 = vmatpush1.msra.mxu0 %v1051
        %1670 = vmatprep.subr.mxu0 %v1056
        %1671 = vmatpush1.msra.mxu0 %v1055
        %1672 = vmatprep.subr.mxu0 %v1060
        %1673 = vmatpush1.msra.mxu0 %v1059
        %1674 = vmatprep.subr.mxu0 %v1064
        %1675 = vmatpush1.msra.mxu0 %v1063
        %1676 = vmatprep.subr.mxu0 %v1068
        %1677 = vmatpush1.msra.mxu0 %v1067
        %1678 = vmatprep.subr.mxu0 %v1072
        %1679 = vmatpush1.msra.mxu0 %v1071
        %1680 = vmatprep.subr.mxu0 %v1076
        %1681 = vmatpush1.msra.mxu0 %v1075
        %1682 = vmatprep.subr.mxu0 %v1080
        %1683 = vmatpush1.msra.mxu0 %v1079
        %1684 = vmatprep.subr.mxu0 %v1084
        %1685 = vmatpush1.msra.mxu0 %v1083
        %1686 = vmatprep.subr.mxu0 %v1088
        %1687 = vmatpush1.msra.mxu0 %v1087
        %1688 = vmatprep.subr.mxu0 %v1092
        %1689 = vmatpush1.msra.mxu0 %v1091
        %1690 = vmatprep.subr.mxu0 %v1096
        %1691 = vmatpush1.msra.mxu0 %v1095
        %1692 = vmatprep.subr.mxu0 %v1100
        %1693 = vmatpush1.msra.mxu0 %v1099
        %1694 = vmatprep.subr.mxu0 %v1104
        %1695 = vmatpush1.msra.mxu0 %v1103
        %1696 = vmatprep.subr.mxu0 %v1108
        %1697 = vmatpush1.msra.mxu0 %v1107
        %1698 = vmatprep.subr.mxu0 %v1112
        %1699 = vmatpush1.msra.mxu0 %v1111
        %1700 = vmatprep.subr.mxu0 %v1116
        %1701 = vmatpush1.msra.mxu0 %v1115
        %1702 = vmatprep.subr.mxu0 %v1120
        %1703 = vmatpush1.msra.mxu0 %v1119
        %1704 = vmatprep.subr.mxu0 %v1124
        %1705 = vmatpush1.msra.mxu0 %v1123
        %1706 = vmatprep.subr.mxu0 %v1128
        %1707 = vmatpush1.msra.mxu0 %v1127
        %1708 = vmatprep.subr.mxu0 %v1132
        %1709 = vmatpush1.msra.mxu0 %v1131
        %1710 = vmatprep.subr.mxu0 %v1136
        %1711 = vmatpush1.msra.mxu0 %v1135
        %1712 = vmatprep.mubr.f32.mxu0 %v610
        %1713 = vmatmul.mubr.f32.gmra.mrb[0].mxu0 %v609
        %v1714 = vpop.f32.mrb[0].mxu0
        %v1715 = vadd.f32 %v1638, %v1714
        %v1716 = vpop.f32.mrb[0].mxu0
        %v1717 = vadd.f32 %v1640, %v1716
        %1718 = vmatprep.mubr.f32.mxu0 %v622
        %1719 = vmatmul.mubr.f32.gmra.mrb[0].mxu0 %v621
        %v1720 = vpop.f32.mrb[0].mxu0
        %v1721 = vadd.f32 %v1644, %v1720
        %v1722 = vpop.f32.mrb[0].mxu0
        %v1723 = vadd.f32 %v1646, %v1722
        %1724 = vdwg.mxu0
        %1725 = vmatprep.subr.mxu0 %v1140
        %1726 = vmatpush1.msra.mxu0 %v1139
        %1727 = vmatprep.subr.mxu0 %v1144
        %1728 = vmatpush1.msra.mxu0 %v1143
        %1729 = vmatprep.subr.mxu0 %v1148
        %1730 = vmatpush1.msra.mxu0 %v1147
        %1731 = vmatprep.subr.mxu0 %v1152
        %1732 = vmatpush1.msra.mxu0 %v1151
        %1733 = vmatprep.subr.mxu0 %v1156
        %1734 = vmatpush1.msra.mxu0 %v1155
        %1735 = vmatprep.subr.mxu0 %v1160
        %1736 = vmatpush1.msra.mxu0 %v1159
        %1737 = vmatprep.subr.mxu0 %v1164
        %1738 = vmatpush1.msra.mxu0 %v1163
        %1739 = vmatprep.subr.mxu0 %v1168
        %1740 = vmatpush1.msra.mxu0 %v1167
        %1741 = vmatprep.subr.mxu0 %v1172
        %1742 = vmatpush1.msra.mxu0 %v1171
        %1743 = vmatprep.subr.mxu0 %v1176
        %1744 = vmatpush1.msra.mxu0 %v1175
        %1745 = vmatprep.subr.mxu0 %v1180
        %1746 = vmatpush1.msra.mxu0 %v1179
        %1747 = vmatprep.subr.mxu0 %v1184
        %1748 = vmatpush1.msra.mxu0 %v1183
        %1749 = vmatprep.subr.mxu0 %v1188
        %1750 = vmatpush1.msra.mxu0 %v1187
        %1751 = vmatprep.subr.mxu0 %v1192
        %1752 = vmatpush1.msra.mxu0 %v1191
        %1753 = vmatprep.subr.mxu0 %v1196
        %1754 = vmatpush1.msra.mxu0 %v1195
        %1755 = vmatprep.subr.mxu0 %v1200
        %1756 = vmatpush1.msra.mxu0 %v1199
        %1757 = vmatprep.subr.mxu0 %v1204
        %1758 = vmatpush1.msra.mxu0 %v1203
        %1759 = vmatprep.subr.mxu0 %v1208
        %1760 = vmatpush1.msra.mxu0 %v1207
        %1761 = vmatprep.subr.mxu0 %v1212
        %1762 = vmatpush1.msra.mxu0 %v1211
        %1763 = vmatprep.subr.mxu0 %v1216
        %1764 = vmatpush1.msra.mxu0 %v1215
        %1765 = vmatprep.subr.mxu0 %v1220
        %1766 = vmatpush1.msra.mxu0 %v1219
        %1767 = vmatprep.subr.mxu0 %v1224
        %1768 = vmatpush1.msra.mxu0 %v1223
        %1769 = vmatprep.subr.mxu0 %v1228
        %1770 = vmatpush1.msra.mxu0 %v1227
        %1771 = vmatprep.subr.mxu0 %v1232
        %1772 = vmatpush1.msra.mxu0 %v1231
        %1773 = vmatprep.subr.mxu0 %v1236
        %1774 = vmatpush1.msra.mxu0 %v1235
        %1775 = vmatprep.subr.mxu0 %v1240
        %1776 = vmatpush1.msra.mxu0 %v1239
        %1777 = vmatprep.subr.mxu0 %v1244
        %1778 = vmatpush1.msra.mxu0 %v1243
        %1779 = vmatprep.subr.mxu0 %v1248
        %1780 = vmatpush1.msra.mxu0 %v1247
        %1781 = vmatprep.subr.mxu0 %v1252
        %1782 = vmatpush1.msra.mxu0 %v1251
        %1783 = vmatprep.subr.mxu0 %v1256
        %1784 = vmatpush1.msra.mxu0 %v1255
        %1785 = vmatprep.subr.mxu0 %v1260
        %1786 = vmatpush1.msra.mxu0 %v1259
        %1787 = vmatprep.subr.mxu0 %v1264
        %1788 = vmatpush1.msra.mxu0 %v1263
        %1789 = vmatprep.mubr.f32.mxu0 %v612
        %1790 = vmatmul.mubr.f32.gmra.mrb[0].mxu0 %v611
        %v1791 = vpop.f32.mrb[0].mxu0
        %v1792 = vadd.f32 %v1715, %v1791
        %v1793 = vpop.f32.mrb[0].mxu0
        %v1794 = vadd.f32 %v1717, %v1793
        %1795 = vmatprep.mubr.f32.mxu0 %v624
        %1796 = vmatmul.mubr.f32.gmra.mrb[0].mxu0 %v623
        %v1797 = vpop.f32.mrb[0].mxu0
        %v1798 = vadd.f32 %v1721, %v1797
        %v1799 = vpop.f32.mrb[0].mxu0
        %v1800 = vadd.f32 %v1723, %v1799
        %1801 = vdwg.mxu0
        %1802 = vmatprep.subr.mxu0 %v1268
        %1803 = vmatpush1.msra.mxu0 %v1267
        %1804 = vmatprep.subr.mxu0 %v1272
        %1805 = vmatpush1.msra.mxu0 %v1271
        %1806 = vmatprep.subr.mxu0 %v1276
        %1807 = vmatpush1.msra.mxu0 %v1275
        %1808 = vmatprep.subr.mxu0 %v1280
        %1809 = vmatpush1.msra.mxu0 %v1279
        %1810 = vmatprep.subr.mxu0 %v1284
        %1811 = vmatpush1.msra.mxu0 %v1283
        %1812 = vmatprep.subr.mxu0 %v1288
        %1813 = vmatpush1.msra.mxu0 %v1287
        %1814 = vmatprep.subr.mxu0 %v1292
        %1815 = vmatpush1.msra.mxu0 %v1291
        %1816 = vmatprep.subr.mxu0 %v1296
        %1817 = vmatpush1.msra.mxu0 %v1295
        %1818 = vmatprep.subr.mxu0 %v1300
        %1819 = vmatpush1.msra.mxu0 %v1299
        %1820 = vmatprep.subr.mxu0 %v1304
        %1821 = vmatpush1.msra.mxu0 %v1303
        %1822 = vmatprep.subr.mxu0 %v1308
        %1823 = vmatpush1.msra.mxu0 %v1307
        %1824 = vmatprep.subr.mxu0 %v1312
        %1825 = vmatpush1.msra.mxu0 %v1311
        %1826 = vmatprep.subr.mxu0 %v1316
        %1827 = vmatpush1.msra.mxu0 %v1315
        %1828 = vmatprep.subr.mxu0 %v1320
        %1829 = vmatpush1.msra.mxu0 %v1319
        %1830 = vmatprep.subr.mxu0 %v1324
        %1831 = vmatpush1.msra.mxu0 %v1323
        %1832 = vmatprep.subr.mxu0 %v1328
        %1833 = vmatpush1.msra.mxu0 %v1327
        %1834 = vmatprep.subr.mxu0 %v1332
        %1835 = vmatpush1.msra.mxu0 %v1331
        %1836 = vmatprep.subr.mxu0 %v1336
        %1837 = vmatpush1.msra.mxu0 %v1335
        %1838 = vmatprep.subr.mxu0 %v1340
        %1839 = vmatpush1.msra.mxu0 %v1339
        %1840 = vmatprep.subr.mxu0 %v1344
        %1841 = vmatpush1.msra.mxu0 %v1343
        %1842 = vmatprep.subr.mxu0 %v1348
        %1843 = vmatpush1.msra.mxu0 %v1347
        %1844 = vmatprep.subr.mxu0 %v1352
        %1845 = vmatpush1.msra.mxu0 %v1351
        %1846 = vmatprep.subr.mxu0 %v1356
        %1847 = vmatpush1.msra.mxu0 %v1355
        %1848 = vmatprep.subr.mxu0 %v1360
        %1849 = vmatpush1.msra.mxu0 %v1359
        %1850 = vmatprep.subr.mxu0 %v1364
        %1851 = vmatpush1.msra.mxu0 %v1363
        %1852 = vmatprep.subr.mxu0 %v1368
        %1853 = vmatpush1.msra.mxu0 %v1367
        %1854 = vmatprep.subr.mxu0 %v1372
        %1855 = vmatpush1.msra.mxu0 %v1371
        %1856 = vmatprep.subr.mxu0 %v1376
        %1857 = vmatpush1.msra.mxu0 %v1375
        %1858 = vmatprep.subr.mxu0 %v1380
        %1859 = vmatpush1.msra.mxu0 %v1379
        %1860 = vmatprep.subr.mxu0 %v1384
        %1861 = vmatpush1.msra.mxu0 %v1383
        %1862 = vmatprep.subr.mxu0 %v1388
        %1863 = vmatpush1.msra.mxu0 %v1387
        %1864 = vmatprep.subr.mxu0 %v1392
        %1865 = vmatpush1.msra.mxu0 %v1391
        %1866 = vmatprep.mubr.f32.mxu0 %v614
        %1867 = vmatmul.mubr.f32.gmra.mrb[0].mxu0 %v613
        %v1868 = vpop.f32.mrb[0].mxu0
        %v1869 = vadd.f32 %v1792, %v1868
        %v1870 = vpop.f32.mrb[0].mxu0
        %v1871 = vadd.f32 %v1794, %v1870
        %1872 = vmatprep.mubr.f32.mxu0 %v626
        %1873 = vmatmul.mubr.f32.gmra.mrb[0].mxu0 %v625
        %v1874 = vpop.f32.mrb[0].mxu0
        %v1875 = vadd.f32 %v1798, %v1874
        %v1876 = vpop.f32.mrb[0].mxu0
        %v1877 = vadd.f32 %v1800, %v1876
        %1878 = vdwg.mxu0
        %1879 = vmatprep.subr.mxu0 %v630
        %1880 = vmatpush1.msra.mxu0 %v629
        %1881 = vmatprep.subr.mxu0 %v634
        %1882 = vmatpush1.msra.mxu0 %v633
        %1883 = vmatprep.subr.mxu0 %v638
        %1884 = vmatpush1.msra.mxu0 %v637
        %1885 = vmatprep.subr.mxu0 %v642
        %1886 = vmatpush1.msra.mxu0 %v641
        %1887 = vmatprep.subr.mxu0 %v646
        %1888 = vmatpush1.msra.mxu0 %v645
        %1889 = vmatprep.subr.mxu0 %v650
        %1890 = vmatpush1.msra.mxu0 %v649
        %1891 = vmatprep.subr.mxu0 %v654
        %1892 = vmatpush1.msra.mxu0 %v653
        %1893 = vmatprep.subr.mxu0 %v658
        %1894 = vmatpush1.msra.mxu0 %v657
        %1895 = vmatprep.subr.mxu0 %v662
        %1896 = vmatpush1.msra.mxu0 %v661
        %1897 = vmatprep.subr.mxu0 %v666
        %1898 = vmatpush1.msra.mxu0 %v665
        %1899 = vmatprep.subr.mxu0 %v670
        %1900 = vmatpush1.msra.mxu0 %v669
        %1901 = vmatprep.subr.mxu0 %v674
        %1902 = vmatpush1.msra.mxu0 %v673
        %1903 = vmatprep.subr.mxu0 %v678
        %1904 = vmatpush1.msra.mxu0 %v677
        %1905 = vmatprep.subr.mxu0 %v682
        %1906 = vmatpush1.msra.mxu0 %v681
        %1907 = vmatprep.subr.mxu0 %v686
        %1908 = vmatpush1.msra.mxu0 %v685
        %1909 = vmatprep.subr.mxu0 %v690
        %1910 = vmatpush1.msra.mxu0 %v689
        %1911 = vmatprep.subr.mxu0 %v694
        %1912 = vmatpush1.msra.mxu0 %v693
        %1913 = vmatprep.subr.mxu0 %v698
        %1914 = vmatpush1.msra.mxu0 %v697
        %1915 = vmatprep.subr.mxu0 %v702
        %1916 = vmatpush1.msra.mxu0 %v701
        %1917 = vmatprep.subr.mxu0 %v706
        %1918 = vmatpush1.msra.mxu0 %v705
        %1919 = vmatprep.subr.mxu0 %v710
        %1920 = vmatpush1.msra.mxu0 %v709
        %1921 = vmatprep.subr.mxu0 %v714
        %1922 = vmatpush1.msra.mxu0 %v713
        %1923 = vmatprep.subr.mxu0 %v718
        %1924 = vmatpush1.msra.mxu0 %v717
        %1925 = vmatprep.subr.mxu0 %v722
        %1926 = vmatpush1.msra.mxu0 %v721
        %1927 = vmatprep.subr.mxu0 %v726
        %1928 = vmatpush1.msra.mxu0 %v725
        %1929 = vmatprep.subr.mxu0 %v730
        %1930 = vmatpush1.msra.mxu0 %v729
        %1931 = vmatprep.subr.mxu0 %v734
        %1932 = vmatpush1.msra.mxu0 %v733
        %1933 = vmatprep.subr.mxu0 %v738
        %1934 = vmatpush1.msra.mxu0 %v737
        %1935 = vmatprep.subr.mxu0 %v742
        %1936 = vmatpush1.msra.mxu0 %v741
        %1937 = vmatprep.subr.mxu0 %v746
        %1938 = vmatpush1.msra.mxu0 %v745
        %1939 = vmatprep.subr.mxu0 %v750
        %1940 = vmatpush1.msra.mxu0 %v749
        %1941 = vmatprep.subr.mxu0 %v754
        %1942 = vmatpush1.msra.mxu0 %v753
        %1943 = vmatprep.mubr.f32.mxu0 %v604
        %1944 = vmatmul.mubr.f32.gmra.mrb[0].mxu0 %v603
        %v1945 = vpop.f32.mrb[0].mxu0
        %v1946 = vadd.f32 %v1408, %v1945
        %v1947 = vpop.f32.mrb[0].mxu0
        %v1948 = vadd.f32 %v1412, %v1947
        %1949 = vmatprep.mubr.f32.mxu0 %v616
        %1950 = vmatmul.mubr.f32.gmra.mrb[0].mxu0 %v615
        %v1951 = vpop.f32.mrb[0].mxu0
        %v1952 = vadd.f32 %v1408, %v1951
        %v1953 = vpop.f32.mrb[0].mxu0
        %v1954 = vadd.f32 %v1412, %v1953
        %1955 = vdwg.mxu0
        %1956 = vmatprep.subr.mxu0 %v758
        %1957 = vmatpush1.msra.mxu0 %v757
        %1958 = vmatprep.subr.mxu0 %v762
        %1959 = vmatpush1.msra.mxu0 %v761
        %1960 = vmatprep.subr.mxu0 %v766
        %1961 = vmatpush1.msra.mxu0 %v765
        %1962 = vmatprep.subr.mxu0 %v770
        %1963 = vmatpush1.msra.mxu0 %v769
        %1964 = vmatprep.subr.mxu0 %v774
        %1965 = vmatpush1.msra.mxu0 %v773
        %1966 = vmatprep.subr.mxu0 %v778
        %1967 = vmatpush1.msra.mxu0 %v777
        %1968 = vmatprep.subr.mxu0 %v782
        %1969 = vmatpush1.msra.mxu0 %v781
        %1970 = vmatprep.subr.mxu0 %v786
        %1971 = vmatpush1.msra.mxu0 %v785
        %1972 = vmatprep.subr.mxu0 %v790
        %1973 = vmatpush1.msra.mxu0 %v789
        %1974 = vmatprep.subr.mxu0 %v794
        %1975 = vmatpush1.msra.mxu0 %v793
        %1976 = vmatprep.subr.mxu0 %v798
        %1977 = vmatpush1.msra.mxu0 %v797
        %1978 = vmatprep.subr.mxu0 %v802
        %1979 = vmatpush1.msra.mxu0 %v801
        %1980 = vmatprep.subr.mxu0 %v806
        %1981 = vmatpush1.msra.mxu0 %v805
        %1982 = vmatprep.subr.mxu0 %v810
        %1983 = vmatpush1.msra.mxu0 %v809
        %1984 = vmatprep.subr.mxu0 %v814
        %1985 = vmatpush1.msra.mxu0 %v813
        %1986 = vmatprep.subr.mxu0 %v818
        %1987 = vmatpush1.msra.mxu0 %v817
        %1988 = vmatprep.subr.mxu0 %v822
        %1989 = vmatpush1.msra.mxu0 %v821
        %1990 = vmatprep.subr.mxu0 %v826
        %1991 = vmatpush1.msra.mxu0 %v825
        %1992 = vmatprep.subr.mxu0 %v830
        %1993 = vmatpush1.msra.mxu0 %v829
        %1994 = vmatprep.subr.mxu0 %v834
        %1995 = vmatpush1.msra.mxu0 %v833
        %1996 = vmatprep.subr.mxu0 %v838
        %1997 = vmatpush1.msra.mxu0 %v837
        %1998 = vmatprep.subr.mxu0 %v842
        %1999 = vmatpush1.msra.mxu0 %v841
        %2000 = vmatprep.subr.mxu0 %v846
        %2001 = vmatpush1.msra.mxu0 %v845
        %2002 = vmatprep.subr.mxu0 %v850
        %2003 = vmatpush1.msra.mxu0 %v849
        %2004 = vmatprep.subr.mxu0 %v854
        %2005 = vmatpush1.msra.mxu0 %v853
        %2006 = vmatprep.subr.mxu0 %v858
        %2007 = vmatpush1.msra.mxu0 %v857
        %2008 = vmatprep.subr.mxu0 %v862
        %2009 = vmatpush1.msra.mxu0 %v861
        %2010 = vmatprep.subr.mxu0 %v866
        %2011 = vmatpush1.msra.mxu0 %v865
        %2012 = vmatprep.subr.mxu0 %v870
        %2013 = vmatpush1.msra.mxu0 %v869
        %2014 = vmatprep.subr.mxu0 %v874
        %2015 = vmatpush1.msra.mxu0 %v873
        %2016 = vmatprep.subr.mxu0 %v878
        %2017 = vmatpush1.msra.mxu0 %v877
        %2018 = vmatprep.subr.mxu0 %v882
        %2019 = vmatpush1.msra.mxu0 %v881
        %2020 = vmatprep.mubr.f32.mxu0 %v606
        %2021 = vmatmul.mubr.f32.gmra.mrb[0].mxu0 %v605
        %v2022 = vpop.f32.mrb[0].mxu0
        %v2023 = vadd.f32 %v1946, %v2022
        %v2024 = vpop.f32.mrb[0].mxu0
        %v2025 = vadd.f32 %v1948, %v2024
        %2026 = vmatprep.mubr.f32.mxu0 %v618
        %2027 = vmatmul.mubr.f32.gmra.mrb[0].mxu0 %v617
        %v2028 = vpop.f32.mrb[0].mxu0
        %v2029 = vadd.f32 %v1952, %v2028
        %v2030 = vpop.f32.mrb[0].mxu0
        %v2031 = vadd.f32 %v1954, %v2030
        %2032 = vdwg.mxu0
        %2033 = vmatprep.subr.mxu0 %v886
        %2034 = vmatpush1.msra.mxu0 %v885
        %2035 = vmatprep.subr.mxu0 %v890
        %2036 = vmatpush1.msra.mxu0 %v889
        %2037 = vmatprep.subr.mxu0 %v894
        %2038 = vmatpush1.msra.mxu0 %v893
        %2039 = vmatprep.subr.mxu0 %v898
        %2040 = vmatpush1.msra.mxu0 %v897
        %2041 = vmatprep.subr.mxu0 %v902
        %2042 = vmatpush1.msra.mxu0 %v901
        %2043 = vmatprep.subr.mxu0 %v906
        %2044 = vmatpush1.msra.mxu0 %v905
        %2045 = vmatprep.subr.mxu0 %v910
        %2046 = vmatpush1.msra.mxu0 %v909
        %2047 = vmatprep.subr.mxu0 %v914
        %2048 = vmatpush1.msra.mxu0 %v913
        %2049 = vmatprep.subr.mxu0 %v918
        %2050 = vmatpush1.msra.mxu0 %v917
        %2051 = vmatprep.subr.mxu0 %v922
        %2052 = vmatpush1.msra.mxu0 %v921
        %2053 = vmatprep.subr.mxu0 %v926
        %2054 = vmatpush1.msra.mxu0 %v925
        %2055 = vmatprep.subr.mxu0 %v930
        %2056 = vmatpush1.msra.mxu0 %v929
        %2057 = vmatprep.subr.mxu0 %v934
        %2058 = vmatpush1.msra.mxu0 %v933
        %2059 = vmatprep.subr.mxu0 %v938
        %2060 = vmatpush1.msra.mxu0 %v937
        %2061 = vmatprep.subr.mxu0 %v942
        %2062 = vmatpush1.msra.mxu0 %v941
        %2063 = vmatprep.subr.mxu0 %v946
        %2064 = vmatpush1.msra.mxu0 %v945
        %2065 = vmatprep.subr.mxu0 %v950
        %2066 = vmatpush1.msra.mxu0 %v949
        %2067 = vmatprep.subr.mxu0 %v954
        %2068 = vmatpush1.msra.mxu0 %v953
        %2069 = vmatprep.subr.mxu0 %v958
        %2070 = vmatpush1.msra.mxu0 %v957
        %2071 = vmatprep.subr.mxu0 %v962
        %2072 = vmatpush1.msra.mxu0 %v961
        %2073 = vmatprep.subr.mxu0 %v966
        %2074 = vmatpush1.msra.mxu0 %v965
        %2075 = vmatprep.subr.mxu0 %v970
        %2076 = vmatpush1.msra.mxu0 %v969
        %2077 = vmatprep.subr.mxu0 %v974
        %2078 = vmatpush1.msra.mxu0 %v973
        %2079 = vmatprep.subr.mxu0 %v978
        %2080 = vmatpush1.msra.mxu0 %v977
        %2081 = vmatprep.subr.mxu0 %v982
        %2082 = vmatpush1.msra.mxu0 %v981
        %2083 = vmatprep.subr.mxu0 %v986
        %2084 = vmatpush1.msra.mxu0 %v985
        %2085 = vmatprep.subr.mxu0 %v990
        %2086 = vmatpush1.msra.mxu0 %v989
        %2087 = vmatprep.subr.mxu0 %v994
        %2088 = vmatpush1.msra.mxu0 %v993
        %2089 = vmatprep.subr.mxu0 %v998
        %2090 = vmatpush1.msra.mxu0 %v997
        %2091 = vmatprep.subr.mxu0 %v1002
        %2092 = vmatpush1.msra.mxu0 %v1001
        %2093 = vmatprep.subr.mxu0 %v1006
        %2094 = vmatpush1.msra.mxu0 %v1005
        %2095 = vmatprep.subr.mxu0 %v1010
        %2096 = vmatpush1.msra.mxu0 %v1009
        %2097 = vmatprep.mubr.f32.mxu0 %v608
        %2098 = vmatmul.mubr.f32.gmra.mrb[0].mxu0 %v607
        %v2099 = vpop.f32.mrb[0].mxu0
        %v2100 = vadd.f32 %v2023, %v2099
        %v2101 = vpop.f32.mrb[0].mxu0
        %v2102 = vadd.f32 %v2025, %v2101
        %2103 = vmatprep.mubr.f32.mxu0 %v620
        %2104 = vmatmul.mubr.f32.gmra.mrb[0].mxu0 %v619
        %v2105 = vpop.f32.mrb[0].mxu0
        %v2106 = vadd.f32 %v2029, %v2105
        %v2107 = vpop.f32.mrb[0].mxu0
        %v2108 = vadd.f32 %v2031, %v2107
        %2109 = vdwg.mxu0
        %2110 = vmatprep.subr.mxu0 %v1014
        %2111 = vmatpush1.msra.mxu0 %v1013
        %2112 = vmatprep.subr.mxu0 %v1018
        %2113 = vmatpush1.msra.mxu0 %v1017
        %2114 = vmatprep.subr.mxu0 %v1022
        %2115 = vmatpush1.msra.mxu0 %v1021
        %2116 = vmatprep.subr.mxu0 %v1026
        %2117 = vmatpush1.msra.mxu0 %v1025
        %2118 = vmatprep.subr.mxu0 %v1030
        %2119 = vmatpush1.msra.mxu0 %v1029
        %2120 = vmatprep.subr.mxu0 %v1034
        %2121 = vmatpush1.msra.mxu0 %v1033
        %2122 = vmatprep.subr.mxu0 %v1038
        %2123 = vmatpush1.msra.mxu0 %v1037
        %2124 = vmatprep.subr.mxu0 %v1042
        %2125 = vmatpush1.msra.mxu0 %v1041
        %2126 = vmatprep.subr.mxu0 %v1046
        %2127 = vmatpush1.msra.mxu0 %v1045
        %2128 = vmatprep.subr.mxu0 %v1050
        %2129 = vmatpush1.msra.mxu0 %v1049
        %2130 = vmatprep.subr.mxu0 %v1054
        %2131 = vmatpush1.msra.mxu0 %v1053
        %2132 = vmatprep.subr.mxu0 %v1058
        %2133 = vmatpush1.msra.mxu0 %v1057
        %2134 = vmatprep.subr.mxu0 %v1062
        %2135 = vmatpush1.msra.mxu0 %v1061
        %2136 = vmatprep.subr.mxu0 %v1066
        %2137 = vmatpush1.msra.mxu0 %v1065
        %2138 = vmatprep.subr.mxu0 %v1070
        %2139 = vmatpush1.msra.mxu0 %v1069
        %2140 = vmatprep.subr.mxu0 %v1074
        %2141 = vmatpush1.msra.mxu0 %v1073
        %2142 = vmatprep.subr.mxu0 %v1078
        %2143 = vmatpush1.msra.mxu0 %v1077
        %2144 = vmatprep.subr.mxu0 %v1082
        %2145 = vmatpush1.msra.mxu0 %v1081
        %2146 = vmatprep.subr.mxu0 %v1086
        %2147 = vmatpush1.msra.mxu0 %v1085
        %2148 = vmatprep.subr.mxu0 %v1090
        %2149 = vmatpush1.msra.mxu0 %v1089
        %2150 = vmatprep.subr.mxu0 %v1094
        %2151 = vmatpush1.msra.mxu0 %v1093
        %2152 = vmatprep.subr.mxu0 %v1098
        %2153 = vmatpush1.msra.mxu0 %v1097
        %2154 = vmatprep.subr.mxu0 %v1102
        %2155 = vmatpush1.msra.mxu0 %v1101
        %2156 = vmatprep.subr.mxu0 %v1106
        %2157 = vmatpush1.msra.mxu0 %v1105
        %2158 = vmatprep.subr.mxu0 %v1110
        %2159 = vmatpush1.msra.mxu0 %v1109
        %2160 = vmatprep.subr.mxu0 %v1114
        %2161 = vmatpush1.msra.mxu0 %v1113
        %2162 = vmatprep.subr.mxu0 %v1118
        %2163 = vmatpush1.msra.mxu0 %v1117
        %2164 = vmatprep.subr.mxu0 %v1122
        %2165 = vmatpush1.msra.mxu0 %v1121
        %2166 = vmatprep.subr.mxu0 %v1126
        %2167 = vmatpush1.msra.mxu0 %v1125
        %2168 = vmatprep.subr.mxu0 %v1130
        %2169 = vmatpush1.msra.mxu0 %v1129
        %2170 = vmatprep.subr.mxu0 %v1134
        %2171 = vmatpush1.msra.mxu0 %v1133
        %2172 = vmatprep.subr.mxu0 %v1138
        %2173 = vmatpush1.msra.mxu0 %v1137
        %2174 = vmatprep.mubr.f32.mxu0 %v610
        %2175 = vmatmul.mubr.f32.gmra.mrb[0].mxu0 %v609
        %v2176 = vpop.f32.mrb[0].mxu0
        %v2177 = vadd.f32 %v2100, %v2176
        %v2178 = vpop.f32.mrb[0].mxu0
        %v2179 = vadd.f32 %v2102, %v2178
        %2180 = vmatprep.mubr.f32.mxu0 %v622
        %2181 = vmatmul.mubr.f32.gmra.mrb[0].mxu0 %v621
        %v2182 = vpop.f32.mrb[0].mxu0
        %v2183 = vadd.f32 %v2106, %v2182
        %v2184 = vpop.f32.mrb[0].mxu0
        %v2185 = vadd.f32 %v2108, %v2184
        %2186 = vdwg.mxu0
        %2187 = vmatprep.subr.mxu0 %v1142
        %2188 = vmatpush1.msra.mxu0 %v1141
        %2189 = vmatprep.subr.mxu0 %v1146
        %2190 = vmatpush1.msra.mxu0 %v1145
        %2191 = vmatprep.subr.mxu0 %v1150
        %2192 = vmatpush1.msra.mxu0 %v1149
        %2193 = vmatprep.subr.mxu0 %v1154
        %2194 = vmatpush1.msra.mxu0 %v1153
        %2195 = vmatprep.subr.mxu0 %v1158
        %2196 = vmatpush1.msra.mxu0 %v1157
        %2197 = vmatprep.subr.mxu0 %v1162
        %2198 = vmatpush1.msra.mxu0 %v1161
        %2199 = vmatprep.subr.mxu0 %v1166
        %2200 = vmatpush1.msra.mxu0 %v1165
        %2201 = vmatprep.subr.mxu0 %v1170
        %2202 = vmatpush1.msra.mxu0 %v1169
        %2203 = vmatprep.subr.mxu0 %v1174
        %2204 = vmatpush1.msra.mxu0 %v1173
        %2205 = vmatprep.subr.mxu0 %v1178
        %2206 = vmatpush1.msra.mxu0 %v1177
        %2207 = vmatprep.subr.mxu0 %v1182
        %2208 = vmatpush1.msra.mxu0 %v1181
        %2209 = vmatprep.subr.mxu0 %v1186
        %2210 = vmatpush1.msra.mxu0 %v1185
        %2211 = vmatprep.subr.mxu0 %v1190
        %2212 = vmatpush1.msra.mxu0 %v1189
        %2213 = vmatprep.subr.mxu0 %v1194
        %2214 = vmatpush1.msra.mxu0 %v1193
        %2215 = vmatprep.subr.mxu0 %v1198
        %2216 = vmatpush1.msra.mxu0 %v1197
        %2217 = vmatprep.subr.mxu0 %v1202
        %2218 = vmatpush1.msra.mxu0 %v1201
        %2219 = vmatprep.subr.mxu0 %v1206
        %2220 = vmatpush1.msra.mxu0 %v1205
        %2221 = vmatprep.subr.mxu0 %v1210
        %2222 = vmatpush1.msra.mxu0 %v1209
        %2223 = vmatprep.subr.mxu0 %v1214
        %2224 = vmatpush1.msra.mxu0 %v1213
        %2225 = vmatprep.subr.mxu0 %v1218
        %2226 = vmatpush1.msra.mxu0 %v1217
        %2227 = vmatprep.subr.mxu0 %v1222
        %2228 = vmatpush1.msra.mxu0 %v1221
        %2229 = vmatprep.subr.mxu0 %v1226
        %2230 = vmatpush1.msra.mxu0 %v1225
        %2231 = vmatprep.subr.mxu0 %v1230
        %2232 = vmatpush1.msra.mxu0 %v1229
        %2233 = vmatprep.subr.mxu0 %v1234
        %2234 = vmatpush1.msra.mxu0 %v1233
        %2235 = vmatprep.subr.mxu0 %v1238
        %2236 = vmatpush1.msra.mxu0 %v1237
        %2237 = vmatprep.subr.mxu0 %v1242
        %2238 = vmatpush1.msra.mxu0 %v1241
        %2239 = vmatprep.subr.mxu0 %v1246
        %2240 = vmatpush1.msra.mxu0 %v1245
        %2241 = vmatprep.subr.mxu0 %v1250
        %2242 = vmatpush1.msra.mxu0 %v1249
        %2243 = vmatprep.subr.mxu0 %v1254
        %2244 = vmatpush1.msra.mxu0 %v1253
        %2245 = vmatprep.subr.mxu0 %v1258
        %2246 = vmatpush1.msra.mxu0 %v1257
        %2247 = vmatprep.subr.mxu0 %v1262
        %2248 = vmatpush1.msra.mxu0 %v1261
        %2249 = vmatprep.subr.mxu0 %v1266
        %2250 = vmatpush1.msra.mxu0 %v1265
        %2251 = vmatprep.mubr.f32.mxu0 %v612
        %2252 = vmatmul.mubr.f32.gmra.mrb[0].mxu0 %v611
        %v2253 = vpop.f32.mrb[0].mxu0
        %v2254 = vadd.f32 %v2177, %v2253
        %v2255 = vpop.f32.mrb[0].mxu0
        %v2256 = vadd.f32 %v2179, %v2255
        %2257 = vmatprep.mubr.f32.mxu0 %v624
        %2258 = vmatmul.mubr.f32.gmra.mrb[0].mxu0 %v623
        %v2259 = vpop.f32.mrb[0].mxu0
        %v2260 = vadd.f32 %v2183, %v2259
        %v2261 = vpop.f32.mrb[0].mxu0
        %v2262 = vadd.f32 %v2185, %v2261
        %2263 = vdwg.mxu0
        %2264 = vmatprep.subr.mxu0 %v1270
        %2265 = vmatpush1.msra.mxu0 %v1269
        %2266 = vmatprep.subr.mxu0 %v1274
        %2267 = vmatpush1.msra.mxu0 %v1273
        %2268 = vmatprep.subr.mxu0 %v1278
        %2269 = vmatpush1.msra.mxu0 %v1277
        %2270 = vmatprep.subr.mxu0 %v1282
        %2271 = vmatpush1.msra.mxu0 %v1281
        %2272 = vmatprep.subr.mxu0 %v1286
        %2273 = vmatpush1.msra.mxu0 %v1285
        %2274 = vmatprep.subr.mxu0 %v1290
        %2275 = vmatpush1.msra.mxu0 %v1289
        %2276 = vmatprep.subr.mxu0 %v1294
        %2277 = vmatpush1.msra.mxu0 %v1293
        %2278 = vmatprep.subr.mxu0 %v1298
        %2279 = vmatpush1.msra.mxu0 %v1297
        %2280 = vmatprep.subr.mxu0 %v1302
        %2281 = vmatpush1.msra.mxu0 %v1301
        %2282 = vmatprep.subr.mxu0 %v1306
        %2283 = vmatpush1.msra.mxu0 %v1305
        %2284 = vmatprep.subr.mxu0 %v1310
        %2285 = vmatpush1.msra.mxu0 %v1309
        %2286 = vmatprep.subr.mxu0 %v1314
        %2287 = vmatpush1.msra.mxu0 %v1313
        %2288 = vmatprep.subr.mxu0 %v1318
        %2289 = vmatpush1.msra.mxu0 %v1317
        %2290 = vmatprep.subr.mxu0 %v1322
        %2291 = vmatpush1.msra.mxu0 %v1321
        %2292 = vmatprep.subr.mxu0 %v1326
        %2293 = vmatpush1.msra.mxu0 %v1325
        %2294 = vmatprep.subr.mxu0 %v1330
        %2295 = vmatpush1.msra.mxu0 %v1329
        %2296 = vmatprep.subr.mxu0 %v1334
        %2297 = vmatpush1.msra.mxu0 %v1333
        %2298 = vmatprep.subr.mxu0 %v1338
        %2299 = vmatpush1.msra.mxu0 %v1337
        %2300 = vmatprep.subr.mxu0 %v1342
        %2301 = vmatpush1.msra.mxu0 %v1341
        %2302 = vmatprep.subr.mxu0 %v1346
        %2303 = vmatpush1.msra.mxu0 %v1345
        %2304 = vmatprep.subr.mxu0 %v1350
        %2305 = vmatpush1.msra.mxu0 %v1349
        %2306 = vmatprep.subr.mxu0 %v1354
        %2307 = vmatpush1.msra.mxu0 %v1353
        %2308 = vmatprep.subr.mxu0 %v1358
        %2309 = vmatpush1.msra.mxu0 %v1357
        %2310 = vmatprep.subr.mxu0 %v1362
        %2311 = vmatpush1.msra.mxu0 %v1361
        %2312 = vmatprep.subr.mxu0 %v1366
        %2313 = vmatpush1.msra.mxu0 %v1365
        %2314 = vmatprep.subr.mxu0 %v1370
        %2315 = vmatpush1.msra.mxu0 %v1369
        %2316 = vmatprep.subr.mxu0 %v1374
        %2317 = vmatpush1.msra.mxu0 %v1373
        %2318 = vmatprep.subr.mxu0 %v1378
        %2319 = vmatpush1.msra.mxu0 %v1377
        %2320 = vmatprep.subr.mxu0 %v1382
        %2321 = vmatpush1.msra.mxu0 %v1381
        %2322 = vmatprep.subr.mxu0 %v1386
        %2323 = vmatpush1.msra.mxu0 %v1385
        %2324 = vmatprep.subr.mxu0 %v1390
        %2325 = vmatpush1.msra.mxu0 %v1389
        %2326 = vmatprep.subr.mxu0 %v1394
        %2327 = vmatpush1.msra.mxu0 %v1393
        %2328 = vmatprep.mubr.f32.mxu0 %v614
        %2329 = vmatmul.mubr.f32.gmra.mrb[0].mxu0 %v613
        %v2330 = vpop.f32.mrb[0].mxu0
        %v2331 = vadd.f32 %v2254, %v2330
        %v2332 = vpop.f32.mrb[0].mxu0
        %v2333 = vadd.f32 %v2256, %v2332
        %2334 = vmatprep.mubr.f32.mxu0 %v626
        %2335 = vmatmul.mubr.f32.gmra.mrb[0].mxu0 %v625
        %v2336 = vpop.f32.mrb[0].mxu0
        %v2337 = vadd.f32 %v2260, %v2336
        %v2338 = vpop.f32.mrb[0].mxu0
        %v2339 = vadd.f32 %v2262, %v2338
        %2340 = vdwg.mxu0
        %v2341 = vmul.f32 %v1869, 0.2
        %v2342 = vmul.f32 %v1871, 0.2
        %v2343 = vmul.f32 %v2331, 0.2
        %v2344 = vmul.f32 %v2333, 0.2
        %v2345 = vmul.f32 %v1875, 0.2
        %v2346 = vmul.f32 %v1877, 0.2
        %v2347 = vmul.f32 %v2337, 0.2
        %v2348 = vmul.f32 %v2339, 0.2
        %v2349 = vmax.f32 %v1869, %v2341
        %v2350 = vmax.f32 %v1871, %v2342
        %v2351 = vmax.f32 %v2331, %v2343
        %v2352 = vmax.f32 %v2333, %v2344
        %v2353 = vmax.f32 %v1875, %v2345
        %v2354 = vmax.f32 %v1877, %v2346
        %v2355 = vmax.f32 %v2337, %v2347
        %v2356 = vmax.f32 %v2339, %v2348
        %v2365 = vrot.slane %v2349, 7
        %v2366 = vrot.slane %v2350, 7
        %v2367 = vrot.slane %v2351, 7
        %v2368 = vrot.slane %v2352, 7
        %v2369 = vrot.slane %v2353, 7
        %v2370 = vsel %vm501, %v2365, %v2369
        %v2371 = vrot.slane %v2354, 7
        %v2372 = vsel %vm501, %v2366, %v2371
        %v2373 = vrot.slane %v2355, 7
        %v2374 = vsel %vm501, %v2367, %v2373
        %v2375 = vrot.slane %v2356, 7
        %v2376 = vsel %vm501, %v2368, %v2375
        %v2385 = vsel %vm501, 0.0, %v2365
        %v2386 = vsel %vm501, 0.0, %v2366
        %v2387 = vsel %vm501, 0.0, %v2367
        %v2388 = vsel %vm501, 0.0, %v2368
        %v2389 = vsel %vm530, 0.0, %v2385
        %v2390 = vsel %vm530, 0.0, %v2386
        %v2391 = vsel %vm530, 0.0, %v2387
        %v2392 = vsel %vm530, 0.0, %v2388
        %v2393 = vsel %vm531, 0.0, %v2370
        %v2394 = vsel %vm531, 0.0, %v2372
        %v2395 = vsel %vm531, 0.0, %v2374
        %v2396 = vsel %vm531, 0.0, %v2376
        %v2397 = vrot.slane %v2349, 1
        %v2398 = vrot.slane %v2353, 1
        %v2399 = vsel %vm540, %v2397, %v2398
        %v2400 = vrot.slane %v2350, 1
        %v2401 = vrot.slane %v2354, 1
        %v2402 = vsel %vm540, %v2400, %v2401
        %v2403 = vrot.slane %v2351, 1
        %v2404 = vrot.slane %v2355, 1
        %v2405 = vsel %vm540, %v2403, %v2404
        %v2406 = vrot.slane %v2352, 1
        %v2407 = vrot.slane %v2356, 1
        %v2408 = vsel %vm540, %v2406, %v2407
        %v2417 = vsel %vm540, %v2398, 0.0
        %v2418 = vsel %vm540, %v2401, 0.0
        %v2419 = vsel %vm540, %v2404, 0.0
        %v2420 = vsel %vm540, %v2407, 0.0
        %v2421 = vsel %vm569, 0.0, %v2399
        %v2422 = vsel %vm569, 0.0, %v2402
        %v2423 = vsel %vm569, 0.0, %v2405
        %v2424 = vsel %vm569, 0.0, %v2408
        %v2425 = vsel %vm570, 0.0, %v2417
        %v2426 = vsel %vm570, 0.0, %v2418
        %v2427 = vsel %vm570, 0.0, %v2419
        %v2428 = vsel %vm570, 0.0, %v2420
        %2429 = vst [vmem:[#allocation2] sm:$0xff] %v2389
        %2430 = vst [vmem:[#allocation2 + $0x8] sm:$0xff] %v2390
        %2431 = vst [vmem:[#allocation2 + $0x10] sm:$0xff] %v2391
        %2432 = vst [vmem:[#allocation2 + $0x18] sm:$0xff] %v2392
        %2433 = vst [vmem:[#allocation2 + $0x60] sm:$0xff] %v2393
        %2434 = vst [vmem:[#allocation2 + $0x68] sm:$0xff] %v2394
        %2435 = vst [vmem:[#allocation2 + $0x70] sm:$0xff] %v2395
        %2436 = vst [vmem:[#allocation2 + $0x78] sm:$0xff] %v2396
        %2437 = vst [vmem:[#allocation2 + $0x20] sm:$0xff] %v2349
        %2438 = vst [vmem:[#allocation2 + $0x28] sm:$0xff] %v2350
        %2439 = vst [vmem:[#allocation2 + $0x30] sm:$0xff] %v2351
        %2440 = vst [vmem:[#allocation2 + $0x38] sm:$0xff] %v2352
        %2441 = vst [vmem:[#allocation2 + $0x80] sm:$0xff] %v2353
        %2442 = vst [vmem:[#allocation2 + $0x88] sm:$0xff] %v2354
        %2443 = vst [vmem:[#allocation2 + $0x90] sm:$0xff] %v2355
        %2444 = vst [vmem:[#allocation2 + $0x98] sm:$0xff] %v2356
        %2445 = vst [vmem:[#allocation2 + $0x40] sm:$0xff] %v2421
        %2446 = vst [vmem:[#allocation2 + $0x48] sm:$0xff] %v2422
        %2447 = vst [vmem:[#allocation2 + $0x50] sm:$0xff] %v2423
        %2448 = vst [vmem:[#allocation2 + $0x58] sm:$0xff] %v2424
        %2449 = vst [vmem:[#allocation2 + $0xa0] sm:$0xff] %v2425
        %2450 = vst [vmem:[#allocation2 + $0xa8] sm:$0xff] %v2426
        %2451 = vst [vmem:[#allocation2 + $0xb0] sm:$0xff] %v2427
        %2452 = vst [vmem:[#allocation2 + $0xb8] sm:$0xff] %v2428
        %v2453 = vld [vmem:[#allocation2] sm:$0xff]
        %v2454 = vld [vmem:[#allocation2 + $0x8] sm:$0xff]
        %v2455 = vld [vmem:[#allocation2 + $0x10] sm:$0xff]
        %v2456 = vld [vmem:[#allocation2 + $0x18] sm:$0xff]
        %v2457 = vld [vmem:[#allocation2 + $0x20] sm:$0xff]
        %v2458 = vld [vmem:[#allocation2 + $0x28] sm:$0xff]
        %v2459 = vld [vmem:[#allocation2 + $0x30] sm:$0xff]
        %v2460 = vld [vmem:[#allocation2 + $0x38] sm:$0xff]
        %v2461 = vld [vmem:[#allocation2 + $0x40] sm:$0xff]
        %v2462 = vld [vmem:[#allocation2 + $0x48] sm:$0xff]
        %v2463 = vld [vmem:[#allocation2 + $0x50] sm:$0xff]
        %v2464 = vld [vmem:[#allocation2 + $0x58] sm:$0xff]
        %v2465 = vld [vmem:[#allocation2 + $0x60] sm:$0xff]
        %v2466 = vld [vmem:[#allocation2 + $0x68] sm:$0xff]
        %v2467 = vld [vmem:[#allocation2 + $0x70] sm:$0xff]
        %v2468 = vld [vmem:[#allocation2 + $0x78] sm:$0xff]
        %v2469 = vld [vmem:[#allocation2 + $0x80] sm:$0xff]
        %v2470 = vld [vmem:[#allocation2 + $0x88] sm:$0xff]
        %v2471 = vld [vmem:[#allocation2 + $0x90] sm:$0xff]
        %v2472 = vld [vmem:[#allocation2 + $0x98] sm:$0xff]
        %v2473 = vld [vmem:[#allocation2 + $0xa0] sm:$0xff]
        %v2474 = vld [vmem:[#allocation2 + $0xa8] sm:$0xff]
        %v2475 = vld [vmem:[#allocation2 + $0xb0] sm:$0xff]
        %v2476 = vld [vmem:[#allocation2 + $0xb8] sm:$0xff]
        %v2477 = vld [vmem:[#allocation9] sm:$0xff]
        %v2478 = vld [vmem:[#allocation9 + $0x8] sm:$0xff]
        %v2479 = vld [vmem:[#allocation9 + $0x10] sm:$0xff]
        %v2480 = vld [vmem:[#allocation9 + $0x18] sm:$0xff]
        %v2481 = vld [vmem:[#allocation9 + $0x20] sm:$0xff]
        %v2482 = vld [vmem:[#allocation9 + $0x28] sm:$0xff]
        %v2483 = vld [vmem:[#allocation9 + $0x30] sm:$0xff]
        %v2484 = vld [vmem:[#allocation9 + $0x38] sm:$0xff]
        %v2485 = vld [vmem:[#allocation9 + $0x40] sm:$0xff]
        %v2486 = vld [vmem:[#allocation9 + $0x48] sm:$0xff]
        %v2487 = vld [vmem:[#allocation9 + $0x50] sm:$0xff]
        %v2488 = vld [vmem:[#allocation9 + $0x58] sm:$0xff]
        %v2489 = vld [vmem:[#allocation9 + $0x60] sm:$0xff]
        %v2490 = vld [vmem:[#allocation9 + $0x68] sm:$0xff]
        %v2491 = vld [vmem:[#allocation9 + $0x70] sm:$0xff]
        %v2492 = vld [vmem:[#allocation9 + $0x78] sm:$0xff]
        %v2493 = vld [vmem:[#allocation9 + $0x80] sm:$0xff]
        %v2494 = vld [vmem:[#allocation9 + $0x88] sm:$0xff]
        %v2495 = vld [vmem:[#allocation9 + $0x90] sm:$0xff]
        %v2496 = vld [vmem:[#allocation9 + $0x98] sm:$0xff]
        %v2497 = vld [vmem:[#allocation9 + $0xa0] sm:$0xff]
        %v2498 = vld [vmem:[#allocation9 + $0xa8] sm:$0xff]
        %v2499 = vld [vmem:[#allocation9 + $0xb0] sm:$0xff]
        %v2500 = vld [vmem:[#allocation9 + $0xb8] sm:$0xff]
        %v2501 = vld [vmem:[#allocation9 + $0xc0] sm:$0xff]
        %v2502 = vld [vmem:[#allocation9 + $0xc8] sm:$0xff]
        %v2503 = vld [vmem:[#allocation9 + $0xd0] sm:$0xff]
        %v2504 = vld [vmem:[#allocation9 + $0xd8] sm:$0xff]
        %v2505 = vld [vmem:[#allocation9 + $0xe0] sm:$0xff]
        %v2506 = vld [vmem:[#allocation9 + $0xe8] sm:$0xff]
        %v2507 = vld [vmem:[#allocation9 + $0xf0] sm:$0xff]
        %v2508 = vld [vmem:[#allocation9 + $0xf8] sm:$0xff]
        %v2509 = vld [vmem:[#allocation9 + $0x100] sm:$0xff]
        %v2510 = vld [vmem:[#allocation9 + $0x108] sm:$0xff]
        %v2511 = vld [vmem:[#allocation9 + $0x110] sm:$0xff]
        %v2512 = vld [vmem:[#allocation9 + $0x118] sm:$0xff]
        %v2513 = vld [vmem:[#allocation9 + $0x120] sm:$0xff]
        %v2514 = vld [vmem:[#allocation9 + $0x128] sm:$0xff]
        %v2515 = vld [vmem:[#allocation9 + $0x130] sm:$0xff]
        %v2516 = vld [vmem:[#allocation9 + $0x138] sm:$0xff]
        %v2517 = vld [vmem:[#allocation9 + $0x140] sm:$0xff]
        %v2518 = vld [vmem:[#allocation9 + $0x148] sm:$0xff]
        %v2519 = vld [vmem:[#allocation9 + $0x150] sm:$0xff]
        %v2520 = vld [vmem:[#allocation9 + $0x158] sm:$0xff]
        %v2521 = vld [vmem:[#allocation9 + $0x160] sm:$0xff]
        %v2522 = vld [vmem:[#allocation9 + $0x168] sm:$0xff]
        %v2523 = vld [vmem:[#allocation9 + $0x170] sm:$0xff]
        %v2524 = vld [vmem:[#allocation9 + $0x178] sm:$0xff]
        %v2525 = vld [vmem:[#allocation9 + $0x180] sm:$0xff]
        %v2526 = vld [vmem:[#allocation9 + $0x188] sm:$0xff]
        %v2527 = vld [vmem:[#allocation9 + $0x190] sm:$0xff]
        %v2528 = vld [vmem:[#allocation9 + $0x198] sm:$0xff]
        %v2529 = vld [vmem:[#allocation9 + $0x1a0] sm:$0xff]
        %v2530 = vld [vmem:[#allocation9 + $0x1a8] sm:$0xff]
        %v2531 = vld [vmem:[#allocation9 + $0x1b0] sm:$0xff]
        %v2532 = vld [vmem:[#allocation9 + $0x1b8] sm:$0xff]
        %v2533 = vld [vmem:[#allocation9 + $0x1c0] sm:$0xff]
        %v2534 = vld [vmem:[#allocation9 + $0x1c8] sm:$0xff]
        %v2535 = vld [vmem:[#allocation9 + $0x1d0] sm:$0xff]
        %v2536 = vld [vmem:[#allocation9 + $0x1d8] sm:$0xff]
        %v2537 = vld [vmem:[#allocation9 + $0x1e0] sm:$0xff]
        %v2538 = vld [vmem:[#allocation9 + $0x1e8] sm:$0xff]
        %v2539 = vld [vmem:[#allocation9 + $0x1f0] sm:$0xff]
        %v2540 = vld [vmem:[#allocation9 + $0x1f8] sm:$0xff]
        %v2541 = vld [vmem:[#allocation9 + $0x200] sm:$0xff]
        %v2542 = vld [vmem:[#allocation9 + $0x208] sm:$0xff]
        %v2543 = vld [vmem:[#allocation9 + $0x210] sm:$0xff]
        %v2544 = vld [vmem:[#allocation9 + $0x218] sm:$0xff]
        %v2545 = vld [vmem:[#allocation9 + $0x220] sm:$0xff]
        %v2546 = vld [vmem:[#allocation9 + $0x228] sm:$0xff]
        %v2547 = vld [vmem:[#allocation9 + $0x230] sm:$0xff]
        %v2548 = vld [vmem:[#allocation9 + $0x238] sm:$0xff]
        %v2549 = vld [vmem:[#allocation9 + $0x240] sm:$0xff]
        %v2550 = vld [vmem:[#allocation9 + $0x248] sm:$0xff]
        %v2551 = vld [vmem:[#allocation9 + $0x250] sm:$0xff]
        %v2552 = vld [vmem:[#allocation9 + $0x258] sm:$0xff]
        %v2553 = vld [vmem:[#allocation9 + $0x260] sm:$0xff]
        %v2554 = vld [vmem:[#allocation9 + $0x268] sm:$0xff]
        %v2555 = vld [vmem:[#allocation9 + $0x270] sm:$0xff]
        %v2556 = vld [vmem:[#allocation9 + $0x278] sm:$0xff]
        %v2557 = vld [vmem:[#allocation9 + $0x280] sm:$0xff]
        %v2558 = vld [vmem:[#allocation9 + $0x288] sm:$0xff]
        %v2559 = vld [vmem:[#allocation9 + $0x290] sm:$0xff]
        %v2560 = vld [vmem:[#allocation9 + $0x298] sm:$0xff]
        %v2561 = vld [vmem:[#allocation9 + $0x2a0] sm:$0xff]
        %v2562 = vld [vmem:[#allocation9 + $0x2a8] sm:$0xff]
        %v2563 = vld [vmem:[#allocation9 + $0x2b0] sm:$0xff]
        %v2564 = vld [vmem:[#allocation9 + $0x2b8] sm:$0xff]
        %v2565 = vld [vmem:[#allocation9 + $0x2c0] sm:$0xff]
        %v2566 = vld [vmem:[#allocation9 + $0x2c8] sm:$0xff]
        %v2567 = vld [vmem:[#allocation9 + $0x2d0] sm:$0xff]
        %v2568 = vld [vmem:[#allocation9 + $0x2d8] sm:$0xff]
        %v2569 = vld [vmem:[#allocation9 + $0x2e0] sm:$0xff]
        %v2570 = vld [vmem:[#allocation9 + $0x2e8] sm:$0xff]
        %v2571 = vld [vmem:[#allocation9 + $0x2f0] sm:$0xff]
        %v2572 = vld [vmem:[#allocation9 + $0x2f8] sm:$0xff]
        %v2573 = vld [vmem:[#allocation9 + $0x300] sm:$0xff]
        %v2574 = vld [vmem:[#allocation9 + $0x308] sm:$0xff]
        %v2575 = vld [vmem:[#allocation9 + $0x310] sm:$0xff]
        %v2576 = vld [vmem:[#allocation9 + $0x318] sm:$0xff]
        %v2577 = vld [vmem:[#allocation9 + $0x320] sm:$0xff]
        %v2578 = vld [vmem:[#allocation9 + $0x328] sm:$0xff]
        %v2579 = vld [vmem:[#allocation9 + $0x330] sm:$0xff]
        %v2580 = vld [vmem:[#allocation9 + $0x338] sm:$0xff]
        %v2581 = vld [vmem:[#allocation9 + $0x340] sm:$0xff]
        %v2582 = vld [vmem:[#allocation9 + $0x348] sm:$0xff]
        %v2583 = vld [vmem:[#allocation9 + $0x350] sm:$0xff]
        %v2584 = vld [vmem:[#allocation9 + $0x358] sm:$0xff]
        %v2585 = vld [vmem:[#allocation9 + $0x360] sm:$0xff]
        %v2586 = vld [vmem:[#allocation9 + $0x368] sm:$0xff]
        %v2587 = vld [vmem:[#allocation9 + $0x370] sm:$0xff]
        %v2588 = vld [vmem:[#allocation9 + $0x378] sm:$0xff]
        %v2589 = vld [vmem:[#allocation9 + $0x380] sm:$0xff]
        %v2590 = vld [vmem:[#allocation9 + $0x388] sm:$0xff]
        %v2591 = vld [vmem:[#allocation9 + $0x390] sm:$0xff]
        %v2592 = vld [vmem:[#allocation9 + $0x398] sm:$0xff]
        %v2593 = vld [vmem:[#allocation9 + $0x3a0] sm:$0xff]
        %v2594 = vld [vmem:[#allocation9 + $0x3a8] sm:$0xff]
        %v2595 = vld [vmem:[#allocation9 + $0x3b0] sm:$0xff]
        %v2596 = vld [vmem:[#allocation9 + $0x3b8] sm:$0xff]
        %v2597 = vld [vmem:[#allocation9 + $0x3c0] sm:$0xff]
        %v2598 = vld [vmem:[#allocation9 + $0x3c8] sm:$0xff]
        %v2599 = vld [vmem:[#allocation9 + $0x3d0] sm:$0xff]
        %v2600 = vld [vmem:[#allocation9 + $0x3d8] sm:$0xff]
        %v2601 = vld [vmem:[#allocation9 + $0x3e0] sm:$0xff]
        %v2602 = vld [vmem:[#allocation9 + $0x3e8] sm:$0xff]
        %v2603 = vld [vmem:[#allocation9 + $0x3f0] sm:$0xff]
        %v2604 = vld [vmem:[#allocation9 + $0x3f8] sm:$0xff]
        %v2605 = vld [vmem:[#allocation9 + $0x400] sm:$0xff]
        %v2606 = vld [vmem:[#allocation9 + $0x408] sm:$0xff]
        %v2607 = vld [vmem:[#allocation9 + $0x410] sm:$0xff]
        %v2608 = vld [vmem:[#allocation9 + $0x418] sm:$0xff]
        %v2609 = vld [vmem:[#allocation9 + $0x420] sm:$0xff]
        %v2610 = vld [vmem:[#allocation9 + $0x428] sm:$0xff]
        %v2611 = vld [vmem:[#allocation9 + $0x430] sm:$0xff]
        %v2612 = vld [vmem:[#allocation9 + $0x438] sm:$0xff]
        %v2613 = vld [vmem:[#allocation9 + $0x440] sm:$0xff]
        %v2614 = vld [vmem:[#allocation9 + $0x448] sm:$0xff]
        %v2615 = vld [vmem:[#allocation9 + $0x450] sm:$0xff]
        %v2616 = vld [vmem:[#allocation9 + $0x458] sm:$0xff]
        %v2617 = vld [vmem:[#allocation9 + $0x460] sm:$0xff]
        %v2618 = vld [vmem:[#allocation9 + $0x468] sm:$0xff]
        %v2619 = vld [vmem:[#allocation9 + $0x470] sm:$0xff]
        %v2620 = vld [vmem:[#allocation9 + $0x478] sm:$0xff]
        %v2621 = vld [vmem:[#allocation9 + $0x480] sm:$0xff]
        %v2622 = vld [vmem:[#allocation9 + $0x488] sm:$0xff]
        %v2623 = vld [vmem:[#allocation9 + $0x490] sm:$0xff]
        %v2624 = vld [vmem:[#allocation9 + $0x498] sm:$0xff]
        %v2625 = vld [vmem:[#allocation9 + $0x4a0] sm:$0xff]
        %v2626 = vld [vmem:[#allocation9 + $0x4a8] sm:$0xff]
        %v2627 = vld [vmem:[#allocation9 + $0x4b0] sm:$0xff]
        %v2628 = vld [vmem:[#allocation9 + $0x4b8] sm:$0xff]
        %v2629 = vld [vmem:[#allocation9 + $0x4c0] sm:$0xff]
        %v2630 = vld [vmem:[#allocation9 + $0x4c8] sm:$0xff]
        %v2631 = vld [vmem:[#allocation9 + $0x4d0] sm:$0xff]
        %v2632 = vld [vmem:[#allocation9 + $0x4d8] sm:$0xff]
        %v2633 = vld [vmem:[#allocation9 + $0x4e0] sm:$0xff]
        %v2634 = vld [vmem:[#allocation9 + $0x4e8] sm:$0xff]
        %v2635 = vld [vmem:[#allocation9 + $0x4f0] sm:$0xff]
        %v2636 = vld [vmem:[#allocation9 + $0x4f8] sm:$0xff]
        %v2637 = vld [vmem:[#allocation9 + $0x500] sm:$0xff]
        %v2638 = vld [vmem:[#allocation9 + $0x508] sm:$0xff]
        %v2639 = vld [vmem:[#allocation9 + $0x510] sm:$0xff]
        %v2640 = vld [vmem:[#allocation9 + $0x518] sm:$0xff]
        %v2641 = vld [vmem:[#allocation9 + $0x520] sm:$0xff]
        %v2642 = vld [vmem:[#allocation9 + $0x528] sm:$0xff]
        %v2643 = vld [vmem:[#allocation9 + $0x530] sm:$0xff]
        %v2644 = vld [vmem:[#allocation9 + $0x538] sm:$0xff]
        %v2645 = vld [vmem:[#allocation9 + $0x540] sm:$0xff]
        %v2646 = vld [vmem:[#allocation9 + $0x548] sm:$0xff]
        %v2647 = vld [vmem:[#allocation9 + $0x550] sm:$0xff]
        %v2648 = vld [vmem:[#allocation9 + $0x558] sm:$0xff]
        %v2649 = vld [vmem:[#allocation9 + $0x560] sm:$0xff]
        %v2650 = vld [vmem:[#allocation9 + $0x568] sm:$0xff]
        %v2651 = vld [vmem:[#allocation9 + $0x570] sm:$0xff]
        %v2652 = vld [vmem:[#allocation9 + $0x578] sm:$0xff]
        %v2653 = vld [vmem:[#allocation9 + $0x580] sm:$0xff]
        %v2654 = vld [vmem:[#allocation9 + $0x588] sm:$0xff]
        %v2655 = vld [vmem:[#allocation9 + $0x590] sm:$0xff]
        %v2656 = vld [vmem:[#allocation9 + $0x598] sm:$0xff]
        %v2657 = vld [vmem:[#allocation9 + $0x5a0] sm:$0xff]
        %v2658 = vld [vmem:[#allocation9 + $0x5a8] sm:$0xff]
        %v2659 = vld [vmem:[#allocation9 + $0x5b0] sm:$0xff]
        %v2660 = vld [vmem:[#allocation9 + $0x5b8] sm:$0xff]
        %v2661 = vld [vmem:[#allocation9 + $0x5c0] sm:$0xff]
        %v2662 = vld [vmem:[#allocation9 + $0x5c8] sm:$0xff]
        %v2663 = vld [vmem:[#allocation9 + $0x5d0] sm:$0xff]
        %v2664 = vld [vmem:[#allocation9 + $0x5d8] sm:$0xff]
        %v2665 = vld [vmem:[#allocation9 + $0x5e0] sm:$0xff]
        %v2666 = vld [vmem:[#allocation9 + $0x5e8] sm:$0xff]
        %v2667 = vld [vmem:[#allocation9 + $0x5f0] sm:$0xff]
        %v2668 = vld [vmem:[#allocation9 + $0x5f8] sm:$0xff]
        %v2669 = vld [vmem:[#allocation9 + $0x600] sm:$0xff]
        %v2670 = vld [vmem:[#allocation9 + $0x608] sm:$0xff]
        %v2671 = vld [vmem:[#allocation9 + $0x610] sm:$0xff]
        %v2672 = vld [vmem:[#allocation9 + $0x618] sm:$0xff]
        %v2673 = vld [vmem:[#allocation9 + $0x620] sm:$0xff]
        %v2674 = vld [vmem:[#allocation9 + $0x628] sm:$0xff]
        %v2675 = vld [vmem:[#allocation9 + $0x630] sm:$0xff]
        %v2676 = vld [vmem:[#allocation9 + $0x638] sm:$0xff]
        %v2677 = vld [vmem:[#allocation9 + $0x640] sm:$0xff]
        %v2678 = vld [vmem:[#allocation9 + $0x648] sm:$0xff]
        %v2679 = vld [vmem:[#allocation9 + $0x650] sm:$0xff]
        %v2680 = vld [vmem:[#allocation9 + $0x658] sm:$0xff]
        %v2681 = vld [vmem:[#allocation9 + $0x660] sm:$0xff]
        %v2682 = vld [vmem:[#allocation9 + $0x668] sm:$0xff]
        %v2683 = vld [vmem:[#allocation9 + $0x670] sm:$0xff]
        %v2684 = vld [vmem:[#allocation9 + $0x678] sm:$0xff]
        %v2685 = vld [vmem:[#allocation9 + $0x680] sm:$0xff]
        %v2686 = vld [vmem:[#allocation9 + $0x688] sm:$0xff]
        %v2687 = vld [vmem:[#allocation9 + $0x690] sm:$0xff]
        %v2688 = vld [vmem:[#allocation9 + $0x698] sm:$0xff]
        %v2689 = vld [vmem:[#allocation9 + $0x6a0] sm:$0xff]
        %v2690 = vld [vmem:[#allocation9 + $0x6a8] sm:$0xff]
        %v2691 = vld [vmem:[#allocation9 + $0x6b0] sm:$0xff]
        %v2692 = vld [vmem:[#allocation9 + $0x6b8] sm:$0xff]
        %v2693 = vld [vmem:[#allocation9 + $0x6c0] sm:$0xff]
        %v2694 = vld [vmem:[#allocation9 + $0x6c8] sm:$0xff]
        %v2695 = vld [vmem:[#allocation9 + $0x6d0] sm:$0xff]
        %v2696 = vld [vmem:[#allocation9 + $0x6d8] sm:$0xff]
        %v2697 = vld [vmem:[#allocation9 + $0x6e0] sm:$0xff]
        %v2698 = vld [vmem:[#allocation9 + $0x6e8] sm:$0xff]
        %v2699 = vld [vmem:[#allocation9 + $0x6f0] sm:$0xff]
        %v2700 = vld [vmem:[#allocation9 + $0x6f8] sm:$0xff]
        %v2701 = vld [vmem:[#allocation9 + $0x700] sm:$0xff]
        %v2702 = vld [vmem:[#allocation9 + $0x708] sm:$0xff]
        %v2703 = vld [vmem:[#allocation9 + $0x710] sm:$0xff]
        %v2704 = vld [vmem:[#allocation9 + $0x718] sm:$0xff]
        %v2705 = vld [vmem:[#allocation9 + $0x720] sm:$0xff]
        %v2706 = vld [vmem:[#allocation9 + $0x728] sm:$0xff]
        %v2707 = vld [vmem:[#allocation9 + $0x730] sm:$0xff]
        %v2708 = vld [vmem:[#allocation9 + $0x738] sm:$0xff]
        %v2709 = vld [vmem:[#allocation9 + $0x740] sm:$0xff]
        %v2710 = vld [vmem:[#allocation9 + $0x748] sm:$0xff]
        %v2711 = vld [vmem:[#allocation9 + $0x750] sm:$0xff]
        %v2712 = vld [vmem:[#allocation9 + $0x758] sm:$0xff]
        %v2713 = vld [vmem:[#allocation9 + $0x760] sm:$0xff]
        %v2714 = vld [vmem:[#allocation9 + $0x768] sm:$0xff]
        %v2715 = vld [vmem:[#allocation9 + $0x770] sm:$0xff]
        %v2716 = vld [vmem:[#allocation9 + $0x778] sm:$0xff]
        %v2717 = vld [vmem:[#allocation9 + $0x780] sm:$0xff]
        %v2718 = vld [vmem:[#allocation9 + $0x788] sm:$0xff]
        %v2719 = vld [vmem:[#allocation9 + $0x790] sm:$0xff]
        %v2720 = vld [vmem:[#allocation9 + $0x798] sm:$0xff]
        %v2721 = vld [vmem:[#allocation9 + $0x7a0] sm:$0xff]
        %v2722 = vld [vmem:[#allocation9 + $0x7a8] sm:$0xff]
        %v2723 = vld [vmem:[#allocation9 + $0x7b0] sm:$0xff]
        %v2724 = vld [vmem:[#allocation9 + $0x7b8] sm:$0xff]
        %v2725 = vld [vmem:[#allocation9 + $0x7c0] sm:$0xff]
        %v2726 = vld [vmem:[#allocation9 + $0x7c8] sm:$0xff]
        %v2727 = vld [vmem:[#allocation9 + $0x7d0] sm:$0xff]
        %v2728 = vld [vmem:[#allocation9 + $0x7d8] sm:$0xff]
        %v2729 = vld [vmem:[#allocation9 + $0x7e0] sm:$0xff]
        %v2730 = vld [vmem:[#allocation9 + $0x7e8] sm:$0xff]
        %v2731 = vld [vmem:[#allocation9 + $0x7f0] sm:$0xff]
        %v2732 = vld [vmem:[#allocation9 + $0x7f8] sm:$0xff]
        %v2733 = vld [vmem:[#allocation9 + $0x800] sm:$0xff]
        %v2734 = vld [vmem:[#allocation9 + $0x808] sm:$0xff]
        %v2735 = vld [vmem:[#allocation9 + $0x810] sm:$0xff]
        %v2736 = vld [vmem:[#allocation9 + $0x818] sm:$0xff]
        %v2737 = vld [vmem:[#allocation9 + $0x820] sm:$0xff]
        %v2738 = vld [vmem:[#allocation9 + $0x828] sm:$0xff]
        %v2739 = vld [vmem:[#allocation9 + $0x830] sm:$0xff]
        %v2740 = vld [vmem:[#allocation9 + $0x838] sm:$0xff]
        %v2741 = vld [vmem:[#allocation9 + $0x840] sm:$0xff]
        %v2742 = vld [vmem:[#allocation9 + $0x848] sm:$0xff]
        %v2743 = vld [vmem:[#allocation9 + $0x850] sm:$0xff]
        %v2744 = vld [vmem:[#allocation9 + $0x858] sm:$0xff]
        %v2745 = vld [vmem:[#allocation9 + $0x860] sm:$0xff]
        %v2746 = vld [vmem:[#allocation9 + $0x868] sm:$0xff]
        %v2747 = vld [vmem:[#allocation9 + $0x870] sm:$0xff]
        %v2748 = vld [vmem:[#allocation9 + $0x878] sm:$0xff]
        %v2749 = vld [vmem:[#allocation9 + $0x880] sm:$0xff]
        %v2750 = vld [vmem:[#allocation9 + $0x888] sm:$0xff]
        %v2751 = vld [vmem:[#allocation9 + $0x890] sm:$0xff]
        %v2752 = vld [vmem:[#allocation9 + $0x898] sm:$0xff]
        %v2753 = vld [vmem:[#allocation9 + $0x8a0] sm:$0xff]
        %v2754 = vld [vmem:[#allocation9 + $0x8a8] sm:$0xff]
        %v2755 = vld [vmem:[#allocation9 + $0x8b0] sm:$0xff]
        %v2756 = vld [vmem:[#allocation9 + $0x8b8] sm:$0xff]
        %v2757 = vld [vmem:[#allocation9 + $0x8c0] sm:$0xff]
        %v2758 = vld [vmem:[#allocation9 + $0x8c8] sm:$0xff]
        %v2759 = vld [vmem:[#allocation9 + $0x8d0] sm:$0xff]
        %v2760 = vld [vmem:[#allocation9 + $0x8d8] sm:$0xff]
        %v2761 = vld [vmem:[#allocation9 + $0x8e0] sm:$0xff]
        %v2762 = vld [vmem:[#allocation9 + $0x8e8] sm:$0xff]
        %v2763 = vld [vmem:[#allocation9 + $0x8f0] sm:$0xff]
        %v2764 = vld [vmem:[#allocation9 + $0x8f8] sm:$0xff]
        %v2765 = vld [vmem:[#allocation9 + $0x900] sm:$0xff]
        %v2766 = vld [vmem:[#allocation9 + $0x908] sm:$0xff]
        %v2767 = vld [vmem:[#allocation9 + $0x910] sm:$0xff]
        %v2768 = vld [vmem:[#allocation9 + $0x918] sm:$0xff]
        %v2769 = vld [vmem:[#allocation9 + $0x920] sm:$0xff]
        %v2770 = vld [vmem:[#allocation9 + $0x928] sm:$0xff]
        %v2771 = vld [vmem:[#allocation9 + $0x930] sm:$0xff]
        %v2772 = vld [vmem:[#allocation9 + $0x938] sm:$0xff]
        %v2773 = vld [vmem:[#allocation9 + $0x940] sm:$0xff]
        %v2774 = vld [vmem:[#allocation9 + $0x948] sm:$0xff]
        %v2775 = vld [vmem:[#allocation9 + $0x950] sm:$0xff]
        %v2776 = vld [vmem:[#allocation9 + $0x958] sm:$0xff]
        %v2777 = vld [vmem:[#allocation9 + $0x960] sm:$0xff]
        %v2778 = vld [vmem:[#allocation9 + $0x968] sm:$0xff]
        %v2779 = vld [vmem:[#allocation9 + $0x970] sm:$0xff]
        %v2780 = vld [vmem:[#allocation9 + $0x978] sm:$0xff]
        %v2781 = vld [vmem:[#allocation9 + $0x980] sm:$0xff]
        %v2782 = vld [vmem:[#allocation9 + $0x988] sm:$0xff]
        %v2783 = vld [vmem:[#allocation9 + $0x990] sm:$0xff]
        %v2784 = vld [vmem:[#allocation9 + $0x998] sm:$0xff]
        %v2785 = vld [vmem:[#allocation9 + $0x9a0] sm:$0xff]
        %v2786 = vld [vmem:[#allocation9 + $0x9a8] sm:$0xff]
        %v2787 = vld [vmem:[#allocation9 + $0x9b0] sm:$0xff]
        %v2788 = vld [vmem:[#allocation9 + $0x9b8] sm:$0xff]
        %v2789 = vld [vmem:[#allocation9 + $0x9c0] sm:$0xff]
        %v2790 = vld [vmem:[#allocation9 + $0x9c8] sm:$0xff]
        %v2791 = vld [vmem:[#allocation9 + $0x9d0] sm:$0xff]
        %v2792 = vld [vmem:[#allocation9 + $0x9d8] sm:$0xff]
        %v2793 = vld [vmem:[#allocation9 + $0x9e0] sm:$0xff]
        %v2794 = vld [vmem:[#allocation9 + $0x9e8] sm:$0xff]
        %v2795 = vld [vmem:[#allocation9 + $0x9f0] sm:$0xff]
        %v2796 = vld [vmem:[#allocation9 + $0x9f8] sm:$0xff]
        %v2797 = vld [vmem:[#allocation9 + $0xa00] sm:$0xff]
        %v2798 = vld [vmem:[#allocation9 + $0xa08] sm:$0xff]
        %v2799 = vld [vmem:[#allocation9 + $0xa10] sm:$0xff]
        %v2800 = vld [vmem:[#allocation9 + $0xa18] sm:$0xff]
        %v2801 = vld [vmem:[#allocation9 + $0xa20] sm:$0xff]
        %v2802 = vld [vmem:[#allocation9 + $0xa28] sm:$0xff]
        %v2803 = vld [vmem:[#allocation9 + $0xa30] sm:$0xff]
        %v2804 = vld [vmem:[#allocation9 + $0xa38] sm:$0xff]
        %v2805 = vld [vmem:[#allocation9 + $0xa40] sm:$0xff]
        %v2806 = vld [vmem:[#allocation9 + $0xa48] sm:$0xff]
        %v2807 = vld [vmem:[#allocation9 + $0xa50] sm:$0xff]
        %v2808 = vld [vmem:[#allocation9 + $0xa58] sm:$0xff]
        %v2809 = vld [vmem:[#allocation9 + $0xa60] sm:$0xff]
        %v2810 = vld [vmem:[#allocation9 + $0xa68] sm:$0xff]
        %v2811 = vld [vmem:[#allocation9 + $0xa70] sm:$0xff]
        %v2812 = vld [vmem:[#allocation9 + $0xa78] sm:$0xff]
        %v2813 = vld [vmem:[#allocation9 + $0xa80] sm:$0xff]
        %v2814 = vld [vmem:[#allocation9 + $0xa88] sm:$0xff]
        %v2815 = vld [vmem:[#allocation9 + $0xa90] sm:$0xff]
        %v2816 = vld [vmem:[#allocation9 + $0xa98] sm:$0xff]
        %v2817 = vld [vmem:[#allocation9 + $0xaa0] sm:$0xff]
        %v2818 = vld [vmem:[#allocation9 + $0xaa8] sm:$0xff]
        %v2819 = vld [vmem:[#allocation9 + $0xab0] sm:$0xff]
        %v2820 = vld [vmem:[#allocation9 + $0xab8] sm:$0xff]
        %v2821 = vld [vmem:[#allocation9 + $0xac0] sm:$0xff]
        %v2822 = vld [vmem:[#allocation9 + $0xac8] sm:$0xff]
        %v2823 = vld [vmem:[#allocation9 + $0xad0] sm:$0xff]
        %v2824 = vld [vmem:[#allocation9 + $0xad8] sm:$0xff]
        %v2825 = vld [vmem:[#allocation9 + $0xae0] sm:$0xff]
        %v2826 = vld [vmem:[#allocation9 + $0xae8] sm:$0xff]
        %v2827 = vld [vmem:[#allocation9 + $0xaf0] sm:$0xff]
        %v2828 = vld [vmem:[#allocation9 + $0xaf8] sm:$0xff]
        %v2829 = vld [vmem:[#allocation9 + $0xb00] sm:$0xff]
        %v2830 = vld [vmem:[#allocation9 + $0xb08] sm:$0xff]
        %v2831 = vld [vmem:[#allocation9 + $0xb10] sm:$0xff]
        %v2832 = vld [vmem:[#allocation9 + $0xb18] sm:$0xff]
        %v2833 = vld [vmem:[#allocation9 + $0xb20] sm:$0xff]
        %v2834 = vld [vmem:[#allocation9 + $0xb28] sm:$0xff]
        %v2835 = vld [vmem:[#allocation9 + $0xb30] sm:$0xff]
        %v2836 = vld [vmem:[#allocation9 + $0xb38] sm:$0xff]
        %v2837 = vld [vmem:[#allocation9 + $0xb40] sm:$0xff]
        %v2838 = vld [vmem:[#allocation9 + $0xb48] sm:$0xff]
        %v2839 = vld [vmem:[#allocation9 + $0xb50] sm:$0xff]
        %v2840 = vld [vmem:[#allocation9 + $0xb58] sm:$0xff]
        %v2841 = vld [vmem:[#allocation9 + $0xb60] sm:$0xff]
        %v2842 = vld [vmem:[#allocation9 + $0xb68] sm:$0xff]
        %v2843 = vld [vmem:[#allocation9 + $0xb70] sm:$0xff]
        %v2844 = vld [vmem:[#allocation9 + $0xb78] sm:$0xff]
        %v2845 = vld [vmem:[#allocation9 + $0xb80] sm:$0xff]
        %v2846 = vld [vmem:[#allocation9 + $0xb88] sm:$0xff]
        %v2847 = vld [vmem:[#allocation9 + $0xb90] sm:$0xff]
        %v2848 = vld [vmem:[#allocation9 + $0xb98] sm:$0xff]
        %v2849 = vld [vmem:[#allocation9 + $0xba0] sm:$0xff]
        %v2850 = vld [vmem:[#allocation9 + $0xba8] sm:$0xff]
        %v2851 = vld [vmem:[#allocation9 + $0xbb0] sm:$0xff]
        %v2852 = vld [vmem:[#allocation9 + $0xbb8] sm:$0xff]
        %v2853 = vld [vmem:[#allocation9 + $0xbc0] sm:$0xff]
        %v2854 = vld [vmem:[#allocation9 + $0xbc8] sm:$0xff]
        %v2855 = vld [vmem:[#allocation9 + $0xbd0] sm:$0xff]
        %v2856 = vld [vmem:[#allocation9 + $0xbd8] sm:$0xff]
        %v2857 = vld [vmem:[#allocation9 + $0xbe0] sm:$0xff]
        %v2858 = vld [vmem:[#allocation9 + $0xbe8] sm:$0xff]
        %v2859 = vld [vmem:[#allocation9 + $0xbf0] sm:$0xff]
        %v2860 = vld [vmem:[#allocation9 + $0xbf8] sm:$0xff]
        %v2861 = vld [vmem:[#allocation9 + $0xc00] sm:$0xff]
        %v2862 = vld [vmem:[#allocation9 + $0xc08] sm:$0xff]
        %v2863 = vld [vmem:[#allocation9 + $0xc10] sm:$0xff]
        %v2864 = vld [vmem:[#allocation9 + $0xc18] sm:$0xff]
        %v2865 = vld [vmem:[#allocation9 + $0xc20] sm:$0xff]
        %v2866 = vld [vmem:[#allocation9 + $0xc28] sm:$0xff]
        %v2867 = vld [vmem:[#allocation9 + $0xc30] sm:$0xff]
        %v2868 = vld [vmem:[#allocation9 + $0xc38] sm:$0xff]
        %v2869 = vld [vmem:[#allocation9 + $0xc40] sm:$0xff]
        %v2870 = vld [vmem:[#allocation9 + $0xc48] sm:$0xff]
        %v2871 = vld [vmem:[#allocation9 + $0xc50] sm:$0xff]
        %v2872 = vld [vmem:[#allocation9 + $0xc58] sm:$0xff]
        %v2873 = vld [vmem:[#allocation9 + $0xc60] sm:$0xff]
        %v2874 = vld [vmem:[#allocation9 + $0xc68] sm:$0xff]
        %v2875 = vld [vmem:[#allocation9 + $0xc70] sm:$0xff]
        %v2876 = vld [vmem:[#allocation9 + $0xc78] sm:$0xff]
        %v2877 = vld [vmem:[#allocation9 + $0xc80] sm:$0xff]
        %v2878 = vld [vmem:[#allocation9 + $0xc88] sm:$0xff]
        %v2879 = vld [vmem:[#allocation9 + $0xc90] sm:$0xff]
        %v2880 = vld [vmem:[#allocation9 + $0xc98] sm:$0xff]
        %v2881 = vld [vmem:[#allocation9 + $0xca0] sm:$0xff]
        %v2882 = vld [vmem:[#allocation9 + $0xca8] sm:$0xff]
        %v2883 = vld [vmem:[#allocation9 + $0xcb0] sm:$0xff]
        %v2884 = vld [vmem:[#allocation9 + $0xcb8] sm:$0xff]
        %v2885 = vld [vmem:[#allocation9 + $0xcc0] sm:$0xff]
        %v2886 = vld [vmem:[#allocation9 + $0xcc8] sm:$0xff]
        %v2887 = vld [vmem:[#allocation9 + $0xcd0] sm:$0xff]
        %v2888 = vld [vmem:[#allocation9 + $0xcd8] sm:$0xff]
        %v2889 = vld [vmem:[#allocation9 + $0xce0] sm:$0xff]
        %v2890 = vld [vmem:[#allocation9 + $0xce8] sm:$0xff]
        %v2891 = vld [vmem:[#allocation9 + $0xcf0] sm:$0xff]
        %v2892 = vld [vmem:[#allocation9 + $0xcf8] sm:$0xff]
        %v2893 = vld [vmem:[#allocation9 + $0xd00] sm:$0xff]
        %v2894 = vld [vmem:[#allocation9 + $0xd08] sm:$0xff]
        %v2895 = vld [vmem:[#allocation9 + $0xd10] sm:$0xff]
        %v2896 = vld [vmem:[#allocation9 + $0xd18] sm:$0xff]
        %v2897 = vld [vmem:[#allocation9 + $0xd20] sm:$0xff]
        %v2898 = vld [vmem:[#allocation9 + $0xd28] sm:$0xff]
        %v2899 = vld [vmem:[#allocation9 + $0xd30] sm:$0xff]
        %v2900 = vld [vmem:[#allocation9 + $0xd38] sm:$0xff]
        %v2901 = vld [vmem:[#allocation9 + $0xd40] sm:$0xff]
        %v2902 = vld [vmem:[#allocation9 + $0xd48] sm:$0xff]
        %v2903 = vld [vmem:[#allocation9 + $0xd50] sm:$0xff]
        %v2904 = vld [vmem:[#allocation9 + $0xd58] sm:$0xff]
        %v2905 = vld [vmem:[#allocation9 + $0xd60] sm:$0xff]
        %v2906 = vld [vmem:[#allocation9 + $0xd68] sm:$0xff]
        %v2907 = vld [vmem:[#allocation9 + $0xd70] sm:$0xff]
        %v2908 = vld [vmem:[#allocation9 + $0xd78] sm:$0xff]
        %v2909 = vld [vmem:[#allocation9 + $0xd80] sm:$0xff]
        %v2910 = vld [vmem:[#allocation9 + $0xd88] sm:$0xff]
        %v2911 = vld [vmem:[#allocation9 + $0xd90] sm:$0xff]
        %v2912 = vld [vmem:[#allocation9 + $0xd98] sm:$0xff]
        %v2913 = vld [vmem:[#allocation9 + $0xda0] sm:$0xff]
        %v2914 = vld [vmem:[#allocation9 + $0xda8] sm:$0xff]
        %v2915 = vld [vmem:[#allocation9 + $0xdb0] sm:$0xff]
        %v2916 = vld [vmem:[#allocation9 + $0xdb8] sm:$0xff]
        %v2917 = vld [vmem:[#allocation9 + $0xdc0] sm:$0xff]
        %v2918 = vld [vmem:[#allocation9 + $0xdc8] sm:$0xff]
        %v2919 = vld [vmem:[#allocation9 + $0xdd0] sm:$0xff]
        %v2920 = vld [vmem:[#allocation9 + $0xdd8] sm:$0xff]
        %v2921 = vld [vmem:[#allocation9 + $0xde0] sm:$0xff]
        %v2922 = vld [vmem:[#allocation9 + $0xde8] sm:$0xff]
        %v2923 = vld [vmem:[#allocation9 + $0xdf0] sm:$0xff]
        %v2924 = vld [vmem:[#allocation9 + $0xdf8] sm:$0xff]
        %v2925 = vld [vmem:[#allocation9 + $0xe00] sm:$0xff]
        %v2926 = vld [vmem:[#allocation9 + $0xe08] sm:$0xff]
        %v2927 = vld [vmem:[#allocation9 + $0xe10] sm:$0xff]
        %v2928 = vld [vmem:[#allocation9 + $0xe18] sm:$0xff]
        %v2929 = vld [vmem:[#allocation9 + $0xe20] sm:$0xff]
        %v2930 = vld [vmem:[#allocation9 + $0xe28] sm:$0xff]
        %v2931 = vld [vmem:[#allocation9 + $0xe30] sm:$0xff]
        %v2932 = vld [vmem:[#allocation9 + $0xe38] sm:$0xff]
        %v2933 = vld [vmem:[#allocation9 + $0xe40] sm:$0xff]
        %v2934 = vld [vmem:[#allocation9 + $0xe48] sm:$0xff]
        %v2935 = vld [vmem:[#allocation9 + $0xe50] sm:$0xff]
        %v2936 = vld [vmem:[#allocation9 + $0xe58] sm:$0xff]
        %v2937 = vld [vmem:[#allocation9 + $0xe60] sm:$0xff]
        %v2938 = vld [vmem:[#allocation9 + $0xe68] sm:$0xff]
        %v2939 = vld [vmem:[#allocation9 + $0xe70] sm:$0xff]
        %v2940 = vld [vmem:[#allocation9 + $0xe78] sm:$0xff]
        %v2941 = vld [vmem:[#allocation9 + $0xe80] sm:$0xff]
        %v2942 = vld [vmem:[#allocation9 + $0xe88] sm:$0xff]
        %v2943 = vld [vmem:[#allocation9 + $0xe90] sm:$0xff]
        %v2944 = vld [vmem:[#allocation9 + $0xe98] sm:$0xff]
        %v2945 = vld [vmem:[#allocation9 + $0xea0] sm:$0xff]
        %v2946 = vld [vmem:[#allocation9 + $0xea8] sm:$0xff]
        %v2947 = vld [vmem:[#allocation9 + $0xeb0] sm:$0xff]
        %v2948 = vld [vmem:[#allocation9 + $0xeb8] sm:$0xff]
        %v2949 = vld [vmem:[#allocation9 + $0xec0] sm:$0xff]
        %v2950 = vld [vmem:[#allocation9 + $0xec8] sm:$0xff]
        %v2951 = vld [vmem:[#allocation9 + $0xed0] sm:$0xff]
        %v2952 = vld [vmem:[#allocation9 + $0xed8] sm:$0xff]
        %v2953 = vld [vmem:[#allocation9 + $0xee0] sm:$0xff]
        %v2954 = vld [vmem:[#allocation9 + $0xee8] sm:$0xff]
        %v2955 = vld [vmem:[#allocation9 + $0xef0] sm:$0xff]
        %v2956 = vld [vmem:[#allocation9 + $0xef8] sm:$0xff]
        %v2957 = vld [vmem:[#allocation9 + $0xf00] sm:$0xff]
        %v2958 = vld [vmem:[#allocation9 + $0xf08] sm:$0xff]
        %v2959 = vld [vmem:[#allocation9 + $0xf10] sm:$0xff]
        %v2960 = vld [vmem:[#allocation9 + $0xf18] sm:$0xff]
        %v2961 = vld [vmem:[#allocation9 + $0xf20] sm:$0xff]
        %v2962 = vld [vmem:[#allocation9 + $0xf28] sm:$0xff]
        %v2963 = vld [vmem:[#allocation9 + $0xf30] sm:$0xff]
        %v2964 = vld [vmem:[#allocation9 + $0xf38] sm:$0xff]
        %v2965 = vld [vmem:[#allocation9 + $0xf40] sm:$0xff]
        %v2966 = vld [vmem:[#allocation9 + $0xf48] sm:$0xff]
        %v2967 = vld [vmem:[#allocation9 + $0xf50] sm:$0xff]
        %v2968 = vld [vmem:[#allocation9 + $0xf58] sm:$0xff]
        %v2969 = vld [vmem:[#allocation9 + $0xf60] sm:$0xff]
        %v2970 = vld [vmem:[#allocation9 + $0xf68] sm:$0xff]
        %v2971 = vld [vmem:[#allocation9 + $0xf70] sm:$0xff]
        %v2972 = vld [vmem:[#allocation9 + $0xf78] sm:$0xff]
        %v2973 = vld [vmem:[#allocation9 + $0xf80] sm:$0xff]
        %v2974 = vld [vmem:[#allocation9 + $0xf88] sm:$0xff]
        %v2975 = vld [vmem:[#allocation9 + $0xf90] sm:$0xff]
        %v2976 = vld [vmem:[#allocation9 + $0xf98] sm:$0xff]
        %v2977 = vld [vmem:[#allocation9 + $0xfa0] sm:$0xff]
        %v2978 = vld [vmem:[#allocation9 + $0xfa8] sm:$0xff]
        %v2979 = vld [vmem:[#allocation9 + $0xfb0] sm:$0xff]
        %v2980 = vld [vmem:[#allocation9 + $0xfb8] sm:$0xff]
        %v2981 = vld [vmem:[#allocation9 + $0xfc0] sm:$0xff]
        %v2982 = vld [vmem:[#allocation9 + $0xfc8] sm:$0xff]
        %v2983 = vld [vmem:[#allocation9 + $0xfd0] sm:$0xff]
        %v2984 = vld [vmem:[#allocation9 + $0xfd8] sm:$0xff]
        %v2985 = vld [vmem:[#allocation9 + $0xfe0] sm:$0xff]
        %v2986 = vld [vmem:[#allocation9 + $0xfe8] sm:$0xff]
        %v2987 = vld [vmem:[#allocation9 + $0xff0] sm:$0xff]
        %v2988 = vld [vmem:[#allocation9 + $0xff8] sm:$0xff]
        %v2989 = vld [vmem:[#allocation9 + $0x1000] sm:$0xff]
        %v2990 = vld [vmem:[#allocation9 + $0x1008] sm:$0xff]
        %v2991 = vld [vmem:[#allocation9 + $0x1010] sm:$0xff]
        %v2992 = vld [vmem:[#allocation9 + $0x1018] sm:$0xff]
        %v2993 = vld [vmem:[#allocation9 + $0x1020] sm:$0xff]
        %v2994 = vld [vmem:[#allocation9 + $0x1028] sm:$0xff]
        %v2995 = vld [vmem:[#allocation9 + $0x1030] sm:$0xff]
        %v2996 = vld [vmem:[#allocation9 + $0x1038] sm:$0xff]
        %v2997 = vld [vmem:[#allocation9 + $0x1040] sm:$0xff]
        %v2998 = vld [vmem:[#allocation9 + $0x1048] sm:$0xff]
        %v2999 = vld [vmem:[#allocation9 + $0x1050] sm:$0xff]
        %v3000 = vld [vmem:[#allocation9 + $0x1058] sm:$0xff]
        %v3001 = vld [vmem:[#allocation9 + $0x1060] sm:$0xff]
        %v3002 = vld [vmem:[#allocation9 + $0x1068] sm:$0xff]
        %v3003 = vld [vmem:[#allocation9 + $0x1070] sm:$0xff]
        %v3004 = vld [vmem:[#allocation9 + $0x1078] sm:$0xff]
        %v3005 = vld [vmem:[#allocation9 + $0x1080] sm:$0xff]
        %v3006 = vld [vmem:[#allocation9 + $0x1088] sm:$0xff]
        %v3007 = vld [vmem:[#allocation9 + $0x1090] sm:$0xff]
        %v3008 = vld [vmem:[#allocation9 + $0x1098] sm:$0xff]
        %v3009 = vld [vmem:[#allocation9 + $0x10a0] sm:$0xff]
        %v3010 = vld [vmem:[#allocation9 + $0x10a8] sm:$0xff]
        %v3011 = vld [vmem:[#allocation9 + $0x10b0] sm:$0xff]
        %v3012 = vld [vmem:[#allocation9 + $0x10b8] sm:$0xff]
        %v3013 = vld [vmem:[#allocation9 + $0x10c0] sm:$0xff]
        %v3014 = vld [vmem:[#allocation9 + $0x10c8] sm:$0xff]
        %v3015 = vld [vmem:[#allocation9 + $0x10d0] sm:$0xff]
        %v3016 = vld [vmem:[#allocation9 + $0x10d8] sm:$0xff]
        %v3017 = vld [vmem:[#allocation9 + $0x10e0] sm:$0xff]
        %v3018 = vld [vmem:[#allocation9 + $0x10e8] sm:$0xff]
        %v3019 = vld [vmem:[#allocation9 + $0x10f0] sm:$0xff]
        %v3020 = vld [vmem:[#allocation9 + $0x10f8] sm:$0xff]
        %v3021 = vld [vmem:[#allocation9 + $0x1100] sm:$0xff]
        %v3022 = vld [vmem:[#allocation9 + $0x1108] sm:$0xff]
        %v3023 = vld [vmem:[#allocation9 + $0x1110] sm:$0xff]
        %v3024 = vld [vmem:[#allocation9 + $0x1118] sm:$0xff]
        %v3025 = vld [vmem:[#allocation9 + $0x1120] sm:$0xff]
        %v3026 = vld [vmem:[#allocation9 + $0x1128] sm:$0xff]
        %v3027 = vld [vmem:[#allocation9 + $0x1130] sm:$0xff]
        %v3028 = vld [vmem:[#allocation9 + $0x1138] sm:$0xff]
        %v3029 = vld [vmem:[#allocation9 + $0x1140] sm:$0xff]
        %v3030 = vld [vmem:[#allocation9 + $0x1148] sm:$0xff]
        %v3031 = vld [vmem:[#allocation9 + $0x1150] sm:$0xff]
        %v3032 = vld [vmem:[#allocation9 + $0x1158] sm:$0xff]
        %v3033 = vld [vmem:[#allocation9 + $0x1160] sm:$0xff]
        %v3034 = vld [vmem:[#allocation9 + $0x1168] sm:$0xff]
        %v3035 = vld [vmem:[#allocation9 + $0x1170] sm:$0xff]
        %v3036 = vld [vmem:[#allocation9 + $0x1178] sm:$0xff]
        %v3037 = vld [vmem:[#allocation9 + $0x1180] sm:$0xff]
        %v3038 = vld [vmem:[#allocation9 + $0x1188] sm:$0xff]
        %v3039 = vld [vmem:[#allocation9 + $0x1190] sm:$0xff]
        %v3040 = vld [vmem:[#allocation9 + $0x1198] sm:$0xff]
        %v3041 = vld [vmem:[#allocation9 + $0x11a0] sm:$0xff]
        %v3042 = vld [vmem:[#allocation9 + $0x11a8] sm:$0xff]
        %v3043 = vld [vmem:[#allocation9 + $0x11b0] sm:$0xff]
        %v3044 = vld [vmem:[#allocation9 + $0x11b8] sm:$0xff]
        %v3045 = vld [vmem:[#allocation9 + $0x11c0] sm:$0xff]
        %v3046 = vld [vmem:[#allocation9 + $0x11c8] sm:$0xff]
        %v3047 = vld [vmem:[#allocation9 + $0x11d0] sm:$0xff]
        %v3048 = vld [vmem:[#allocation9 + $0x11d8] sm:$0xff]
        %v3049 = vld [vmem:[#allocation9 + $0x11e0] sm:$0xff]
        %v3050 = vld [vmem:[#allocation9 + $0x11e8] sm:$0xff]
        %v3051 = vld [vmem:[#allocation9 + $0x11f0] sm:$0xff]
        %v3052 = vld [vmem:[#allocation9 + $0x11f8] sm:$0xff]
        %v3053 = vld [vmem:[#allocation9 + $0x1200] sm:$0xff]
        %v3054 = vld [vmem:[#allocation9 + $0x1208] sm:$0xff]
        %v3055 = vld [vmem:[#allocation9 + $0x1210] sm:$0xff]
        %v3056 = vld [vmem:[#allocation9 + $0x1218] sm:$0xff]
        %v3057 = vld [vmem:[#allocation9 + $0x1220] sm:$0xff]
        %v3058 = vld [vmem:[#allocation9 + $0x1228] sm:$0xff]
        %v3059 = vld [vmem:[#allocation9 + $0x1230] sm:$0xff]
        %v3060 = vld [vmem:[#allocation9 + $0x1238] sm:$0xff]
        %v3061 = vld [vmem:[#allocation9 + $0x1240] sm:$0xff]
        %v3062 = vld [vmem:[#allocation9 + $0x1248] sm:$0xff]
        %v3063 = vld [vmem:[#allocation9 + $0x1250] sm:$0xff]
        %v3064 = vld [vmem:[#allocation9 + $0x1258] sm:$0xff]
        %v3065 = vld [vmem:[#allocation9 + $0x1260] sm:$0xff]
        %v3066 = vld [vmem:[#allocation9 + $0x1268] sm:$0xff]
        %v3067 = vld [vmem:[#allocation9 + $0x1270] sm:$0xff]
        %v3068 = vld [vmem:[#allocation9 + $0x1278] sm:$0xff]
        %v3069 = vld [vmem:[#allocation9 + $0x1280] sm:$0xff]
        %v3070 = vld [vmem:[#allocation9 + $0x1288] sm:$0xff]
        %v3071 = vld [vmem:[#allocation9 + $0x1290] sm:$0xff]
        %v3072 = vld [vmem:[#allocation9 + $0x1298] sm:$0xff]
        %v3073 = vld [vmem:[#allocation9 + $0x12a0] sm:$0xff]
        %v3074 = vld [vmem:[#allocation9 + $0x12a8] sm:$0xff]
        %v3075 = vld [vmem:[#allocation9 + $0x12b0] sm:$0xff]
        %v3076 = vld [vmem:[#allocation9 + $0x12b8] sm:$0xff]
        %v3077 = vld [vmem:[#allocation9 + $0x12c0] sm:$0xff]
        %v3078 = vld [vmem:[#allocation9 + $0x12c8] sm:$0xff]
        %v3079 = vld [vmem:[#allocation9 + $0x12d0] sm:$0xff]
        %v3080 = vld [vmem:[#allocation9 + $0x12d8] sm:$0xff]
        %v3081 = vld [vmem:[#allocation9 + $0x12e0] sm:$0xff]
        %v3082 = vld [vmem:[#allocation9 + $0x12e8] sm:$0xff]
        %v3083 = vld [vmem:[#allocation9 + $0x12f0] sm:$0xff]
        %v3084 = vld [vmem:[#allocation9 + $0x12f8] sm:$0xff]
        %v3085 = vld [vmem:[#allocation9 + $0x1300] sm:$0xff]
        %v3086 = vld [vmem:[#allocation9 + $0x1308] sm:$0xff]
        %v3087 = vld [vmem:[#allocation9 + $0x1310] sm:$0xff]
        %v3088 = vld [vmem:[#allocation9 + $0x1318] sm:$0xff]
        %v3089 = vld [vmem:[#allocation9 + $0x1320] sm:$0xff]
        %v3090 = vld [vmem:[#allocation9 + $0x1328] sm:$0xff]
        %v3091 = vld [vmem:[#allocation9 + $0x1330] sm:$0xff]
        %v3092 = vld [vmem:[#allocation9 + $0x1338] sm:$0xff]
        %v3093 = vld [vmem:[#allocation9 + $0x1340] sm:$0xff]
        %v3094 = vld [vmem:[#allocation9 + $0x1348] sm:$0xff]
        %v3095 = vld [vmem:[#allocation9 + $0x1350] sm:$0xff]
        %v3096 = vld [vmem:[#allocation9 + $0x1358] sm:$0xff]
        %v3097 = vld [vmem:[#allocation9 + $0x1360] sm:$0xff]
        %v3098 = vld [vmem:[#allocation9 + $0x1368] sm:$0xff]
        %v3099 = vld [vmem:[#allocation9 + $0x1370] sm:$0xff]
        %v3100 = vld [vmem:[#allocation9 + $0x1378] sm:$0xff]
        %v3101 = vld [vmem:[#allocation9 + $0x1380] sm:$0xff]
        %v3102 = vld [vmem:[#allocation9 + $0x1388] sm:$0xff]
        %v3103 = vld [vmem:[#allocation9 + $0x1390] sm:$0xff]
        %v3104 = vld [vmem:[#allocation9 + $0x1398] sm:$0xff]
        %v3105 = vld [vmem:[#allocation9 + $0x13a0] sm:$0xff]
        %v3106 = vld [vmem:[#allocation9 + $0x13a8] sm:$0xff]
        %v3107 = vld [vmem:[#allocation9 + $0x13b0] sm:$0xff]
        %v3108 = vld [vmem:[#allocation9 + $0x13b8] sm:$0xff]
        %v3109 = vld [vmem:[#allocation9 + $0x13c0] sm:$0xff]
        %v3110 = vld [vmem:[#allocation9 + $0x13c8] sm:$0xff]
        %v3111 = vld [vmem:[#allocation9 + $0x13d0] sm:$0xff]
        %v3112 = vld [vmem:[#allocation9 + $0x13d8] sm:$0xff]
        %v3113 = vld [vmem:[#allocation9 + $0x13e0] sm:$0xff]
        %v3114 = vld [vmem:[#allocation9 + $0x13e8] sm:$0xff]
        %v3115 = vld [vmem:[#allocation9 + $0x13f0] sm:$0xff]
        %v3116 = vld [vmem:[#allocation9 + $0x13f8] sm:$0xff]
        %v3117 = vld [vmem:[#allocation9 + $0x1400] sm:$0xff]
        %v3118 = vld [vmem:[#allocation9 + $0x1408] sm:$0xff]
        %v3119 = vld [vmem:[#allocation9 + $0x1410] sm:$0xff]
        %v3120 = vld [vmem:[#allocation9 + $0x1418] sm:$0xff]
        %v3121 = vld [vmem:[#allocation9 + $0x1420] sm:$0xff]
        %v3122 = vld [vmem:[#allocation9 + $0x1428] sm:$0xff]
        %v3123 = vld [vmem:[#allocation9 + $0x1430] sm:$0xff]
        %v3124 = vld [vmem:[#allocation9 + $0x1438] sm:$0xff]
        %v3125 = vld [vmem:[#allocation9 + $0x1440] sm:$0xff]
        %v3126 = vld [vmem:[#allocation9 + $0x1448] sm:$0xff]
        %v3127 = vld [vmem:[#allocation9 + $0x1450] sm:$0xff]
        %v3128 = vld [vmem:[#allocation9 + $0x1458] sm:$0xff]
        %v3129 = vld [vmem:[#allocation9 + $0x1460] sm:$0xff]
        %v3130 = vld [vmem:[#allocation9 + $0x1468] sm:$0xff]
        %v3131 = vld [vmem:[#allocation9 + $0x1470] sm:$0xff]
        %v3132 = vld [vmem:[#allocation9 + $0x1478] sm:$0xff]
        %v3133 = vld [vmem:[#allocation9 + $0x1480] sm:$0xff]
        %v3134 = vld [vmem:[#allocation9 + $0x1488] sm:$0xff]
        %v3135 = vld [vmem:[#allocation9 + $0x1490] sm:$0xff]
        %v3136 = vld [vmem:[#allocation9 + $0x1498] sm:$0xff]
        %v3137 = vld [vmem:[#allocation9 + $0x14a0] sm:$0xff]
        %v3138 = vld [vmem:[#allocation9 + $0x14a8] sm:$0xff]
        %v3139 = vld [vmem:[#allocation9 + $0x14b0] sm:$0xff]
        %v3140 = vld [vmem:[#allocation9 + $0x14b8] sm:$0xff]
        %v3141 = vld [vmem:[#allocation9 + $0x14c0] sm:$0xff]
        %v3142 = vld [vmem:[#allocation9 + $0x14c8] sm:$0xff]
        %v3143 = vld [vmem:[#allocation9 + $0x14d0] sm:$0xff]
        %v3144 = vld [vmem:[#allocation9 + $0x14d8] sm:$0xff]
        %v3145 = vld [vmem:[#allocation9 + $0x14e0] sm:$0xff]
        %v3146 = vld [vmem:[#allocation9 + $0x14e8] sm:$0xff]
        %v3147 = vld [vmem:[#allocation9 + $0x14f0] sm:$0xff]
        %v3148 = vld [vmem:[#allocation9 + $0x14f8] sm:$0xff]
        %v3149 = vld [vmem:[#allocation9 + $0x1500] sm:$0xff]
        %v3150 = vld [vmem:[#allocation9 + $0x1508] sm:$0xff]
        %v3151 = vld [vmem:[#allocation9 + $0x1510] sm:$0xff]
        %v3152 = vld [vmem:[#allocation9 + $0x1518] sm:$0xff]
        %v3153 = vld [vmem:[#allocation9 + $0x1520] sm:$0xff]
        %v3154 = vld [vmem:[#allocation9 + $0x1528] sm:$0xff]
        %v3155 = vld [vmem:[#allocation9 + $0x1530] sm:$0xff]
        %v3156 = vld [vmem:[#allocation9 + $0x1538] sm:$0xff]
        %v3157 = vld [vmem:[#allocation9 + $0x1540] sm:$0xff]
        %v3158 = vld [vmem:[#allocation9 + $0x1548] sm:$0xff]
        %v3159 = vld [vmem:[#allocation9 + $0x1550] sm:$0xff]
        %v3160 = vld [vmem:[#allocation9 + $0x1558] sm:$0xff]
        %v3161 = vld [vmem:[#allocation9 + $0x1560] sm:$0xff]
        %v3162 = vld [vmem:[#allocation9 + $0x1568] sm:$0xff]
        %v3163 = vld [vmem:[#allocation9 + $0x1570] sm:$0xff]
        %v3164 = vld [vmem:[#allocation9 + $0x1578] sm:$0xff]
        %v3165 = vld [vmem:[#allocation9 + $0x1580] sm:$0xff]
        %v3166 = vld [vmem:[#allocation9 + $0x1588] sm:$0xff]
        %v3167 = vld [vmem:[#allocation9 + $0x1590] sm:$0xff]
        %v3168 = vld [vmem:[#allocation9 + $0x1598] sm:$0xff]
        %v3169 = vld [vmem:[#allocation9 + $0x15a0] sm:$0xff]
        %v3170 = vld [vmem:[#allocation9 + $0x15a8] sm:$0xff]
        %v3171 = vld [vmem:[#allocation9 + $0x15b0] sm:$0xff]
        %v3172 = vld [vmem:[#allocation9 + $0x15b8] sm:$0xff]
        %v3173 = vld [vmem:[#allocation9 + $0x15c0] sm:$0xff]
        %v3174 = vld [vmem:[#allocation9 + $0x15c8] sm:$0xff]
        %v3175 = vld [vmem:[#allocation9 + $0x15d0] sm:$0xff]
        %v3176 = vld [vmem:[#allocation9 + $0x15d8] sm:$0xff]
        %v3177 = vld [vmem:[#allocation9 + $0x15e0] sm:$0xff]
        %v3178 = vld [vmem:[#allocation9 + $0x15e8] sm:$0xff]
        %v3179 = vld [vmem:[#allocation9 + $0x15f0] sm:$0xff]
        %v3180 = vld [vmem:[#allocation9 + $0x15f8] sm:$0xff]
        %v3181 = vld [vmem:[#allocation9 + $0x1600] sm:$0xff]
        %v3182 = vld [vmem:[#allocation9 + $0x1608] sm:$0xff]
        %v3183 = vld [vmem:[#allocation9 + $0x1610] sm:$0xff]
        %v3184 = vld [vmem:[#allocation9 + $0x1618] sm:$0xff]
        %v3185 = vld [vmem:[#allocation9 + $0x1620] sm:$0xff]
        %v3186 = vld [vmem:[#allocation9 + $0x1628] sm:$0xff]
        %v3187 = vld [vmem:[#allocation9 + $0x1630] sm:$0xff]
        %v3188 = vld [vmem:[#allocation9 + $0x1638] sm:$0xff]
        %v3189 = vld [vmem:[#allocation9 + $0x1640] sm:$0xff]
        %v3190 = vld [vmem:[#allocation9 + $0x1648] sm:$0xff]
        %v3191 = vld [vmem:[#allocation9 + $0x1650] sm:$0xff]
        %v3192 = vld [vmem:[#allocation9 + $0x1658] sm:$0xff]
        %v3193 = vld [vmem:[#allocation9 + $0x1660] sm:$0xff]
        %v3194 = vld [vmem:[#allocation9 + $0x1668] sm:$0xff]
        %v3195 = vld [vmem:[#allocation9 + $0x1670] sm:$0xff]
        %v3196 = vld [vmem:[#allocation9 + $0x1678] sm:$0xff]
        %v3197 = vld [vmem:[#allocation9 + $0x1680] sm:$0xff]
        %v3198 = vld [vmem:[#allocation9 + $0x1688] sm:$0xff]
        %v3199 = vld [vmem:[#allocation9 + $0x1690] sm:$0xff]
        %v3200 = vld [vmem:[#allocation9 + $0x1698] sm:$0xff]
        %v3201 = vld [vmem:[#allocation9 + $0x16a0] sm:$0xff]
        %v3202 = vld [vmem:[#allocation9 + $0x16a8] sm:$0xff]
        %v3203 = vld [vmem:[#allocation9 + $0x16b0] sm:$0xff]
        %v3204 = vld [vmem:[#allocation9 + $0x16b8] sm:$0xff]
        %v3205 = vld [vmem:[#allocation9 + $0x16c0] sm:$0xff]
        %v3206 = vld [vmem:[#allocation9 + $0x16c8] sm:$0xff]
        %v3207 = vld [vmem:[#allocation9 + $0x16d0] sm:$0xff]
        %v3208 = vld [vmem:[#allocation9 + $0x16d8] sm:$0xff]
        %v3209 = vld [vmem:[#allocation9 + $0x16e0] sm:$0xff]
        %v3210 = vld [vmem:[#allocation9 + $0x16e8] sm:$0xff]
        %v3211 = vld [vmem:[#allocation9 + $0x16f0] sm:$0xff]
        %v3212 = vld [vmem:[#allocation9 + $0x16f8] sm:$0xff]
        %v3213 = vld [vmem:[#allocation9 + $0x1700] sm:$0xff]
        %v3214 = vld [vmem:[#allocation9 + $0x1708] sm:$0xff]
        %v3215 = vld [vmem:[#allocation9 + $0x1710] sm:$0xff]
        %v3216 = vld [vmem:[#allocation9 + $0x1718] sm:$0xff]
        %v3217 = vld [vmem:[#allocation9 + $0x1720] sm:$0xff]
        %v3218 = vld [vmem:[#allocation9 + $0x1728] sm:$0xff]
        %v3219 = vld [vmem:[#allocation9 + $0x1730] sm:$0xff]
        %v3220 = vld [vmem:[#allocation9 + $0x1738] sm:$0xff]
        %v3221 = vld [vmem:[#allocation9 + $0x1740] sm:$0xff]
        %v3222 = vld [vmem:[#allocation9 + $0x1748] sm:$0xff]
        %v3223 = vld [vmem:[#allocation9 + $0x1750] sm:$0xff]
        %v3224 = vld [vmem:[#allocation9 + $0x1758] sm:$0xff]
        %v3225 = vld [vmem:[#allocation9 + $0x1760] sm:$0xff]
        %v3226 = vld [vmem:[#allocation9 + $0x1768] sm:$0xff]
        %v3227 = vld [vmem:[#allocation9 + $0x1770] sm:$0xff]
        %v3228 = vld [vmem:[#allocation9 + $0x1778] sm:$0xff]
        %v3229 = vld [vmem:[#allocation9 + $0x1780] sm:$0xff]
        %v3230 = vld [vmem:[#allocation9 + $0x1788] sm:$0xff]
        %v3231 = vld [vmem:[#allocation9 + $0x1790] sm:$0xff]
        %v3232 = vld [vmem:[#allocation9 + $0x1798] sm:$0xff]
        %v3233 = vld [vmem:[#allocation9 + $0x17a0] sm:$0xff]
        %v3234 = vld [vmem:[#allocation9 + $0x17a8] sm:$0xff]
        %v3235 = vld [vmem:[#allocation9 + $0x17b0] sm:$0xff]
        %v3236 = vld [vmem:[#allocation9 + $0x17b8] sm:$0xff]
        %v3237 = vld [vmem:[#allocation9 + $0x17c0] sm:$0xff]
        %v3238 = vld [vmem:[#allocation9 + $0x17c8] sm:$0xff]
        %v3239 = vld [vmem:[#allocation9 + $0x17d0] sm:$0xff]
        %v3240 = vld [vmem:[#allocation9 + $0x17d8] sm:$0xff]
        %v3241 = vld [vmem:[#allocation9 + $0x17e0] sm:$0xff]
        %v3242 = vld [vmem:[#allocation9 + $0x17e8] sm:$0xff]
        %v3243 = vld [vmem:[#allocation9 + $0x17f0] sm:$0xff]
        %v3244 = vld [vmem:[#allocation9 + $0x17f8] sm:$0xff]
        %v3245 = vld [vmem:[#allocation11] sm:$0xf]
        %v3247 = vlaneseq
        %v3248 = vshrl.u32 %v3247, 7
        %v3249 = vsub.s32 0, %v3248
        %v3250 = vrot.slane %v3245, %v3249
        %v3251 = vlaneseq
        %v3252 = vshrl.u32 %v3251, 7
        %v3253 = vsub.s32 1, %v3252
        %v3254 = vrot.slane %v3245, %v3253
        %v3255 = vlaneseq
        %v3256 = vshrl.u32 %v3255, 7
        %v3257 = vsub.s32 2, %v3256
        %v3258 = vrot.slane %v3245, %v3257
        %v3259 = vlaneseq
        %v3260 = vshrl.u32 %v3259, 7
        %v3261 = vsub.s32 3, %v3260
        %v3262 = vrot.slane %v3245, %v3261
        %3267 = vmatprep.subr.mxu0 %v2478
        %3268 = vmatpush1.msra.mxu0 %v2477
        %3269 = vmatprep.subr.mxu0 %v2482
        %3270 = vmatpush1.msra.mxu0 %v2481
        %3271 = vmatprep.subr.mxu0 %v2486
        %3272 = vmatpush1.msra.mxu0 %v2485
        %3273 = vmatprep.subr.mxu0 %v2490
        %3274 = vmatpush1.msra.mxu0 %v2489
        %3275 = vmatprep.subr.mxu0 %v2494
        %3276 = vmatpush1.msra.mxu0 %v2493
        %3277 = vmatprep.subr.mxu0 %v2498
        %3278 = vmatpush1.msra.mxu0 %v2497
        %3279 = vmatprep.subr.mxu0 %v2502
        %3280 = vmatpush1.msra.mxu0 %v2501
        %3281 = vmatprep.subr.mxu0 %v2506
        %3282 = vmatpush1.msra.mxu0 %v2505
        %3283 = vmatprep.subr.mxu0 %v2510
        %3284 = vmatpush1.msra.mxu0 %v2509
        %3285 = vmatprep.subr.mxu0 %v2514
        %3286 = vmatpush1.msra.mxu0 %v2513
        %3287 = vmatprep.subr.mxu0 %v2518
        %3288 = vmatpush1.msra.mxu0 %v2517
        %3289 = vmatprep.subr.mxu0 %v2522
        %3290 = vmatpush1.msra.mxu0 %v2521
        %3291 = vmatprep.subr.mxu0 %v2526
        %3292 = vmatpush1.msra.mxu0 %v2525
        %3293 = vmatprep.subr.mxu0 %v2530
        %3294 = vmatpush1.msra.mxu0 %v2529
        %3295 = vmatprep.subr.mxu0 %v2534
        %3296 = vmatpush1.msra.mxu0 %v2533
        %3297 = vmatprep.subr.mxu0 %v2538
        %3298 = vmatpush1.msra.mxu0 %v2537
        %3299 = vmatprep.subr.mxu0 %v2542
        %3300 = vmatpush1.msra.mxu0 %v2541
        %3301 = vmatprep.subr.mxu0 %v2546
        %3302 = vmatpush1.msra.mxu0 %v2545
        %3303 = vmatprep.subr.mxu0 %v2550
        %3304 = vmatpush1.msra.mxu0 %v2549
        %3305 = vmatprep.subr.mxu0 %v2554
        %3306 = vmatpush1.msra.mxu0 %v2553
        %3307 = vmatprep.subr.mxu0 %v2558
        %3308 = vmatpush1.msra.mxu0 %v2557
        %3309 = vmatprep.subr.mxu0 %v2562
        %3310 = vmatpush1.msra.mxu0 %v2561
        %3311 = vmatprep.subr.mxu0 %v2566
        %3312 = vmatpush1.msra.mxu0 %v2565
        %3313 = vmatprep.subr.mxu0 %v2570
        %3314 = vmatpush1.msra.mxu0 %v2569
        %3315 = vmatprep.subr.mxu0 %v2574
        %3316 = vmatpush1.msra.mxu0 %v2573
        %3317 = vmatprep.subr.mxu0 %v2578
        %3318 = vmatpush1.msra.mxu0 %v2577
        %3319 = vmatprep.subr.mxu0 %v2582
        %3320 = vmatpush1.msra.mxu0 %v2581
        %3321 = vmatprep.subr.mxu0 %v2586
        %3322 = vmatpush1.msra.mxu0 %v2585
        %3323 = vmatprep.subr.mxu0 %v2590
        %3324 = vmatpush1.msra.mxu0 %v2589
        %3325 = vmatprep.subr.mxu0 %v2594
        %3326 = vmatpush1.msra.mxu0 %v2593
        %3327 = vmatprep.subr.mxu0 %v2598
        %3328 = vmatpush1.msra.mxu0 %v2597
        %3329 = vmatprep.subr.mxu0 %v2602
        %3330 = vmatpush1.msra.mxu0 %v2601
        %3331 = vmatprep.mubr.f32.mxu0 %v2454
        %3332 = vmatmul.mubr.f32.gmra.mrb[0].mxu0 %v2453
        %v3333 = vpop.f32.mrb[0].mxu0
        %v3334 = vadd.f32 %v3250, %v3333
        %v3335 = vpop.f32.mrb[0].mxu0
        %v3336 = vadd.f32 %v3254, %v3335
        %3337 = vmatprep.mubr.f32.mxu0 %v2466
        %3338 = vmatmul.mubr.f32.gmra.mrb[0].mxu0 %v2465
        %v3339 = vpop.f32.mrb[0].mxu0
        %v3340 = vadd.f32 %v3250, %v3339
        %v3341 = vpop.f32.mrb[0].mxu0
        %v3342 = vadd.f32 %v3254, %v3341
        %3343 = vdwg.mxu0
        %3344 = vmatprep.subr.mxu0 %v2606
        %3345 = vmatpush1.msra.mxu0 %v2605
        %3346 = vmatprep.subr.mxu0 %v2610
        %3347 = vmatpush1.msra.mxu0 %v2609
        %3348 = vmatprep.subr.mxu0 %v2614
        %3349 = vmatpush1.msra.mxu0 %v2613
        %3350 = vmatprep.subr.mxu0 %v2618
        %3351 = vmatpush1.msra.mxu0 %v2617
        %3352 = vmatprep.subr.mxu0 %v2622
        %3353 = vmatpush1.msra.mxu0 %v2621
        %3354 = vmatprep.subr.mxu0 %v2626
        %3355 = vmatpush1.msra.mxu0 %v2625
        %3356 = vmatprep.subr.mxu0 %v2630
        %3357 = vmatpush1.msra.mxu0 %v2629
        %3358 = vmatprep.subr.mxu0 %v2634
        %3359 = vmatpush1.msra.mxu0 %v2633
        %3360 = vmatprep.subr.mxu0 %v2638
        %3361 = vmatpush1.msra.mxu0 %v2637
        %3362 = vmatprep.subr.mxu0 %v2642
        %3363 = vmatpush1.msra.mxu0 %v2641
        %3364 = vmatprep.subr.mxu0 %v2646
        %3365 = vmatpush1.msra.mxu0 %v2645
        %3366 = vmatprep.subr.mxu0 %v2650
        %3367 = vmatpush1.msra.mxu0 %v2649
        %3368 = vmatprep.subr.mxu0 %v2654
        %3369 = vmatpush1.msra.mxu0 %v2653
        %3370 = vmatprep.subr.mxu0 %v2658
        %3371 = vmatpush1.msra.mxu0 %v2657
        %3372 = vmatprep.subr.mxu0 %v2662
        %3373 = vmatpush1.msra.mxu0 %v2661
        %3374 = vmatprep.subr.mxu0 %v2666
        %3375 = vmatpush1.msra.mxu0 %v2665
        %3376 = vmatprep.subr.mxu0 %v2670
        %3377 = vmatpush1.msra.mxu0 %v2669
        %3378 = vmatprep.subr.mxu0 %v2674
        %3379 = vmatpush1.msra.mxu0 %v2673
        %3380 = vmatprep.subr.mxu0 %v2678
        %3381 = vmatpush1.msra.mxu0 %v2677
        %3382 = vmatprep.subr.mxu0 %v2682
        %3383 = vmatpush1.msra.mxu0 %v2681
        %3384 = vmatprep.subr.mxu0 %v2686
        %3385 = vmatpush1.msra.mxu0 %v2685
        %3386 = vmatprep.subr.mxu0 %v2690
        %3387 = vmatpush1.msra.mxu0 %v2689
        %3388 = vmatprep.subr.mxu0 %v2694
        %3389 = vmatpush1.msra.mxu0 %v2693
        %3390 = vmatprep.subr.mxu0 %v2698
        %3391 = vmatpush1.msra.mxu0 %v2697
        %3392 = vmatprep.subr.mxu0 %v2702
        %3393 = vmatpush1.msra.mxu0 %v2701
        %3394 = vmatprep.subr.mxu0 %v2706
        %3395 = vmatpush1.msra.mxu0 %v2705
        %3396 = vmatprep.subr.mxu0 %v2710
        %3397 = vmatpush1.msra.mxu0 %v2709
        %3398 = vmatprep.subr.mxu0 %v2714
        %3399 = vmatpush1.msra.mxu0 %v2713
        %3400 = vmatprep.subr.mxu0 %v2718
        %3401 = vmatpush1.msra.mxu0 %v2717
        %3402 = vmatprep.subr.mxu0 %v2722
        %3403 = vmatpush1.msra.mxu0 %v2721
        %3404 = vmatprep.subr.mxu0 %v2726
        %3405 = vmatpush1.msra.mxu0 %v2725
        %3406 = vmatprep.subr.mxu0 %v2730
        %3407 = vmatpush1.msra.mxu0 %v2729
        %3408 = vmatprep.mubr.f32.mxu0 %v2456
        %3409 = vmatmul.mubr.f32.gmra.mrb[0].mxu0 %v2455
        %v3410 = vpop.f32.mrb[0].mxu0
        %v3411 = vadd.f32 %v3334, %v3410
        %v3412 = vpop.f32.mrb[0].mxu0
        %v3413 = vadd.f32 %v3336, %v3412
        %3414 = vmatprep.mubr.f32.mxu0 %v2468
        %3415 = vmatmul.mubr.f32.gmra.mrb[0].mxu0 %v2467
        %v3416 = vpop.f32.mrb[0].mxu0
        %v3417 = vadd.f32 %v3340, %v3416
        %v3418 = vpop.f32.mrb[0].mxu0
        %v3419 = vadd.f32 %v3342, %v3418
        %3420 = vdwg.mxu0
        %3421 = vmatprep.subr.mxu0 %v2734
        %3422 = vmatpush1.msra.mxu0 %v2733
        %3423 = vmatprep.subr.mxu0 %v2738
        %3424 = vmatpush1.msra.mxu0 %v2737
        %3425 = vmatprep.subr.mxu0 %v2742
        %3426 = vmatpush1.msra.mxu0 %v2741
        %3427 = vmatprep.subr.mxu0 %v2746
        %3428 = vmatpush1.msra.mxu0 %v2745
        %3429 = vmatprep.subr.mxu0 %v2750
        %3430 = vmatpush1.msra.mxu0 %v2749
        %3431 = vmatprep.subr.mxu0 %v2754
        %3432 = vmatpush1.msra.mxu0 %v2753
        %3433 = vmatprep.subr.mxu0 %v2758
        %3434 = vmatpush1.msra.mxu0 %v2757
        %3435 = vmatprep.subr.mxu0 %v2762
        %3436 = vmatpush1.msra.mxu0 %v2761
        %3437 = vmatprep.subr.mxu0 %v2766
        %3438 = vmatpush1.msra.mxu0 %v2765
        %3439 = vmatprep.subr.mxu0 %v2770
        %3440 = vmatpush1.msra.mxu0 %v2769
        %3441 = vmatprep.subr.mxu0 %v2774
        %3442 = vmatpush1.msra.mxu0 %v2773
        %3443 = vmatprep.subr.mxu0 %v2778
        %3444 = vmatpush1.msra.mxu0 %v2777
        %3445 = vmatprep.subr.mxu0 %v2782
        %3446 = vmatpush1.msra.mxu0 %v2781
        %3447 = vmatprep.subr.mxu0 %v2786
        %3448 = vmatpush1.msra.mxu0 %v2785
        %3449 = vmatprep.subr.mxu0 %v2790
        %3450 = vmatpush1.msra.mxu0 %v2789
        %3451 = vmatprep.subr.mxu0 %v2794
        %3452 = vmatpush1.msra.mxu0 %v2793
        %3453 = vmatprep.subr.mxu0 %v2798
        %3454 = vmatpush1.msra.mxu0 %v2797
        %3455 = vmatprep.subr.mxu0 %v2802
        %3456 = vmatpush1.msra.mxu0 %v2801
        %3457 = vmatprep.subr.mxu0 %v2806
        %3458 = vmatpush1.msra.mxu0 %v2805
        %3459 = vmatprep.subr.mxu0 %v2810
        %3460 = vmatpush1.msra.mxu0 %v2809
        %3461 = vmatprep.subr.mxu0 %v2814
        %3462 = vmatpush1.msra.mxu0 %v2813
        %3463 = vmatprep.subr.mxu0 %v2818
        %3464 = vmatpush1.msra.mxu0 %v2817
        %3465 = vmatprep.subr.mxu0 %v2822
        %3466 = vmatpush1.msra.mxu0 %v2821
        %3467 = vmatprep.subr.mxu0 %v2826
        %3468 = vmatpush1.msra.mxu0 %v2825
        %3469 = vmatprep.subr.mxu0 %v2830
        %3470 = vmatpush1.msra.mxu0 %v2829
        %3471 = vmatprep.subr.mxu0 %v2834
        %3472 = vmatpush1.msra.mxu0 %v2833
        %3473 = vmatprep.subr.mxu0 %v2838
        %3474 = vmatpush1.msra.mxu0 %v2837
        %3475 = vmatprep.subr.mxu0 %v2842
        %3476 = vmatpush1.msra.mxu0 %v2841
        %3477 = vmatprep.subr.mxu0 %v2846
        %3478 = vmatpush1.msra.mxu0 %v2845
        %3479 = vmatprep.subr.mxu0 %v2850
        %3480 = vmatpush1.msra.mxu0 %v2849
        %3481 = vmatprep.subr.mxu0 %v2854
        %3482 = vmatpush1.msra.mxu0 %v2853
        %3483 = vmatprep.subr.mxu0 %v2858
        %3484 = vmatpush1.msra.mxu0 %v2857
        %3485 = vmatprep.mubr.f32.mxu0 %v2458
        %3486 = vmatmul.mubr.f32.gmra.mrb[0].mxu0 %v2457
        %v3487 = vpop.f32.mrb[0].mxu0
        %v3488 = vadd.f32 %v3411, %v3487
        %v3489 = vpop.f32.mrb[0].mxu0
        %v3490 = vadd.f32 %v3413, %v3489
        %3491 = vmatprep.mubr.f32.mxu0 %v2470
        %3492 = vmatmul.mubr.f32.gmra.mrb[0].mxu0 %v2469
        %v3493 = vpop.f32.mrb[0].mxu0
        %v3494 = vadd.f32 %v3417, %v3493
        %v3495 = vpop.f32.mrb[0].mxu0
        %v3496 = vadd.f32 %v3419, %v3495
        %3497 = vdwg.mxu0
        %3498 = vmatprep.subr.mxu0 %v2862
        %3499 = vmatpush1.msra.mxu0 %v2861
        %3500 = vmatprep.subr.mxu0 %v2866
        %3501 = vmatpush1.msra.mxu0 %v2865
        %3502 = vmatprep.subr.mxu0 %v2870
        %3503 = vmatpush1.msra.mxu0 %v2869
        %3504 = vmatprep.subr.mxu0 %v2874
        %3505 = vmatpush1.msra.mxu0 %v2873
        %3506 = vmatprep.subr.mxu0 %v2878
        %3507 = vmatpush1.msra.mxu0 %v2877
        %3508 = vmatprep.subr.mxu0 %v2882
        %3509 = vmatpush1.msra.mxu0 %v2881
        %3510 = vmatprep.subr.mxu0 %v2886
        %3511 = vmatpush1.msra.mxu0 %v2885
        %3512 = vmatprep.subr.mxu0 %v2890
        %3513 = vmatpush1.msra.mxu0 %v2889
        %3514 = vmatprep.subr.mxu0 %v2894
        %3515 = vmatpush1.msra.mxu0 %v2893
        %3516 = vmatprep.subr.mxu0 %v2898
        %3517 = vmatpush1.msra.mxu0 %v2897
        %3518 = vmatprep.subr.mxu0 %v2902
        %3519 = vmatpush1.msra.mxu0 %v2901
        %3520 = vmatprep.subr.mxu0 %v2906
        %3521 = vmatpush1.msra.mxu0 %v2905
        %3522 = vmatprep.subr.mxu0 %v2910
        %3523 = vmatpush1.msra.mxu0 %v2909
        %3524 = vmatprep.subr.mxu0 %v2914
        %3525 = vmatpush1.msra.mxu0 %v2913
        %3526 = vmatprep.subr.mxu0 %v2918
        %3527 = vmatpush1.msra.mxu0 %v2917
        %3528 = vmatprep.subr.mxu0 %v2922
        %3529 = vmatpush1.msra.mxu0 %v2921
        %3530 = vmatprep.subr.mxu0 %v2926
        %3531 = vmatpush1.msra.mxu0 %v2925
        %3532 = vmatprep.subr.mxu0 %v2930
        %3533 = vmatpush1.msra.mxu0 %v2929
        %3534 = vmatprep.subr.mxu0 %v2934
        %3535 = vmatpush1.msra.mxu0 %v2933
        %3536 = vmatprep.subr.mxu0 %v2938
        %3537 = vmatpush1.msra.mxu0 %v2937
        %3538 = vmatprep.subr.mxu0 %v2942
        %3539 = vmatpush1.msra.mxu0 %v2941
        %3540 = vmatprep.subr.mxu0 %v2946
        %3541 = vmatpush1.msra.mxu0 %v2945
        %3542 = vmatprep.subr.mxu0 %v2950
        %3543 = vmatpush1.msra.mxu0 %v2949
        %3544 = vmatprep.subr.mxu0 %v2954
        %3545 = vmatpush1.msra.mxu0 %v2953
        %3546 = vmatprep.subr.mxu0 %v2958
        %3547 = vmatpush1.msra.mxu0 %v2957
        %3548 = vmatprep.subr.mxu0 %v2962
        %3549 = vmatpush1.msra.mxu0 %v2961
        %3550 = vmatprep.subr.mxu0 %v2966
        %3551 = vmatpush1.msra.mxu0 %v2965
        %3552 = vmatprep.subr.mxu0 %v2970
        %3553 = vmatpush1.msra.mxu0 %v2969
        %3554 = vmatprep.subr.mxu0 %v2974
        %3555 = vmatpush1.msra.mxu0 %v2973
        %3556 = vmatprep.subr.mxu0 %v2978
        %3557 = vmatpush1.msra.mxu0 %v2977
        %3558 = vmatprep.subr.mxu0 %v2982
        %3559 = vmatpush1.msra.mxu0 %v2981
        %3560 = vmatprep.subr.mxu0 %v2986
        %3561 = vmatpush1.msra.mxu0 %v2985
        %3562 = vmatprep.mubr.f32.mxu0 %v2460
        %3563 = vmatmul.mubr.f32.gmra.mrb[0].mxu0 %v2459
        %v3564 = vpop.f32.mrb[0].mxu0
        %v3565 = vadd.f32 %v3488, %v3564
        %v3566 = vpop.f32.mrb[0].mxu0
        %v3567 = vadd.f32 %v3490, %v3566
        %3568 = vmatprep.mubr.f32.mxu0 %v2472
        %3569 = vmatmul.mubr.f32.gmra.mrb[0].mxu0 %v2471
        %v3570 = vpop.f32.mrb[0].mxu0
        %v3571 = vadd.f32 %v3494, %v3570
        %v3572 = vpop.f32.mrb[0].mxu0
        %v3573 = vadd.f32 %v3496, %v3572
        %3574 = vdwg.mxu0
        %3575 = vmatprep.subr.mxu0 %v2990
        %3576 = vmatpush1.msra.mxu0 %v2989
        %3577 = vmatprep.subr.mxu0 %v2994
        %3578 = vmatpush1.msra.mxu0 %v2993
        %3579 = vmatprep.subr.mxu0 %v2998
        %3580 = vmatpush1.msra.mxu0 %v2997
        %3581 = vmatprep.subr.mxu0 %v3002
        %3582 = vmatpush1.msra.mxu0 %v3001
        %3583 = vmatprep.subr.mxu0 %v3006
        %3584 = vmatpush1.msra.mxu0 %v3005
        %3585 = vmatprep.subr.mxu0 %v3010
        %3586 = vmatpush1.msra.mxu0 %v3009
        %3587 = vmatprep.subr.mxu0 %v3014
        %3588 = vmatpush1.msra.mxu0 %v3013
        %3589 = vmatprep.subr.mxu0 %v3018
        %3590 = vmatpush1.msra.mxu0 %v3017
        %3591 = vmatprep.subr.mxu0 %v3022
        %3592 = vmatpush1.msra.mxu0 %v3021
        %3593 = vmatprep.subr.mxu0 %v3026
        %3594 = vmatpush1.msra.mxu0 %v3025
        %3595 = vmatprep.subr.mxu0 %v3030
        %3596 = vmatpush1.msra.mxu0 %v3029
        %3597 = vmatprep.subr.mxu0 %v3034
        %3598 = vmatpush1.msra.mxu0 %v3033
        %3599 = vmatprep.subr.mxu0 %v3038
        %3600 = vmatpush1.msra.mxu0 %v3037
        %3601 = vmatprep.subr.mxu0 %v3042
        %3602 = vmatpush1.msra.mxu0 %v3041
        %3603 = vmatprep.subr.mxu0 %v3046
        %3604 = vmatpush1.msra.mxu0 %v3045
        %3605 = vmatprep.subr.mxu0 %v3050
        %3606 = vmatpush1.msra.mxu0 %v3049
        %3607 = vmatprep.subr.mxu0 %v3054
        %3608 = vmatpush1.msra.mxu0 %v3053
        %3609 = vmatprep.subr.mxu0 %v3058
        %3610 = vmatpush1.msra.mxu0 %v3057
        %3611 = vmatprep.subr.mxu0 %v3062
        %3612 = vmatpush1.msra.mxu0 %v3061
        %3613 = vmatprep.subr.mxu0 %v3066
        %3614 = vmatpush1.msra.mxu0 %v3065
        %3615 = vmatprep.subr.mxu0 %v3070
        %3616 = vmatpush1.msra.mxu0 %v3069
        %3617 = vmatprep.subr.mxu0 %v3074
        %3618 = vmatpush1.msra.mxu0 %v3073
        %3619 = vmatprep.subr.mxu0 %v3078
        %3620 = vmatpush1.msra.mxu0 %v3077
        %3621 = vmatprep.subr.mxu0 %v3082
        %3622 = vmatpush1.msra.mxu0 %v3081
        %3623 = vmatprep.subr.mxu0 %v3086
        %3624 = vmatpush1.msra.mxu0 %v3085
        %3625 = vmatprep.subr.mxu0 %v3090
        %3626 = vmatpush1.msra.mxu0 %v3089
        %3627 = vmatprep.subr.mxu0 %v3094
        %3628 = vmatpush1.msra.mxu0 %v3093
        %3629 = vmatprep.subr.mxu0 %v3098
        %3630 = vmatpush1.msra.mxu0 %v3097
        %3631 = vmatprep.subr.mxu0 %v3102
        %3632 = vmatpush1.msra.mxu0 %v3101
        %3633 = vmatprep.subr.mxu0 %v3106
        %3634 = vmatpush1.msra.mxu0 %v3105
        %3635 = vmatprep.subr.mxu0 %v3110
        %3636 = vmatpush1.msra.mxu0 %v3109
        %3637 = vmatprep.subr.mxu0 %v3114
        %3638 = vmatpush1.msra.mxu0 %v3113
        %3639 = vmatprep.mubr.f32.mxu0 %v2462
        %3640 = vmatmul.mubr.f32.gmra.mrb[0].mxu0 %v2461
        %v3641 = vpop.f32.mrb[0].mxu0
        %v3642 = vadd.f32 %v3565, %v3641
        %v3643 = vpop.f32.mrb[0].mxu0
        %v3644 = vadd.f32 %v3567, %v3643
        %3645 = vmatprep.mubr.f32.mxu0 %v2474
        %3646 = vmatmul.mubr.f32.gmra.mrb[0].mxu0 %v2473
        %v3647 = vpop.f32.mrb[0].mxu0
        %v3648 = vadd.f32 %v3571, %v3647
        %v3649 = vpop.f32.mrb[0].mxu0
        %v3650 = vadd.f32 %v3573, %v3649
        %3651 = vdwg.mxu0
        %3652 = vmatprep.subr.mxu0 %v3118
        %3653 = vmatpush1.msra.mxu0 %v3117
        %3654 = vmatprep.subr.mxu0 %v3122
        %3655 = vmatpush1.msra.mxu0 %v3121
        %3656 = vmatprep.subr.mxu0 %v3126
        %3657 = vmatpush1.msra.mxu0 %v3125
        %3658 = vmatprep.subr.mxu0 %v3130
        %3659 = vmatpush1.msra.mxu0 %v3129
        %3660 = vmatprep.subr.mxu0 %v3134
        %3661 = vmatpush1.msra.mxu0 %v3133
        %3662 = vmatprep.subr.mxu0 %v3138
        %3663 = vmatpush1.msra.mxu0 %v3137
        %3664 = vmatprep.subr.mxu0 %v3142
        %3665 = vmatpush1.msra.mxu0 %v3141
        %3666 = vmatprep.subr.mxu0 %v3146
        %3667 = vmatpush1.msra.mxu0 %v3145
        %3668 = vmatprep.subr.mxu0 %v3150
        %3669 = vmatpush1.msra.mxu0 %v3149
        %3670 = vmatprep.subr.mxu0 %v3154
        %3671 = vmatpush1.msra.mxu0 %v3153
        %3672 = vmatprep.subr.mxu0 %v3158
        %3673 = vmatpush1.msra.mxu0 %v3157
        %3674 = vmatprep.subr.mxu0 %v3162
        %3675 = vmatpush1.msra.mxu0 %v3161
        %3676 = vmatprep.subr.mxu0 %v3166
        %3677 = vmatpush1.msra.mxu0 %v3165
        %3678 = vmatprep.subr.mxu0 %v3170
        %3679 = vmatpush1.msra.mxu0 %v3169
        %3680 = vmatprep.subr.mxu0 %v3174
        %3681 = vmatpush1.msra.mxu0 %v3173
        %3682 = vmatprep.subr.mxu0 %v3178
        %3683 = vmatpush1.msra.mxu0 %v3177
        %3684 = vmatprep.subr.mxu0 %v3182
        %3685 = vmatpush1.msra.mxu0 %v3181
        %3686 = vmatprep.subr.mxu0 %v3186
        %3687 = vmatpush1.msra.mxu0 %v3185
        %3688 = vmatprep.subr.mxu0 %v3190
        %3689 = vmatpush1.msra.mxu0 %v3189
        %3690 = vmatprep.subr.mxu0 %v3194
        %3691 = vmatpush1.msra.mxu0 %v3193
        %3692 = vmatprep.subr.mxu0 %v3198
        %3693 = vmatpush1.msra.mxu0 %v3197
        %3694 = vmatprep.subr.mxu0 %v3202
        %3695 = vmatpush1.msra.mxu0 %v3201
        %3696 = vmatprep.subr.mxu0 %v3206
        %3697 = vmatpush1.msra.mxu0 %v3205
        %3698 = vmatprep.subr.mxu0 %v3210
        %3699 = vmatpush1.msra.mxu0 %v3209
        %3700 = vmatprep.subr.mxu0 %v3214
        %3701 = vmatpush1.msra.mxu0 %v3213
        %3702 = vmatprep.subr.mxu0 %v3218
        %3703 = vmatpush1.msra.mxu0 %v3217
        %3704 = vmatprep.subr.mxu0 %v3222
        %3705 = vmatpush1.msra.mxu0 %v3221
        %3706 = vmatprep.subr.mxu0 %v3226
        %3707 = vmatpush1.msra.mxu0 %v3225
        %3708 = vmatprep.subr.mxu0 %v3230
        %3709 = vmatpush1.msra.mxu0 %v3229
        %3710 = vmatprep.subr.mxu0 %v3234
        %3711 = vmatpush1.msra.mxu0 %v3233
        %3712 = vmatprep.subr.mxu0 %v3238
        %3713 = vmatpush1.msra.mxu0 %v3237
        %3714 = vmatprep.subr.mxu0 %v3242
        %3715 = vmatpush1.msra.mxu0 %v3241
        %3716 = vmatprep.mubr.f32.mxu0 %v2464
        %3717 = vmatmul.mubr.f32.gmra.mrb[0].mxu0 %v2463
        %v3718 = vpop.f32.mrb[0].mxu0
        %v3719 = vadd.f32 %v3642, %v3718
        %v3720 = vpop.f32.mrb[0].mxu0
        %v3721 = vadd.f32 %v3644, %v3720
        %3722 = vmatprep.mubr.f32.mxu0 %v2476
        %3723 = vmatmul.mubr.f32.gmra.mrb[0].mxu0 %v2475
        %v3724 = vpop.f32.mrb[0].mxu0
        %v3725 = vadd.f32 %v3648, %v3724
        %v3726 = vpop.f32.mrb[0].mxu0
        %v3727 = vadd.f32 %v3650, %v3726
        %3728 = vdwg.mxu0
        %3729 = vmatprep.subr.mxu0 %v2480
        %3730 = vmatpush1.msra.mxu0 %v2479
        %3731 = vmatprep.subr.mxu0 %v2484
        %3732 = vmatpush1.msra.mxu0 %v2483
        %3733 = vmatprep.subr.mxu0 %v2488
        %3734 = vmatpush1.msra.mxu0 %v2487
        %3735 = vmatprep.subr.mxu0 %v2492
        %3736 = vmatpush1.msra.mxu0 %v2491
        %3737 = vmatprep.subr.mxu0 %v2496
        %3738 = vmatpush1.msra.mxu0 %v2495
        %3739 = vmatprep.subr.mxu0 %v2500
        %3740 = vmatpush1.msra.mxu0 %v2499
        %3741 = vmatprep.subr.mxu0 %v2504
        %3742 = vmatpush1.msra.mxu0 %v2503
        %3743 = vmatprep.subr.mxu0 %v2508
        %3744 = vmatpush1.msra.mxu0 %v2507
        %3745 = vmatprep.subr.mxu0 %v2512
        %3746 = vmatpush1.msra.mxu0 %v2511
        %3747 = vmatprep.subr.mxu0 %v2516
        %3748 = vmatpush1.msra.mxu0 %v2515
        %3749 = vmatprep.subr.mxu0 %v2520
        %3750 = vmatpush1.msra.mxu0 %v2519
        %3751 = vmatprep.subr.mxu0 %v2524
        %3752 = vmatpush1.msra.mxu0 %v2523
        %3753 = vmatprep.subr.mxu0 %v2528
        %3754 = vmatpush1.msra.mxu0 %v2527
        %3755 = vmatprep.subr.mxu0 %v2532
        %3756 = vmatpush1.msra.mxu0 %v2531
        %3757 = vmatprep.subr.mxu0 %v2536
        %3758 = vmatpush1.msra.mxu0 %v2535
        %3759 = vmatprep.subr.mxu0 %v2540
        %3760 = vmatpush1.msra.mxu0 %v2539
        %3761 = vmatprep.subr.mxu0 %v2544
        %3762 = vmatpush1.msra.mxu0 %v2543
        %3763 = vmatprep.subr.mxu0 %v2548
        %3764 = vmatpush1.msra.mxu0 %v2547
        %3765 = vmatprep.subr.mxu0 %v2552
        %3766 = vmatpush1.msra.mxu0 %v2551
        %3767 = vmatprep.subr.mxu0 %v2556
        %3768 = vmatpush1.msra.mxu0 %v2555
        %3769 = vmatprep.subr.mxu0 %v2560
        %3770 = vmatpush1.msra.mxu0 %v2559
        %3771 = vmatprep.subr.mxu0 %v2564
        %3772 = vmatpush1.msra.mxu0 %v2563
        %3773 = vmatprep.subr.mxu0 %v2568
        %3774 = vmatpush1.msra.mxu0 %v2567
        %3775 = vmatprep.subr.mxu0 %v2572
        %3776 = vmatpush1.msra.mxu0 %v2571
        %3777 = vmatprep.subr.mxu0 %v2576
        %3778 = vmatpush1.msra.mxu0 %v2575
        %3779 = vmatprep.subr.mxu0 %v2580
        %3780 = vmatpush1.msra.mxu0 %v2579
        %3781 = vmatprep.subr.mxu0 %v2584
        %3782 = vmatpush1.msra.mxu0 %v2583
        %3783 = vmatprep.subr.mxu0 %v2588
        %3784 = vmatpush1.msra.mxu0 %v2587
        %3785 = vmatprep.subr.mxu0 %v2592
        %3786 = vmatpush1.msra.mxu0 %v2591
        %3787 = vmatprep.subr.mxu0 %v2596
        %3788 = vmatpush1.msra.mxu0 %v2595
        %3789 = vmatprep.subr.mxu0 %v2600
        %3790 = vmatpush1.msra.mxu0 %v2599
        %3791 = vmatprep.subr.mxu0 %v2604
        %3792 = vmatpush1.msra.mxu0 %v2603
        %3793 = vmatprep.mubr.f32.mxu0 %v2454
        %3794 = vmatmul.mubr.f32.gmra.mrb[0].mxu0 %v2453
        %v3795 = vpop.f32.mrb[0].mxu0
        %v3796 = vadd.f32 %v3258, %v3795
        %v3797 = vpop.f32.mrb[0].mxu0
        %v3798 = vadd.f32 %v3262, %v3797
        %3799 = vmatprep.mubr.f32.mxu0 %v2466
        %3800 = vmatmul.mubr.f32.gmra.mrb[0].mxu0 %v2465
        %v3801 = vpop.f32.mrb[0].mxu0
        %v3802 = vadd.f32 %v3258, %v3801
        %v3803 = vpop.f32.mrb[0].mxu0
        %v3804 = vadd.f32 %v3262, %v3803
        %3805 = vdwg.mxu0
        %3806 = vmatprep.subr.mxu0 %v2608
        %3807 = vmatpush1.msra.mxu0 %v2607
        %3808 = vmatprep.subr.mxu0 %v2612
        %3809 = vmatpush1.msra.mxu0 %v2611
        %3810 = vmatprep.subr.mxu0 %v2616
        %3811 = vmatpush1.msra.mxu0 %v2615
        %3812 = vmatprep.subr.mxu0 %v2620
        %3813 = vmatpush1.msra.mxu0 %v2619
        %3814 = vmatprep.subr.mxu0 %v2624
        %3815 = vmatpush1.msra.mxu0 %v2623
        %3816 = vmatprep.subr.mxu0 %v2628
        %3817 = vmatpush1.msra.mxu0 %v2627
        %3818 = vmatprep.subr.mxu0 %v2632
        %3819 = vmatpush1.msra.mxu0 %v2631
        %3820 = vmatprep.subr.mxu0 %v2636
        %3821 = vmatpush1.msra.mxu0 %v2635
        %3822 = vmatprep.subr.mxu0 %v2640
        %3823 = vmatpush1.msra.mxu0 %v2639
        %3824 = vmatprep.subr.mxu0 %v2644
        %3825 = vmatpush1.msra.mxu0 %v2643
        %3826 = vmatprep.subr.mxu0 %v2648
        %3827 = vmatpush1.msra.mxu0 %v2647
        %3828 = vmatprep.subr.mxu0 %v2652
        %3829 = vmatpush1.msra.mxu0 %v2651
        %3830 = vmatprep.subr.mxu0 %v2656
        %3831 = vmatpush1.msra.mxu0 %v2655
        %3832 = vmatprep.subr.mxu0 %v2660
        %3833 = vmatpush1.msra.mxu0 %v2659
        %3834 = vmatprep.subr.mxu0 %v2664
        %3835 = vmatpush1.msra.mxu0 %v2663
        %3836 = vmatprep.subr.mxu0 %v2668
        %3837 = vmatpush1.msra.mxu0 %v2667
        %3838 = vmatprep.subr.mxu0 %v2672
        %3839 = vmatpush1.msra.mxu0 %v2671
        %3840 = vmatprep.subr.mxu0 %v2676
        %3841 = vmatpush1.msra.mxu0 %v2675
        %3842 = vmatprep.subr.mxu0 %v2680
        %3843 = vmatpush1.msra.mxu0 %v2679
        %3844 = vmatprep.subr.mxu0 %v2684
        %3845 = vmatpush1.msra.mxu0 %v2683
        %3846 = vmatprep.subr.mxu0 %v2688
        %3847 = vmatpush1.msra.mxu0 %v2687
        %3848 = vmatprep.subr.mxu0 %v2692
        %3849 = vmatpush1.msra.mxu0 %v2691
        %3850 = vmatprep.subr.mxu0 %v2696
        %3851 = vmatpush1.msra.mxu0 %v2695
        %3852 = vmatprep.subr.mxu0 %v2700
        %3853 = vmatpush1.msra.mxu0 %v2699
        %3854 = vmatprep.subr.mxu0 %v2704
        %3855 = vmatpush1.msra.mxu0 %v2703
        %3856 = vmatprep.subr.mxu0 %v2708
        %3857 = vmatpush1.msra.mxu0 %v2707
        %3858 = vmatprep.subr.mxu0 %v2712
        %3859 = vmatpush1.msra.mxu0 %v2711
        %3860 = vmatprep.subr.mxu0 %v2716
        %3861 = vmatpush1.msra.mxu0 %v2715
        %3862 = vmatprep.subr.mxu0 %v2720
        %3863 = vmatpush1.msra.mxu0 %v2719
        %3864 = vmatprep.subr.mxu0 %v2724
        %3865 = vmatpush1.msra.mxu0 %v2723
        %3866 = vmatprep.subr.mxu0 %v2728
        %3867 = vmatpush1.msra.mxu0 %v2727
        %3868 = vmatprep.subr.mxu0 %v2732
        %3869 = vmatpush1.msra.mxu0 %v2731
        %3870 = vmatprep.mubr.f32.mxu0 %v2456
        %3871 = vmatmul.mubr.f32.gmra.mrb[0].mxu0 %v2455
        %v3872 = vpop.f32.mrb[0].mxu0
        %v3873 = vadd.f32 %v3796, %v3872
        %v3874 = vpop.f32.mrb[0].mxu0
        %v3875 = vadd.f32 %v3798, %v3874
        %3876 = vmatprep.mubr.f32.mxu0 %v2468
        %3877 = vmatmul.mubr.f32.gmra.mrb[0].mxu0 %v2467
        %v3878 = vpop.f32.mrb[0].mxu0
        %v3879 = vadd.f32 %v3802, %v3878
        %v3880 = vpop.f32.mrb[0].mxu0
        %v3881 = vadd.f32 %v3804, %v3880
        %3882 = vdwg.mxu0
        %3883 = vmatprep.subr.mxu0 %v2736
        %3884 = vmatpush1.msra.mxu0 %v2735
        %3885 = vmatprep.subr.mxu0 %v2740
        %3886 = vmatpush1.msra.mxu0 %v2739
        %3887 = vmatprep.subr.mxu0 %v2744
        %3888 = vmatpush1.msra.mxu0 %v2743
        %3889 = vmatprep.subr.mxu0 %v2748
        %3890 = vmatpush1.msra.mxu0 %v2747
        %3891 = vmatprep.subr.mxu0 %v2752
        %3892 = vmatpush1.msra.mxu0 %v2751
        %3893 = vmatprep.subr.mxu0 %v2756
        %3894 = vmatpush1.msra.mxu0 %v2755
        %3895 = vmatprep.subr.mxu0 %v2760
        %3896 = vmatpush1.msra.mxu0 %v2759
        %3897 = vmatprep.subr.mxu0 %v2764
        %3898 = vmatpush1.msra.mxu0 %v2763
        %3899 = vmatprep.subr.mxu0 %v2768
        %3900 = vmatpush1.msra.mxu0 %v2767
        %3901 = vmatprep.subr.mxu0 %v2772
        %3902 = vmatpush1.msra.mxu0 %v2771
        %3903 = vmatprep.subr.mxu0 %v2776
        %3904 = vmatpush1.msra.mxu0 %v2775
        %3905 = vmatprep.subr.mxu0 %v2780
        %3906 = vmatpush1.msra.mxu0 %v2779
        %3907 = vmatprep.subr.mxu0 %v2784
        %3908 = vmatpush1.msra.mxu0 %v2783
        %3909 = vmatprep.subr.mxu0 %v2788
        %3910 = vmatpush1.msra.mxu0 %v2787
        %3911 = vmatprep.subr.mxu0 %v2792
        %3912 = vmatpush1.msra.mxu0 %v2791
        %3913 = vmatprep.subr.mxu0 %v2796
        %3914 = vmatpush1.msra.mxu0 %v2795
        %3915 = vmatprep.subr.mxu0 %v2800
        %3916 = vmatpush1.msra.mxu0 %v2799
        %3917 = vmatprep.subr.mxu0 %v2804
        %3918 = vmatpush1.msra.mxu0 %v2803
        %3919 = vmatprep.subr.mxu0 %v2808
        %3920 = vmatpush1.msra.mxu0 %v2807
        %3921 = vmatprep.subr.mxu0 %v2812
        %3922 = vmatpush1.msra.mxu0 %v2811
        %3923 = vmatprep.subr.mxu0 %v2816
        %3924 = vmatpush1.msra.mxu0 %v2815
        %3925 = vmatprep.subr.mxu0 %v2820
        %3926 = vmatpush1.msra.mxu0 %v2819
        %3927 = vmatprep.subr.mxu0 %v2824
        %3928 = vmatpush1.msra.mxu0 %v2823
        %3929 = vmatprep.subr.mxu0 %v2828
        %3930 = vmatpush1.msra.mxu0 %v2827
        %3931 = vmatprep.subr.mxu0 %v2832
        %3932 = vmatpush1.msra.mxu0 %v2831
        %3933 = vmatprep.subr.mxu0 %v2836
        %3934 = vmatpush1.msra.mxu0 %v2835
        %3935 = vmatprep.subr.mxu0 %v2840
        %3936 = vmatpush1.msra.mxu0 %v2839
        %3937 = vmatprep.subr.mxu0 %v2844
        %3938 = vmatpush1.msra.mxu0 %v2843
        %3939 = vmatprep.subr.mxu0 %v2848
        %3940 = vmatpush1.msra.mxu0 %v2847
        %3941 = vmatprep.subr.mxu0 %v2852
        %3942 = vmatpush1.msra.mxu0 %v2851
        %3943 = vmatprep.subr.mxu0 %v2856
        %3944 = vmatpush1.msra.mxu0 %v2855
        %3945 = vmatprep.subr.mxu0 %v2860
        %3946 = vmatpush1.msra.mxu0 %v2859
        %3947 = vmatprep.mubr.f32.mxu0 %v2458
        %3948 = vmatmul.mubr.f32.gmra.mrb[0].mxu0 %v2457
        %v3949 = vpop.f32.mrb[0].mxu0
        %v3950 = vadd.f32 %v3873, %v3949
        %v3951 = vpop.f32.mrb[0].mxu0
        %v3952 = vadd.f32 %v3875, %v3951
        %3953 = vmatprep.mubr.f32.mxu0 %v2470
        %3954 = vmatmul.mubr.f32.gmra.mrb[0].mxu0 %v2469
        %v3955 = vpop.f32.mrb[0].mxu0
        %v3956 = vadd.f32 %v3879, %v3955
        %v3957 = vpop.f32.mrb[0].mxu0
        %v3958 = vadd.f32 %v3881, %v3957
        %3959 = vdwg.mxu0
        %3960 = vmatprep.subr.mxu0 %v2864
        %3961 = vmatpush1.msra.mxu0 %v2863
        %3962 = vmatprep.subr.mxu0 %v2868
        %3963 = vmatpush1.msra.mxu0 %v2867
        %3964 = vmatprep.subr.mxu0 %v2872
        %3965 = vmatpush1.msra.mxu0 %v2871
        %3966 = vmatprep.subr.mxu0 %v2876
        %3967 = vmatpush1.msra.mxu0 %v2875
        %3968 = vmatprep.subr.mxu0 %v2880
        %3969 = vmatpush1.msra.mxu0 %v2879
        %3970 = vmatprep.subr.mxu0 %v2884
        %3971 = vmatpush1.msra.mxu0 %v2883
        %3972 = vmatprep.subr.mxu0 %v2888
        %3973 = vmatpush1.msra.mxu0 %v2887
        %3974 = vmatprep.subr.mxu0 %v2892
        %3975 = vmatpush1.msra.mxu0 %v2891
        %3976 = vmatprep.subr.mxu0 %v2896
        %3977 = vmatpush1.msra.mxu0 %v2895
        %3978 = vmatprep.subr.mxu0 %v2900
        %3979 = vmatpush1.msra.mxu0 %v2899
        %3980 = vmatprep.subr.mxu0 %v2904
        %3981 = vmatpush1.msra.mxu0 %v2903
        %3982 = vmatprep.subr.mxu0 %v2908
        %3983 = vmatpush1.msra.mxu0 %v2907
        %3984 = vmatprep.subr.mxu0 %v2912
        %3985 = vmatpush1.msra.mxu0 %v2911
        %3986 = vmatprep.subr.mxu0 %v2916
        %3987 = vmatpush1.msra.mxu0 %v2915
        %3988 = vmatprep.subr.mxu0 %v2920
        %3989 = vmatpush1.msra.mxu0 %v2919
        %3990 = vmatprep.subr.mxu0 %v2924
        %3991 = vmatpush1.msra.mxu0 %v2923
        %3992 = vmatprep.subr.mxu0 %v2928
        %3993 = vmatpush1.msra.mxu0 %v2927
        %3994 = vmatprep.subr.mxu0 %v2932
        %3995 = vmatpush1.msra.mxu0 %v2931
        %3996 = vmatprep.subr.mxu0 %v2936
        %3997 = vmatpush1.msra.mxu0 %v2935
        %3998 = vmatprep.subr.mxu0 %v2940
        %3999 = vmatpush1.msra.mxu0 %v2939
        %4000 = vmatprep.subr.mxu0 %v2944
        %4001 = vmatpush1.msra.mxu0 %v2943
        %4002 = vmatprep.subr.mxu0 %v2948
        %4003 = vmatpush1.msra.mxu0 %v2947
        %4004 = vmatprep.subr.mxu0 %v2952
        %4005 = vmatpush1.msra.mxu0 %v2951
        %4006 = vmatprep.subr.mxu0 %v2956
        %4007 = vmatpush1.msra.mxu0 %v2955
        %4008 = vmatprep.subr.mxu0 %v2960
        %4009 = vmatpush1.msra.mxu0 %v2959
        %4010 = vmatprep.subr.mxu0 %v2964
        %4011 = vmatpush1.msra.mxu0 %v2963
        %4012 = vmatprep.subr.mxu0 %v2968
        %4013 = vmatpush1.msra.mxu0 %v2967
        %4014 = vmatprep.subr.mxu0 %v2972
        %4015 = vmatpush1.msra.mxu0 %v2971
        %4016 = vmatprep.subr.mxu0 %v2976
        %4017 = vmatpush1.msra.mxu0 %v2975
        %4018 = vmatprep.subr.mxu0 %v2980
        %4019 = vmatpush1.msra.mxu0 %v2979
        %4020 = vmatprep.subr.mxu0 %v2984
        %4021 = vmatpush1.msra.mxu0 %v2983
        %4022 = vmatprep.subr.mxu0 %v2988
        %4023 = vmatpush1.msra.mxu0 %v2987
        %4024 = vmatprep.mubr.f32.mxu0 %v2460
        %4025 = vmatmul.mubr.f32.gmra.mrb[0].mxu0 %v2459
        %v4026 = vpop.f32.mrb[0].mxu0
        %v4027 = vadd.f32 %v3950, %v4026
        %v4028 = vpop.f32.mrb[0].mxu0
        %v4029 = vadd.f32 %v3952, %v4028
        %4030 = vmatprep.mubr.f32.mxu0 %v2472
        %4031 = vmatmul.mubr.f32.gmra.mrb[0].mxu0 %v2471
        %v4032 = vpop.f32.mrb[0].mxu0
        %v4033 = vadd.f32 %v3956, %v4032
        %v4034 = vpop.f32.mrb[0].mxu0
        %v4035 = vadd.f32 %v3958, %v4034
        %4036 = vdwg.mxu0
        %4037 = vmatprep.subr.mxu0 %v2992
        %4038 = vmatpush1.msra.mxu0 %v2991
        %4039 = vmatprep.subr.mxu0 %v2996
        %4040 = vmatpush1.msra.mxu0 %v2995
        %4041 = vmatprep.subr.mxu0 %v3000
        %4042 = vmatpush1.msra.mxu0 %v2999
        %4043 = vmatprep.subr.mxu0 %v3004
        %4044 = vmatpush1.msra.mxu0 %v3003
        %4045 = vmatprep.subr.mxu0 %v3008
        %4046 = vmatpush1.msra.mxu0 %v3007
        %4047 = vmatprep.subr.mxu0 %v3012
        %4048 = vmatpush1.msra.mxu0 %v3011
        %4049 = vmatprep.subr.mxu0 %v3016
        %4050 = vmatpush1.msra.mxu0 %v3015
        %4051 = vmatprep.subr.mxu0 %v3020
        %4052 = vmatpush1.msra.mxu0 %v3019
        %4053 = vmatprep.subr.mxu0 %v3024
        %4054 = vmatpush1.msra.mxu0 %v3023
        %4055 = vmatprep.subr.mxu0 %v3028
        %4056 = vmatpush1.msra.mxu0 %v3027
        %4057 = vmatprep.subr.mxu0 %v3032
        %4058 = vmatpush1.msra.mxu0 %v3031
        %4059 = vmatprep.subr.mxu0 %v3036
        %4060 = vmatpush1.msra.mxu0 %v3035
        %4061 = vmatprep.subr.mxu0 %v3040
        %4062 = vmatpush1.msra.mxu0 %v3039
        %4063 = vmatprep.subr.mxu0 %v3044
        %4064 = vmatpush1.msra.mxu0 %v3043
        %4065 = vmatprep.subr.mxu0 %v3048
        %4066 = vmatpush1.msra.mxu0 %v3047
        %4067 = vmatprep.subr.mxu0 %v3052
        %4068 = vmatpush1.msra.mxu0 %v3051
        %4069 = vmatprep.subr.mxu0 %v3056
        %4070 = vmatpush1.msra.mxu0 %v3055
        %4071 = vmatprep.subr.mxu0 %v3060
        %4072 = vmatpush1.msra.mxu0 %v3059
        %4073 = vmatprep.subr.mxu0 %v3064
        %4074 = vmatpush1.msra.mxu0 %v3063
        %4075 = vmatprep.subr.mxu0 %v3068
        %4076 = vmatpush1.msra.mxu0 %v3067
        %4077 = vmatprep.subr.mxu0 %v3072
        %4078 = vmatpush1.msra.mxu0 %v3071
        %4079 = vmatprep.subr.mxu0 %v3076
        %4080 = vmatpush1.msra.mxu0 %v3075
        %4081 = vmatprep.subr.mxu0 %v3080
        %4082 = vmatpush1.msra.mxu0 %v3079
        %4083 = vmatprep.subr.mxu0 %v3084
        %4084 = vmatpush1.msra.mxu0 %v3083
        %4085 = vmatprep.subr.mxu0 %v3088
        %4086 = vmatpush1.msra.mxu0 %v3087
        %4087 = vmatprep.subr.mxu0 %v3092
        %4088 = vmatpush1.msra.mxu0 %v3091
        %4089 = vmatprep.subr.mxu0 %v3096
        %4090 = vmatpush1.msra.mxu0 %v3095
        %4091 = vmatprep.subr.mxu0 %v3100
        %4092 = vmatpush1.msra.mxu0 %v3099
        %4093 = vmatprep.subr.mxu0 %v3104
        %4094 = vmatpush1.msra.mxu0 %v3103
        %4095 = vmatprep.subr.mxu0 %v3108
        %4096 = vmatpush1.msra.mxu0 %v3107
        %4097 = vmatprep.subr.mxu0 %v3112
        %4098 = vmatpush1.msra.mxu0 %v3111
        %4099 = vmatprep.subr.mxu0 %v3116
        %4100 = vmatpush1.msra.mxu0 %v3115
        %4101 = vmatprep.mubr.f32.mxu0 %v2462
        %4102 = vmatmul.mubr.f32.gmra.mrb[0].mxu0 %v2461
        %v4103 = vpop.f32.mrb[0].mxu0
        %v4104 = vadd.f32 %v4027, %v4103
        %v4105 = vpop.f32.mrb[0].mxu0
        %v4106 = vadd.f32 %v4029, %v4105
        %4107 = vmatprep.mubr.f32.mxu0 %v2474
        %4108 = vmatmul.mubr.f32.gmra.mrb[0].mxu0 %v2473
        %v4109 = vpop.f32.mrb[0].mxu0
        %v4110 = vadd.f32 %v4033, %v4109
        %v4111 = vpop.f32.mrb[0].mxu0
        %v4112 = vadd.f32 %v4035, %v4111
        %4113 = vdwg.mxu0
        %4114 = vmatprep.subr.mxu0 %v3120
        %4115 = vmatpush1.msra.mxu0 %v3119
        %4116 = vmatprep.subr.mxu0 %v3124
        %4117 = vmatpush1.msra.mxu0 %v3123
        %4118 = vmatprep.subr.mxu0 %v3128
        %4119 = vmatpush1.msra.mxu0 %v3127
        %4120 = vmatprep.subr.mxu0 %v3132
        %4121 = vmatpush1.msra.mxu0 %v3131
        %4122 = vmatprep.subr.mxu0 %v3136
        %4123 = vmatpush1.msra.mxu0 %v3135
        %4124 = vmatprep.subr.mxu0 %v3140
        %4125 = vmatpush1.msra.mxu0 %v3139
        %4126 = vmatprep.subr.mxu0 %v3144
        %4127 = vmatpush1.msra.mxu0 %v3143
        %4128 = vmatprep.subr.mxu0 %v3148
        %4129 = vmatpush1.msra.mxu0 %v3147
        %4130 = vmatprep.subr.mxu0 %v3152
        %4131 = vmatpush1.msra.mxu0 %v3151
        %4132 = vmatprep.subr.mxu0 %v3156
        %4133 = vmatpush1.msra.mxu0 %v3155
        %4134 = vmatprep.subr.mxu0 %v3160
        %4135 = vmatpush1.msra.mxu0 %v3159
        %4136 = vmatprep.subr.mxu0 %v3164
        %4137 = vmatpush1.msra.mxu0 %v3163
        %4138 = vmatprep.subr.mxu0 %v3168
        %4139 = vmatpush1.msra.mxu0 %v3167
        %4140 = vmatprep.subr.mxu0 %v3172
        %4141 = vmatpush1.msra.mxu0 %v3171
        %4142 = vmatprep.subr.mxu0 %v3176
        %4143 = vmatpush1.msra.mxu0 %v3175
        %4144 = vmatprep.subr.mxu0 %v3180
        %4145 = vmatpush1.msra.mxu0 %v3179
        %4146 = vmatprep.subr.mxu0 %v3184
        %4147 = vmatpush1.msra.mxu0 %v3183
        %4148 = vmatprep.subr.mxu0 %v3188
        %4149 = vmatpush1.msra.mxu0 %v3187
        %4150 = vmatprep.subr.mxu0 %v3192
        %4151 = vmatpush1.msra.mxu0 %v3191
        %4152 = vmatprep.subr.mxu0 %v3196
        %4153 = vmatpush1.msra.mxu0 %v3195
        %4154 = vmatprep.subr.mxu0 %v3200
        %4155 = vmatpush1.msra.mxu0 %v3199
        %4156 = vmatprep.subr.mxu0 %v3204
        %4157 = vmatpush1.msra.mxu0 %v3203
        %4158 = vmatprep.subr.mxu0 %v3208
        %4159 = vmatpush1.msra.mxu0 %v3207
        %4160 = vmatprep.subr.mxu0 %v3212
        %4161 = vmatpush1.msra.mxu0 %v3211
        %4162 = vmatprep.subr.mxu0 %v3216
        %4163 = vmatpush1.msra.mxu0 %v3215
        %4164 = vmatprep.subr.mxu0 %v3220
        %4165 = vmatpush1.msra.mxu0 %v3219
        %4166 = vmatprep.subr.mxu0 %v3224
        %4167 = vmatpush1.msra.mxu0 %v3223
        %4168 = vmatprep.subr.mxu0 %v3228
        %4169 = vmatpush1.msra.mxu0 %v3227
        %4170 = vmatprep.subr.mxu0 %v3232
        %4171 = vmatpush1.msra.mxu0 %v3231
        %4172 = vmatprep.subr.mxu0 %v3236
        %4173 = vmatpush1.msra.mxu0 %v3235
        %4174 = vmatprep.subr.mxu0 %v3240
        %4175 = vmatpush1.msra.mxu0 %v3239
        %4176 = vmatprep.subr.mxu0 %v3244
        %4177 = vmatpush1.msra.mxu0 %v3243
        %4178 = vmatprep.mubr.f32.mxu0 %v2464
        %4179 = vmatmul.mubr.f32.gmra.mrb[0].mxu0 %v2463
        %v4180 = vpop.f32.mrb[0].mxu0
        %v4181 = vadd.f32 %v4104, %v4180
        %v4182 = vpop.f32.mrb[0].mxu0
        %v4183 = vadd.f32 %v4106, %v4182
        %4184 = vmatprep.mubr.f32.mxu0 %v2476
        %4185 = vmatmul.mubr.f32.gmra.mrb[0].mxu0 %v2475
        %v4186 = vpop.f32.mrb[0].mxu0
        %v4187 = vadd.f32 %v4110, %v4186
        %v4188 = vpop.f32.mrb[0].mxu0
        %v4189 = vadd.f32 %v4112, %v4188
        %4190 = vdwg.mxu0
        %v4191 = vmul.f32 %v3719, 0.2
        %v4192 = vmul.f32 %v3721, 0.2
        %v4193 = vmul.f32 %v4181, 0.2
        %v4194 = vmul.f32 %v4183, 0.2
        %v4195 = vmul.f32 %v3725, 0.2
        %v4196 = vmul.f32 %v3727, 0.2
        %v4197 = vmul.f32 %v4187, 0.2
        %v4198 = vmul.f32 %v4189, 0.2
        %v4199 = vmax.f32 %v3719, %v4191
        %v4200 = vmax.f32 %v3721, %v4192
        %v4201 = vmax.f32 %v4181, %v4193
        %v4202 = vmax.f32 %v4183, %v4194
        %v4203 = vmax.f32 %v3725, %v4195
        %v4204 = vmax.f32 %v3727, %v4196
        %v4205 = vmax.f32 %v4187, %v4197
        %v4206 = vmax.f32 %v4189, %v4198
        %v4207 = vadd.f32 %v4199, %v485
        %v4208 = vadd.f32 %v4200, %v486
        %v4209 = vadd.f32 %v4201, %v487
        %v4210 = vadd.f32 %v4202, %v488
        %v4211 = vadd.f32 %v4203, %v489
        %v4212 = vadd.f32 %v4204, %v490
        %v4213 = vadd.f32 %v4205, %v491
        %v4214 = vadd.f32 %v4206, %v492
        %4215 = vst [vmem:[%s455] sm:$0xff] %v4207
        %4216 = vst [vmem:[%s455 + $0x8] sm:$0xff] %v4208
        %4217 = vst [vmem:[%s455 + $0x10] sm:$0xff] %v4209
        %4218 = vst [vmem:[%s455 + $0x18] sm:$0xff] %v4210
        %4219 = vst [vmem:[%s455 + $0x20] sm:$0xff] %v4211
        %4220 = vst [vmem:[%s455 + $0x28] sm:$0xff] %v4212
        %4221 = vst [vmem:[%s455 + $0x30] sm:$0xff] %v4213
        %4222 = vst [vmem:[%s455 + $0x38] sm:$0xff] %v4214
        %s4223 = sand.u32 %s232, 1
        %s4224 = scalar_lea.sflag [#allocation5], %s4223
        %s4225 = sand.u32 %s232, 1
        %s4226 = smul.addr %s4225, 64
        %s4227 = scalar_lea.vmem [#allocation18], %s4226
        // Predicated region
        $region93: #{tpu_custom_call.1} parent=55 // pred_check
          %p4228 = pneg %p242
        $region94: #{tpu_custom_call.1} parent=55 // pred_check_branch
          %4230 = sbr.rel (%p4228) target = $region96
        $region95: #{tpu_custom_call.1} parent=55 // pred_region
          %s4231 = smul.u32 2, %s30
          %s4233 = ssub.s32 1024, 1024
          %4234 = vsyncadd %s4224, %s4233
          %s4235 = smul.addr %s4231, 4
          %s4236 = smul.addr %s4235, 128
          %s4237 = scalar_lea.hbm %s9, %s4236
          %s4238 = sshll.u32 %s4227, 4
          %s4239 = int_to_ptr.vmem [resolvable:$true] %s4238
          %4244 = dma.vmem_to_hbm [thread:$0]  %s4239, 1024, %s4237, %s4224, 512, 512, 32
        $region96: #{tpu_custom_call.1} parent=55 // pred_fallthru
          _
      $region56: #{tpu_custom_call.1} parent=5 // pred_fallthru
        _
      %p4245 = scmp.le.s32.totalorder 2, %s25
      // Predicated region
      $region97: #{tpu_custom_call.1} parent=5 // pred_check
        %p4246 = pneg %p4245
      $region98: #{tpu_custom_call.1} parent=5 // pred_check_branch
        %4248 = sbr.rel (%p4246) target = $region100
      $region99: #{tpu_custom_call.1} parent=5 // pred_region
        %s4249 = ssub.s32 %s25, 2
        // Predicated region
        $region101: #{tpu_custom_call.1} parent=99 // pred_check
          %p4250 = pneg %p248
        $region102: #{tpu_custom_call.1} parent=99 // pred_check_branch
          %4252 = sbr.rel (%p4250) target = $region104
        $region103: #{tpu_custom_call.1} parent=99 // pred_region
          %s4253 = sand.u32 %s233, 1
          %s4254 = scalar_lea.sflag [#allocation5], %s4253
          %s4255 = sand.u32 %s233, 1
          %s4256 = smul.addr %s4255, 64
          %s4257 = scalar_lea.vmem [#allocation18], %s4256
          %4258 = dma.done %s4254, 1024
        $region104: #{tpu_custom_call.1} parent=99 // pred_fallthru
          _
      $region100: #{tpu_custom_call.1} parent=5 // pred_fallthru
        _
    $region6: #{tpu_custom_call.1} parent=1 // loop_footer
      %s29 = sadd.s32 1, %s25
    $region7: #{tpu_custom_call.1} parent=1 // loop_footer_branch
      %24 = sbr.rel target = $region3
    $region8: #{tpu_custom_call.1} parent=1 // loop_exit
      _
    %4259 = vsyncpa [#allocation4], 1
    %s4260 = scalar_lea.sflag [#allocation4], 1
    %4261 = vsyncpa %s4260, 1
    %4262 = vsyncpa [#allocation7], 1
    %4263 = vsyncpa [#allocation10], 1
    %4264 = vsyncpa [#allocation13], 1
    %4265 = vsyncpa [#allocation16], 1
    %4266 = vsyncpa [#allocation5], 1
    %s4267 = scalar_lea.sflag [#allocation5], 1
    %4268 = vsyncpa %s4267, 1

</llo_original>
